<compile_context>
chip_gen: v6e
topology: v6e:2x2x1
jax: 0.10.0
libtpu: 0.0.40
codegen_flags: <defaults>
</compile_context>

<pallas_src>
import jax
import jax.numpy as jnp
import numpy as np
from jax.experimental import pallas as pl
from jax.experimental.pallas import tpu as pltpu  # noqa: F401  (TPU backend)

# ---- small, module-consistent configuration -------------------------------
N_LAYERS = 2
N_HEAD = 4
D_K = 8
D_V = 8
D_MODEL = 32
D_INNER = 64
B = 2
S = 8
HDK = N_HEAD * D_K
HDV = N_HEAD * D_V

LN_EPS = 1e-5    # torch.nn.LayerNorm default
BN_EPS = 1e-5    # torch.nn.BatchNorm1d default
MASK_NEG = -1e30  # additive finite mask value


# ---------------------------------------------------------------------------
# Fused Pallas kernel: N_LAYERS encoder layers + final BatchNorm1d
# ---------------------------------------------------------------------------
def _layernorm(x, gamma, beta):
    mu = jnp.mean(x, axis=-1, keepdims=True)
    var = jnp.mean((x - mu) ** 2, axis=-1, keepdims=True)
    return (x - mu) * jax.lax.rsqrt(var + LN_EPS) * gamma + beta


def fused_encoder_kernel(
    x_ref, npm_ref, mask_ref,
    wqkv_ref, bqkv_ref, wo_ref, bo_ref, ln1g_ref, ln1b_ref,
    w1_ref, b1_ref, w2_ref, b2_ref, ln2g_ref, ln2b_ref,
    bng_ref, bnb_ref,
    out_ref,
):
    x = x_ref[...]             # (B*S, D)        lane/sublane-dense activation slab
    npm = npm_ref[...]         # (B*S, 1)        non_pad_mask, flattened
    mask_add = mask_ref[...]   # (H*B, S, S)     additive mask: 0.0 or -1e30

    def to_head_major(t2d, d):
        # (B*S, H*d) -> (H*B, S, d) via cheap lane slices + leading-dim stack
        heads = [t2d[:, h * d:(h + 1) * d].reshape(B, S, d) for h in range(N_HEAD)]
        return jnp.stack(heads, axis=0).reshape(N_HEAD * B, S, d)

    for l in range(N_LAYERS):  # tiny fixed trip count: unroll
        # ---- multi-head self attention (fused QKV projection) -------------
        qkv = jnp.dot(x, wqkv_ref[l],
                      preferred_element_type=jnp.float32) + bqkv_ref[l]
        q = to_head_major(qkv[:, 0:HDK], D_K)          # 1/sqrt(d_k) pre-folded
        k = to_head_major(qkv[:, HDK:2 * HDK], D_K)
        v = to_head_major(qkv[:, 2 * HDK:2 * HDK + HDV], D_V)

        scores = jnp.einsum('nqd,nkd->nqk', q, k,
                            preferred_element_type=jnp.float32) + mask_add
        m = jnp.max(scores, axis=-1, keepdims=True)
        e = jnp.exp(scores - m)
        p = e * pl.reciprocal(jnp.sum(e, axis=-1, keepdims=True), approx=True)
        ctx = jnp.einsum('nqk,nkd->nqd', p, v,
                         preferred_element_type=jnp.float32)     # (H*B, S, Dv)

        # output projection: batched per-head Wo slabs, then sum over heads
        out_h = jnp.einsum('nqd,ndf->nqf', ctx, wo_ref[l],
                           preferred_element_type=jnp.float32)   # (H*B, S, D)
        attn = jnp.sum(out_h.reshape(N_HEAD, B, S, D_MODEL), axis=0)
        attn = attn.reshape(B * S, D_MODEL) + bo_ref[l]
        # dropout after fc is identity (inference mode)

        x1 = _layernorm(attn + x, ln1g_ref[l], ln1b_ref[l]) * npm

        # ---- position-wise feed forward (Conv1d k=1 == Linear) ------------
        h1 = jnp.maximum(
            jnp.dot(x1, w1_ref[l], preferred_element_type=jnp.float32) + b1_ref[l],
            0.0)
        h2 = jnp.dot(h1, w2_ref[l], preferred_element_type=jnp.float32) + b2_ref[l]
        x = _layernorm(h2 + x1, ln2g_ref[l], ln2b_ref[l]) * npm

    # ---- final BatchNorm1d over the flattened (B*S, D) activations --------
    # TODO(synk): training-mode batch statistics (biased variance), the module
    # default; eval-mode running stats would need extra state inputs.
    mu = jnp.mean(x, axis=0, keepdims=True)
    var = jnp.mean((x - mu) ** 2, axis=0, keepdims=True)
    out_ref[...] = (x - mu) * jax.lax.rsqrt(var + BN_EPS) * bng_ref[...] + bnb_ref[...]


# ---------------------------------------------------------------------------
# Wrappers (glue)
# ---------------------------------------------------------------------------
def prepare_params(layer_params, bn_gamma, bn_beta):
    """Stack per-layer weights into (N_LAYERS, ...) tensors, fuse QKV, fold
    the 1/sqrt(d_k) temperature into the Q projection, and pre-broadcast Wo
    into head-major (H*B, Dv, D) slabs."""
    inv_temp = 1.0 / (D_K ** 0.5)
    wqkv, bqkv, wo_hb, bo, g1, be1, w1, b1, w2, b2, g2, be2 = ([] for _ in range(12))
    for (wq, bq, wk, bk, wv, bv, wo_, bo_, g1_, be1_,
         w1_, b1_, w2_, b2_, g2_, be2_) in layer_params:
        wqkv.append(jnp.concatenate([wq * inv_temp, wk, wv], axis=1))   # (D, 3*H*Dk)
        bqkv.append(jnp.concatenate([bq * inv_temp, bk, bv], axis=1))   # (1, 3*H*Dk)
        wo_h = wo_.reshape(N_HEAD, D_V, D_MODEL)
        wo_hb.append(jnp.broadcast_to(wo_h[:, None],
                                      (N_HEAD, B, D_V, D_MODEL))
                     .reshape(N_HEAD * B, D_V, D_MODEL))                # (H*B, Dv, D)
        bo.append(bo_); g1.append(g1_); be1.append(be1_)
        w1.append(w1_); b1.append(b1_); w2.append(w2_); b2.append(b2_)
        g2.append(g2_); be2.append(be2_)
    st = lambda xs: jnp.stack(xs, axis=0)
    return (st(wqkv), st(bqkv), st(wo_hb), st(bo), st(g1), st(be1),
            st(w1), st(b1), st(w2), st(b2), st(g2), st(be2),
            bn_gamma, bn_beta)


@jax.jit
def trans_encoder_forward(enc_output, non_pad_mask, slf_attn_mask, fused_params):
    (wqkv, bqkv, wo_hb, bo, g1, be1, w1, b1, w2, b2, g2, be2,
     bn_gamma, bn_beta) = fused_params
    bsz, seq, hid = enc_output.shape

    x2d = enc_output.reshape(bsz * seq, hid)                  # (B*S, D)
    npm2d = non_pad_mask.reshape(bsz * seq, 1)                # (B*S, 1)
    # additive finite mask, broadcast over heads in (h, b) order -> (H*B, S, S)
    mask_add = jnp.broadcast_to((slf_attn_mask * MASK_NEG)[None],
                                (N_HEAD, bsz, seq, seq)).reshape(
                                    N_HEAD * bsz, seq, seq)

    out2d = pl.pallas_call(
        fused_encoder_kernel,
        out_shape=jax.ShapeDtypeStruct((bsz * seq, hid), jnp.float32),
    )(x2d, npm2d, mask_add,
      wqkv, bqkv, wo_hb, bo, g1, be1, w1, b1, w2, b2, g2, be2,
      bn_gamma, bn_beta)
    return out2d.reshape(bsz, seq, hid)


# ---------------------------------------------------------------------------
# Pure-JAX reference (original module math) for a correctness check
# ---------------------------------------------------------------------------
def _ref_ln(x, g, b):
    mu = jnp.mean(x, axis=-1, keepdims=True)
    var = jnp.mean((x - mu) ** 2, axis=-1, keepdims=True)
    return (x - mu) / jnp.sqrt(var + LN_EPS) * g + b


def ref_forward(x, npm, mask, layer_params, bn_gamma, bn_beta):
    for p in layer_params:
        (wq, bq, wk, bk, wv, bv, wo, bo, g1, be1, w1, b1, w2, b2, g2, be2) = p
        q = (x @ wq + bq).reshape(B, S, N_HEAD, D_K)
        k = (x @ wk + bk).reshape(B, S, N_HEAD, D_K)
        v = (x @ wv + bv).reshape(B, S, N_HEAD, D_V)
        sc = jnp.einsum('bqhd,bkhd->bhqk', q, k) / (D_K ** 0.5)
        sc = jnp.where(mask[:, None, :, :] > 0, -jnp.inf, sc)
        pa = jax.nn.softmax(sc, axis=-1)
        o = jnp.einsum('bhqk,bkhd->bqhd', pa, v).reshape(B, S, N_HEAD * D_V)
        o = o @ wo + bo
        x1 = _ref_ln(o + x, g1, be1) * npm
        h = jnp.maximum(x1 @ w1 + b1, 0.0) @ w2 + b2
        x = _ref_ln(h + x1, g2, be2) * npm
    flat = x.reshape(-1, x.shape[-1])
    mu = jnp.mean(flat, axis=0, keepdims=True)
    var = jnp.mean((flat - mu) ** 2, axis=0, keepdims=True)
    flat = (flat - mu) / jnp.sqrt(var + BN_EPS) * bn_gamma + bn_beta
    return flat.reshape(x.shape)


# ---------------------------------------------------------------------------
# Deterministic parameter init + driver
# ---------------------------------------------------------------------------
def init_params(key):
    layer_params = []
    for _ in range(N_LAYERS):
        key, *ks = jax.random.split(key, 17)

        def rnd(k, shape, std):
            return jax.random.normal(k, shape, jnp.float32) * std

        wq = rnd(ks[0], (D_MODEL, HDK), (2.0 / (D_MODEL + D_K)) ** 0.5)
        bq = rnd(ks[1], (1, HDK), 0.02)
        wk = rnd(ks[2], (D_MODEL, HDK), (2.0 / (D_MODEL + D_K)) ** 0.5)
        bk = rnd(ks[3], (1, HDK), 0.02)
        wv = rnd(ks[4], (D_MODEL, HDV), (2.0 / (D_MODEL + D_V)) ** 0.5)
        bv = rnd(ks[5], (1, HDV), 0.02)
        wo = rnd(ks[6], (HDV, D_MODEL), (2.0 / (HDV + D_MODEL)) ** 0.5)
        bo = rnd(ks[7], (1, D_MODEL), 0.02)
        g1 = 1.0 + rnd(ks[8], (1, D_MODEL), 0.05)
        be1 = rnd(ks[9], (1, D_MODEL), 0.05)
        w1 = rnd(ks[10], (D_MODEL, D_INNER), (2.0 / (D_MODEL + D_INNER)) ** 0.5)
        b1 = rnd(ks[11], (1, D_INNER), 0.02)
        w2 = rnd(ks[12], (D_INNER, D_MODEL), (2.0 / (D_MODEL + D_INNER)) ** 0.5)
        b2 = rnd(ks[13], (1, D_MODEL), 0.02)
        g2 = 1.0 + rnd(ks[14], (1, D_MODEL), 0.05)
        be2 = rnd(ks[15], (1, D_MODEL), 0.05)
        layer_params.append((wq, bq, wk, bk, wv, bv, wo, bo, g1, be1,
                             w1, b1, w2, b2, g2, be2))
    key, k1, k2 = jax.random.split(key, 3)
    bn_gamma = 1.0 + jax.random.normal(k1, (1, D_MODEL), jnp.float32) * 0.05
    bn_beta = jax.random.normal(k2, (1, D_MODEL), jnp.float32) * 0.05
    return layer_params, bn_gamma, bn_beta


if __name__ == "__main__":
    key = jax.random.PRNGKey(0)
    key, kx = jax.random.split(key)
    enc_output = jax.random.normal(kx, (B, S, D_MODEL), jnp.float32)

    # last 2 positions of batch element 1 are padding
    lengths = jnp.array([S, S - 2], dtype=jnp.int32)
    pos = jnp.arange(S)[None, :]                               # (1, S)
    is_pad = (pos >= lengths[:, None]).astype(jnp.float32)     # (B, S), 1 = pad
    non_pad_mask = (1.0 - is_pad)[:, :, None]                  # (B, S, 1)
    slf_attn_mask = jnp.broadcast_to(is_pad[:, None, :], (B, S, S)).astype(jnp.float32)

    layer_params, bn_gamma, bn_beta = init_params(key)
    fused_params = prepare_params(layer_params, bn_gamma, bn_beta)

    out = trans_encoder_forward(enc_output, non_pad_mask, slf_attn_mask, fused_params)
    out = jax.block_until_ready(out)

    ref = ref_forward(enc_output, non_pad_mask, slf_attn_mask,
                      layer_params, bn_gamma, bn_beta)
    ref = jax.block_until_ready(ref)

    assert out.shape == (B, S, D_MODEL)
    assert bool(jnp.all(jnp.isfinite(out)))
    np.testing.assert_allclose(np.asarray(out), np.asarray(ref), rtol=3e-2, atol=3e-2)

    print("KERNEL_OK")
</pallas_src>

<mosaic_0001>
module attributes {stable_mosaic.version = 11 : i64} {
  func.func @fused_encoder_kernel(%arg0: memref<16x32xf32, #tpu.memory_space<vmem>>, %arg1: memref<16x1xf32, #tpu.memory_space<vmem>>, %arg2: memref<8x8x8xf32, #tpu.memory_space<vmem>>, %arg3: memref<2x32x96xf32, #tpu.memory_space<vmem>>, %arg4: memref<2x1x96xf32, #tpu.memory_space<vmem>>, %arg5: memref<2x8x8x32xf32, #tpu.memory_space<vmem>>, %arg6: memref<2x1x32xf32, #tpu.memory_space<vmem>>, %arg7: memref<2x1x32xf32, #tpu.memory_space<vmem>>, %arg8: memref<2x1x32xf32, #tpu.memory_space<vmem>>, %arg9: memref<2x32x64xf32, #tpu.memory_space<vmem>>, %arg10: memref<2x1x64xf32, #tpu.memory_space<vmem>>, %arg11: memref<2x64x32xf32, #tpu.memory_space<vmem>>, %arg12: memref<2x1x32xf32, #tpu.memory_space<vmem>>, %arg13: memref<2x1x32xf32, #tpu.memory_space<vmem>>, %arg14: memref<2x1x32xf32, #tpu.memory_space<vmem>>, %arg15: memref<1x32xf32, #tpu.memory_space<vmem>>, %arg16: memref<1x32xf32, #tpu.memory_space<vmem>>, %arg17: memref<16x32xf32, #tpu.memory_space<vmem>>) attributes {dimension_semantics = [], scalar_prefetch = 0 : i64, scratch_operands = 0 : i64, tpu.core_type = #tpu.core_type<tc>} {
    %c0 = arith.constant 0 : index
    %c0_0 = arith.constant 0 : index
    %0 = vector.load %arg0[%c0, %c0_0] : memref<16x32xf32, #tpu.memory_space<vmem>>, vector<16x32xf32>
    %c0_1 = arith.constant 0 : index
    %c0_2 = arith.constant 0 : index
    %1 = vector.load %arg1[%c0_1, %c0_2] : memref<16x1xf32, #tpu.memory_space<vmem>>, vector<16x1xf32>
    %c0_3 = arith.constant 0 : index
    %c0_4 = arith.constant 0 : index
    %c0_5 = arith.constant 0 : index
    %2 = vector.load %arg2[%c0_3, %c0_4, %c0_5] : memref<8x8x8xf32, #tpu.memory_space<vmem>>, vector<8x8x8xf32>
    %c0_6 = arith.constant 0 : index
    %c0_7 = arith.constant 0 : index
    %c0_8 = arith.constant 0 : index
    %3 = vector.load %arg3[%c0_6, %c0_7, %c0_8] : memref<2x32x96xf32, #tpu.memory_space<vmem>>, vector<1x32x96xf32>
    %4 = vector.shape_cast %3 : vector<1x32x96xf32> to vector<32x96xf32>
    %cst = arith.constant dense<0.000000e+00> : vector<16x96xf32>
    %5 = tpu.matmul %0, %4, %cst {dimension_numbers = #tpu.dot_dimension_numbers<[1], [0], [0], [1], [0, 0, 1, 1], [], []>} : vector<16x32xf32>, vector<32x96xf32>, vector<16x96xf32> -> vector<16x96xf32>
    %c0_9 = arith.constant 0 : index
    %c0_10 = arith.constant 0 : index
    %c0_11 = arith.constant 0 : index
    %6 = vector.load %arg4[%c0_9, %c0_10, %c0_11] : memref<2x1x96xf32, #tpu.memory_space<vmem>>, vector<1x1x96xf32>
    %7 = vector.shape_cast %6 : vector<1x1x96xf32> to vector<1x96xf32>
    %8 = vector.broadcast %7 : vector<1x96xf32> to vector<16x96xf32>
    %9 = arith.addf %5, %8 : vector<16x96xf32>
    %10 = vector.extract_strided_slice %9 {offsets = [0, 0], sizes = [16, 32], strides = [1, 1]} : vector<16x96xf32> to vector<16x32xf32>
    %11 = vector.extract_strided_slice %10 {offsets = [0, 0], sizes = [16, 8], strides = [1, 1]} : vector<16x32xf32> to vector<16x8xf32>
    %12 = vector.shape_cast %11 : vector<16x8xf32> to vector<2x8x8xf32>
    %13 = vector.extract_strided_slice %10 {offsets = [0, 8], sizes = [16, 8], strides = [1, 1]} : vector<16x32xf32> to vector<16x8xf32>
    %14 = vector.shape_cast %13 : vector<16x8xf32> to vector<2x8x8xf32>
    %15 = vector.extract_strided_slice %10 {offsets = [0, 16], sizes = [16, 8], strides = [1, 1]} : vector<16x32xf32> to vector<16x8xf32>
    %16 = vector.shape_cast %15 : vector<16x8xf32> to vector<2x8x8xf32>
    %17 = vector.extract_strided_slice %10 {offsets = [0, 24], sizes = [16, 8], strides = [1, 1]} : vector<16x32xf32> to vector<16x8xf32>
    %18 = vector.shape_cast %17 : vector<16x8xf32> to vector<2x8x8xf32>
    %19 = vector.shape_cast %12 : vector<2x8x8xf32> to vector<1x2x8x8xf32>
    %20 = vector.shape_cast %14 : vector<2x8x8xf32> to vector<1x2x8x8xf32>
    %21 = vector.shape_cast %16 : vector<2x8x8xf32> to vector<1x2x8x8xf32>
    %22 = vector.shape_cast %18 : vector<2x8x8xf32> to vector<1x2x8x8xf32>
    %23 = tpu.concatenate %19, %20, %21, %22 in 0 : vector<1x2x8x8xf32>, vector<1x2x8x8xf32>, vector<1x2x8x8xf32>, vector<1x2x8x8xf32> -> vector<4x2x8x8xf32>
    %24 = vector.shape_cast %23 : vector<4x2x8x8xf32> to vector<8x8x8xf32>
    %25 = vector.extract_strided_slice %9 {offsets = [0, 32], sizes = [16, 32], strides = [1, 1]} : vector<16x96xf32> to vector<16x32xf32>
    %26 = vector.extract_strided_slice %25 {offsets = [0, 0], sizes = [16, 8], strides = [1, 1]} : vector<16x32xf32> to vector<16x8xf32>
    %27 = vector.shape_cast %26 : vector<16x8xf32> to vector<2x8x8xf32>
    %28 = vector.extract_strided_slice %25 {offsets = [0, 8], sizes = [16, 8], strides = [1, 1]} : vector<16x32xf32> to vector<16x8xf32>
    %29 = vector.shape_cast %28 : vector<16x8xf32> to vector<2x8x8xf32>
    %30 = vector.extract_strided_slice %25 {offsets = [0, 16], sizes = [16, 8], strides = [1, 1]} : vector<16x32xf32> to vector<16x8xf32>
    %31 = vector.shape_cast %30 : vector<16x8xf32> to vector<2x8x8xf32>
    %32 = vector.extract_strided_slice %25 {offsets = [0, 24], sizes = [16, 8], strides = [1, 1]} : vector<16x32xf32> to vector<16x8xf32>
    %33 = vector.shape_cast %32 : vector<16x8xf32> to vector<2x8x8xf32>
    %34 = vector.shape_cast %27 : vector<2x8x8xf32> to vector<1x2x8x8xf32>
    %35 = vector.shape_cast %29 : vector<2x8x8xf32> to vector<1x2x8x8xf32>
    %36 = vector.shape_cast %31 : vector<2x8x8xf32> to vector<1x2x8x8xf32>
    %37 = vector.shape_cast %33 : vector<2x8x8xf32> to vector<1x2x8x8xf32>
    %38 = tpu.concatenate %34, %35, %36, %37 in 0 : vector<1x2x8x8xf32>, vector<1x2x8x8xf32>, vector<1x2x8x8xf32>, vector<1x2x8x8xf32> -> vector<4x2x8x8xf32>
    %39 = vector.shape_cast %38 : vector<4x2x8x8xf32> to vector<8x8x8xf32>
    %40 = vector.extract_strided_slice %9 {offsets = [0, 64], sizes = [16, 32], strides = [1, 1]} : vector<16x96xf32> to vector<16x32xf32>
    %41 = vector.extract_strided_slice %40 {offsets = [0, 0], sizes = [16, 8], strides = [1, 1]} : vector<16x32xf32> to vector<16x8xf32>
    %42 = vector.shape_cast %41 : vector<16x8xf32> to vector<2x8x8xf32>
    %43 = vector.extract_strided_slice %40 {offsets = [0, 8], sizes = [16, 8], strides = [1, 1]} : vector<16x32xf32> to vector<16x8xf32>
    %44 = vector.shape_cast %43 : vector<16x8xf32> to vector<2x8x8xf32>
    %45 = vector.extract_strided_slice %40 {offsets = [0, 16], sizes = [16, 8], strides = [1, 1]} : vector<16x32xf32> to vector<16x8xf32>
    %46 = vector.shape_cast %45 : vector<16x8xf32> to vector<2x8x8xf32>
    %47 = vector.extract_strided_slice %40 {offsets = [0, 24], sizes = [16, 8], strides = [1, 1]} : vector<16x32xf32> to vector<16x8xf32>
    %48 = vector.shape_cast %47 : vector<16x8xf32> to vector<2x8x8xf32>
    %49 = vector.shape_cast %42 : vector<2x8x8xf32> to vector<1x2x8x8xf32>
    %50 = vector.shape_cast %44 : vector<2x8x8xf32> to vector<1x2x8x8xf32>
    %51 = vector.shape_cast %46 : vector<2x8x8xf32> to vector<1x2x8x8xf32>
    %52 = vector.shape_cast %48 : vector<2x8x8xf32> to vector<1x2x8x8xf32>
    %53 = tpu.concatenate %49, %50, %51, %52 in 0 : vector<1x2x8x8xf32>, vector<1x2x8x8xf32>, vector<1x2x8x8xf32>, vector<1x2x8x8xf32> -> vector<4x2x8x8xf32>
    %54 = vector.shape_cast %53 : vector<4x2x8x8xf32> to vector<8x8x8xf32>
    "tpu.trace_start"() <{level = 10 : i32, message = "nqd,nkd->nqk"}> : () -> ()
    %cst_12 = arith.constant dense<0.000000e+00> : vector<8x8x8xf32>
    %55 = tpu.matmul %24, %39, %cst_12 {dimension_numbers = #tpu.dot_dimension_numbers<[2], [2], [1], [1], [0, 0, 0, 1, 1, 1], [0], [0]>} : vector<8x8x8xf32>, vector<8x8x8xf32>, vector<8x8x8xf32> -> vector<8x8x8xf32>
    "tpu.trace_stop"() : () -> ()
    %56 = arith.addf %55, %2 : vector<8x8x8xf32>
    %cst_13 = arith.constant dense<0xFF800000> : vector<8x8xf32>
    %57 = vector.multi_reduction <maximumf>, %56, %cst_13 [2] : vector<8x8x8xf32> to vector<8x8xf32>
    %58 = vector.shape_cast %57 : vector<8x8xf32> to vector<8x8x1xf32>
    %59 = vector.broadcast %58 : vector<8x8x1xf32> to vector<8x8x8xf32>
    %60 = arith.subf %56, %59 : vector<8x8x8xf32>
    %61 = math.exp %60 : vector<8x8x8xf32>
    %cst_14 = arith.constant dense<0.000000e+00> : vector<8x8xf32>
    %62 = vector.multi_reduction <add>, %61, %cst_14 [2] : vector<8x8x8xf32> to vector<8x8xf32>
    %63 = vector.shape_cast %62 : vector<8x8xf32> to vector<8x8x1xf32>
    %64 = tpu.reciprocal %63 {approx = true} : vector<8x8x1xf32> -> vector<8x8x1xf32>
    %65 = vector.broadcast %64 : vector<8x8x1xf32> to vector<8x8x8xf32>
    %66 = arith.mulf %61, %65 : vector<8x8x8xf32>
    "tpu.trace_start"() <{level = 10 : i32, message = "nqk,nkd->nqd"}> : () -> ()
    %cst_15 = arith.constant dense<0.000000e+00> : vector<8x8x8xf32>
    %67 = tpu.matmul %66, %54, %cst_15 {dimension_numbers = #tpu.dot_dimension_numbers<[2], [1], [1], [2], [0, 0, 0, 1, 1, 2], [0], [0]>} : vector<8x8x8xf32>, vector<8x8x8xf32>, vector<8x8x8xf32> -> vector<8x8x8xf32>
    "tpu.trace_stop"() : () -> ()
    %c0_16 = arith.constant 0 : index
    %c0_17 = arith.constant 0 : index
    %c0_18 = arith.constant 0 : index
    %c0_19 = arith.constant 0 : index
    %68 = vector.load %arg5[%c0_16, %c0_17, %c0_18, %c0_19] : memref<2x8x8x32xf32, #tpu.memory_space<vmem>>, vector<1x8x8x32xf32>
    %69 = vector.shape_cast %68 : vector<1x8x8x32xf32> to vector<8x8x32xf32>
    "tpu.trace_start"() <{level = 10 : i32, message = "nqd,ndf->nqf"}> : () -> ()
    %cst_20 = arith.constant dense<0.000000e+00> : vector<8x8x32xf32>
    %70 = tpu.matmul %67, %69, %cst_20 {dimension_numbers = #tpu.dot_dimension_numbers<[2], [1], [1], [2], [0, 0, 0, 1, 1, 2], [0], [0]>} : vector<8x8x8xf32>, vector<8x8x32xf32>, vector<8x8x32xf32> -> vector<8x8x32xf32>
    "tpu.trace_stop"() : () -> ()
    %71 = vector.shape_cast %70 : vector<8x8x32xf32> to vector<4x2x8x32xf32>
    %cst_21 = arith.constant dense<0.000000e+00> : vector<2x8x32xf32>
    %72 = vector.multi_reduction <add>, %71, %cst_21 [0] : vector<4x2x8x32xf32> to vector<2x8x32xf32>
    %73 = vector.shape_cast %72 : vector<2x8x32xf32> to vector<16x32xf32>
    %c0_22 = arith.constant 0 : index
    %c0_23 = arith.constant 0 : index
    %c0_24 = arith.constant 0 : index
    %74 = vector.load %arg6[%c0_22, %c0_23, %c0_24] : memref<2x1x32xf32, #tpu.memory_space<vmem>>, vector<1x1x32xf32>
    %75 = vector.shape_cast %74 : vector<1x1x32xf32> to vector<1x32xf32>
    %76 = vector.broadcast %75 : vector<1x32xf32> to vector<16x32xf32>
    %77 = arith.addf %73, %76 : vector<16x32xf32>
    %78 = arith.addf %77, %0 : vector<16x32xf32>
    %c0_25 = arith.constant 0 : index
    %c0_26 = arith.constant 0 : index
    %c0_27 = arith.constant 0 : index
    %79 = vector.load %arg7[%c0_25, %c0_26, %c0_27] : memref<2x1x32xf32, #tpu.memory_space<vmem>>, vector<1x1x32xf32>
    %80 = vector.shape_cast %79 : vector<1x1x32xf32> to vector<1x32xf32>
    %c0_28 = arith.constant 0 : index
    %c0_29 = arith.constant 0 : index
    %c0_30 = arith.constant 0 : index
    %81 = vector.load %arg8[%c0_28, %c0_29, %c0_30] : memref<2x1x32xf32, #tpu.memory_space<vmem>>, vector<1x1x32xf32>
    %82 = vector.shape_cast %81 : vector<1x1x32xf32> to vector<1x32xf32>
    %cst_31 = arith.constant dense<0.000000e+00> : vector<16xf32>
    %83 = vector.multi_reduction <add>, %78, %cst_31 [1] : vector<16x32xf32> to vector<16xf32>
    %84 = vector.shape_cast %83 : vector<16xf32> to vector<16x1xf32>
    %cst_32 = arith.constant 3.200000e+01 : f32
    %85 = vector.broadcast %cst_32 : f32 to vector<16x1xf32>
    %86 = arith.divf %84, %85 : vector<16x1xf32>
    %87 = vector.broadcast %86 : vector<16x1xf32> to vector<16x32xf32>
    %88 = arith.subf %78, %87 : vector<16x32xf32>
    %89 = arith.mulf %88, %88 : vector<16x32xf32>
    %cst_33 = arith.constant dense<0.000000e+00> : vector<16xf32>
    %90 = vector.multi_reduction <add>, %89, %cst_33 [1] : vector<16x32xf32> to vector<16xf32>
    %91 = vector.shape_cast %90 : vector<16xf32> to vector<16x1xf32>
    %cst_34 = arith.constant 3.200000e+01 : f32
    %92 = vector.broadcast %cst_34 : f32 to vector<16x1xf32>
    %93 = arith.divf %91, %92 : vector<16x1xf32>
    %94 = vector.broadcast %86 : vector<16x1xf32> to vector<16x32xf32>
    %95 = arith.subf %78, %94 : vector<16x32xf32>
    %cst_35 = arith.constant 9.99999974E-6 : f32
    %96 = vector.broadcast %cst_35 : f32 to vector<16x1xf32>
    %97 = arith.addf %93, %96 : vector<16x1xf32>
    %98 = math.rsqrt %97 : vector<16x1xf32>
    %99 = vector.broadcast %98 : vector<16x1xf32> to vector<16x32xf32>
    %100 = arith.mulf %95, %99 : vector<16x32xf32>
    %101 = vector.broadcast %80 : vector<1x32xf32> to vector<16x32xf32>
    %102 = arith.mulf %100, %101 : vector<16x32xf32>
    %103 = vector.broadcast %82 : vector<1x32xf32> to vector<16x32xf32>
    %104 = arith.addf %102, %103 : vector<16x32xf32>
    %105 = vector.broadcast %1 : vector<16x1xf32> to vector<16x32xf32>
    %106 = arith.mulf %104, %105 : vector<16x32xf32>
    %c0_36 = arith.constant 0 : index
    %c0_37 = arith.constant 0 : index
    %c0_38 = arith.constant 0 : index
    %107 = vector.load %arg9[%c0_36, %c0_37, %c0_38] : memref<2x32x64xf32, #tpu.memory_space<vmem>>, vector<1x32x64xf32>
    %108 = vector.shape_cast %107 : vector<1x32x64xf32> to vector<32x64xf32>
    %cst_39 = arith.constant dense<0.000000e+00> : vector<16x64xf32>
    %109 = tpu.matmul %106, %108, %cst_39 {dimension_numbers = #tpu.dot_dimension_numbers<[1], [0], [0], [1], [0, 0, 1, 1], [], []>} : vector<16x32xf32>, vector<32x64xf32>, vector<16x64xf32> -> vector<16x64xf32>
    %c0_40 = arith.constant 0 : index
    %c0_41 = arith.constant 0 : index
    %c0_42 = arith.constant 0 : index
    %110 = vector.load %arg10[%c0_40, %c0_41, %c0_42] : memref<2x1x64xf32, #tpu.memory_space<vmem>>, vector<1x1x64xf32>
    %111 = vector.shape_cast %110 : vector<1x1x64xf32> to vector<1x64xf32>
    %112 = vector.broadcast %111 : vector<1x64xf32> to vector<16x64xf32>
    %113 = arith.addf %109, %112 : vector<16x64xf32>
    %cst_43 = arith.constant 0.000000e+00 : f32
    %114 = vector.broadcast %cst_43 : f32 to vector<16x64xf32>
    %115 = arith.maximumf %113, %114 : vector<16x64xf32>
    %c0_44 = arith.constant 0 : index
    %c0_45 = arith.constant 0 : index
    %c0_46 = arith.constant 0 : index
    %116 = vector.load %arg11[%c0_44, %c0_45, %c0_46] : memref<2x64x32xf32, #tpu.memory_space<vmem>>, vector<1x64x32xf32>
    %117 = vector.shape_cast %116 : vector<1x64x32xf32> to vector<64x32xf32>
    %cst_47 = arith.constant dense<0.000000e+00> : vector<16x32xf32>
    %118 = tpu.matmul %115, %117, %cst_47 {dimension_numbers = #tpu.dot_dimension_numbers<[1], [0], [0], [1], [0, 0, 1, 1], [], []>} : vector<16x64xf32>, vector<64x32xf32>, vector<16x32xf32> -> vector<16x32xf32>
    %c0_48 = arith.constant 0 : index
    %c0_49 = arith.constant 0 : index
    %c0_50 = arith.constant 0 : index
    %119 = vector.load %arg12[%c0_48, %c0_49, %c0_50] : memref<2x1x32xf32, #tpu.memory_space<vmem>>, vector<1x1x32xf32>
    %120 = vector.shape_cast %119 : vector<1x1x32xf32> to vector<1x32xf32>
    %121 = vector.broadcast %120 : vector<1x32xf32> to vector<16x32xf32>
    %122 = arith.addf %118, %121 : vector<16x32xf32>
    %123 = arith.addf %122, %106 : vector<16x32xf32>
    %c0_51 = arith.constant 0 : index
    %c0_52 = arith.constant 0 : index
    %c0_53 = arith.constant 0 : index
    %124 = vector.load %arg13[%c0_51, %c0_52, %c0_53] : memref<2x1x32xf32, #tpu.memory_space<vmem>>, vector<1x1x32xf32>
    %125 = vector.shape_cast %124 : vector<1x1x32xf32> to vector<1x32xf32>
    %c0_54 = arith.constant 0 : index
    %c0_55 = arith.constant 0 : index
    %c0_56 = arith.constant 0 : index
    %126 = vector.load %arg14[%c0_54, %c0_55, %c0_56] : memref<2x1x32xf32, #tpu.memory_space<vmem>>, vector<1x1x32xf32>
    %127 = vector.shape_cast %126 : vector<1x1x32xf32> to vector<1x32xf32>
    %cst_57 = arith.constant dense<0.000000e+00> : vector<16xf32>
    %128 = vector.multi_reduction <add>, %123, %cst_57 [1] : vector<16x32xf32> to vector<16xf32>
    %129 = vector.shape_cast %128 : vector<16xf32> to vector<16x1xf32>
    %cst_58 = arith.constant 3.200000e+01 : f32
    %130 = vector.broadcast %cst_58 : f32 to vector<16x1xf32>
    %131 = arith.divf %129, %130 : vector<16x1xf32>
    %132 = vector.broadcast %131 : vector<16x1xf32> to vector<16x32xf32>
    %133 = arith.subf %123, %132 : vector<16x32xf32>
    %134 = arith.mulf %133, %133 : vector<16x32xf32>
    %cst_59 = arith.constant dense<0.000000e+00> : vector<16xf32>
    %135 = vector.multi_reduction <add>, %134, %cst_59 [1] : vector<16x32xf32> to vector<16xf32>
    %136 = vector.shape_cast %135 : vector<16xf32> to vector<16x1xf32>
    %cst_60 = arith.constant 3.200000e+01 : f32
    %137 = vector.broadcast %cst_60 : f32 to vector<16x1xf32>
    %138 = arith.divf %136, %137 : vector<16x1xf32>
    %139 = vector.broadcast %131 : vector<16x1xf32> to vector<16x32xf32>
    %140 = arith.subf %123, %139 : vector<16x32xf32>
    %cst_61 = arith.constant 9.99999974E-6 : f32
    %141 = vector.broadcast %cst_61 : f32 to vector<16x1xf32>
    %142 = arith.addf %138, %141 : vector<16x1xf32>
    %143 = math.rsqrt %142 : vector<16x1xf32>
    %144 = vector.broadcast %143 : vector<16x1xf32> to vector<16x32xf32>
    %145 = arith.mulf %140, %144 : vector<16x32xf32>
    %146 = vector.broadcast %125 : vector<1x32xf32> to vector<16x32xf32>
    %147 = arith.mulf %145, %146 : vector<16x32xf32>
    %148 = vector.broadcast %127 : vector<1x32xf32> to vector<16x32xf32>
    %149 = arith.addf %147, %148 : vector<16x32xf32>
    %150 = vector.broadcast %1 : vector<16x1xf32> to vector<16x32xf32>
    %151 = arith.mulf %149, %150 : vector<16x32xf32>
    %c1 = arith.constant 1 : index
    %c0_62 = arith.constant 0 : index
    %c0_63 = arith.constant 0 : index
    %152 = vector.load %arg3[%c1, %c0_62, %c0_63] : memref<2x32x96xf32, #tpu.memory_space<vmem>>, vector<1x32x96xf32>
    %153 = vector.shape_cast %152 : vector<1x32x96xf32> to vector<32x96xf32>
    %cst_64 = arith.constant dense<0.000000e+00> : vector<16x96xf32>
    %154 = tpu.matmul %151, %153, %cst_64 {dimension_numbers = #tpu.dot_dimension_numbers<[1], [0], [0], [1], [0, 0, 1, 1], [], []>} : vector<16x32xf32>, vector<32x96xf32>, vector<16x96xf32> -> vector<16x96xf32>
    %c1_65 = arith.constant 1 : index
    %c0_66 = arith.constant 0 : index
    %c0_67 = arith.constant 0 : index
    %155 = vector.load %arg4[%c1_65, %c0_66, %c0_67] : memref<2x1x96xf32, #tpu.memory_space<vmem>>, vector<1x1x96xf32>
    %156 = vector.shape_cast %155 : vector<1x1x96xf32> to vector<1x96xf32>
    %157 = vector.broadcast %156 : vector<1x96xf32> to vector<16x96xf32>
    %158 = arith.addf %154, %157 : vector<16x96xf32>
    %159 = vector.extract_strided_slice %158 {offsets = [0, 0], sizes = [16, 32], strides = [1, 1]} : vector<16x96xf32> to vector<16x32xf32>
    %160 = vector.extract_strided_slice %159 {offsets = [0, 0], sizes = [16, 8], strides = [1, 1]} : vector<16x32xf32> to vector<16x8xf32>
    %161 = vector.shape_cast %160 : vector<16x8xf32> to vector<2x8x8xf32>
    %162 = vector.extract_strided_slice %159 {offsets = [0, 8], sizes = [16, 8], strides = [1, 1]} : vector<16x32xf32> to vector<16x8xf32>
    %163 = vector.shape_cast %162 : vector<16x8xf32> to vector<2x8x8xf32>
    %164 = vector.extract_strided_slice %159 {offsets = [0, 16], sizes = [16, 8], strides = [1, 1]} : vector<16x32xf32> to vector<16x8xf32>
    %165 = vector.shape_cast %164 : vector<16x8xf32> to vector<2x8x8xf32>
    %166 = vector.extract_strided_slice %159 {offsets = [0, 24], sizes = [16, 8], strides = [1, 1]} : vector<16x32xf32> to vector<16x8xf32>
    %167 = vector.shape_cast %166 : vector<16x8xf32> to vector<2x8x8xf32>
    %168 = vector.shape_cast %161 : vector<2x8x8xf32> to vector<1x2x8x8xf32>
    %169 = vector.shape_cast %163 : vector<2x8x8xf32> to vector<1x2x8x8xf32>
    %170 = vector.shape_cast %165 : vector<2x8x8xf32> to vector<1x2x8x8xf32>
    %171 = vector.shape_cast %167 : vector<2x8x8xf32> to vector<1x2x8x8xf32>
    %172 = tpu.concatenate %168, %169, %170, %171 in 0 : vector<1x2x8x8xf32>, vector<1x2x8x8xf32>, vector<1x2x8x8xf32>, vector<1x2x8x8xf32> -> vector<4x2x8x8xf32>
    %173 = vector.shape_cast %172 : vector<4x2x8x8xf32> to vector<8x8x8xf32>
    %174 = vector.extract_strided_slice %158 {offsets = [0, 32], sizes = [16, 32], strides = [1, 1]} : vector<16x96xf32> to vector<16x32xf32>
    %175 = vector.extract_strided_slice %174 {offsets = [0, 0], sizes = [16, 8], strides = [1, 1]} : vector<16x32xf32> to vector<16x8xf32>
    %176 = vector.shape_cast %175 : vector<16x8xf32> to vector<2x8x8xf32>
    %177 = vector.extract_strided_slice %174 {offsets = [0, 8], sizes = [16, 8], strides = [1, 1]} : vector<16x32xf32> to vector<16x8xf32>
    %178 = vector.shape_cast %177 : vector<16x8xf32> to vector<2x8x8xf32>
    %179 = vector.extract_strided_slice %174 {offsets = [0, 16], sizes = [16, 8], strides = [1, 1]} : vector<16x32xf32> to vector<16x8xf32>
    %180 = vector.shape_cast %179 : vector<16x8xf32> to vector<2x8x8xf32>
    %181 = vector.extract_strided_slice %174 {offsets = [0, 24], sizes = [16, 8], strides = [1, 1]} : vector<16x32xf32> to vector<16x8xf32>
    %182 = vector.shape_cast %181 : vector<16x8xf32> to vector<2x8x8xf32>
    %183 = vector.shape_cast %176 : vector<2x8x8xf32> to vector<1x2x8x8xf32>
    %184 = vector.shape_cast %178 : vector<2x8x8xf32> to vector<1x2x8x8xf32>
    %185 = vector.shape_cast %180 : vector<2x8x8xf32> to vector<1x2x8x8xf32>
    %186 = vector.shape_cast %182 : vector<2x8x8xf32> to vector<1x2x8x8xf32>
    %187 = tpu.concatenate %183, %184, %185, %186 in 0 : vector<1x2x8x8xf32>, vector<1x2x8x8xf32>, vector<1x2x8x8xf32>, vector<1x2x8x8xf32> -> vector<4x2x8x8xf32>
    %188 = vector.shape_cast %187 : vector<4x2x8x8xf32> to vector<8x8x8xf32>
    %189 = vector.extract_strided_slice %158 {offsets = [0, 64], sizes = [16, 32], strides = [1, 1]} : vector<16x96xf32> to vector<16x32xf32>
    %190 = vector.extract_strided_slice %189 {offsets = [0, 0], sizes = [16, 8], strides = [1, 1]} : vector<16x32xf32> to vector<16x8xf32>
    %191 = vector.shape_cast %190 : vector<16x8xf32> to vector<2x8x8xf32>
    %192 = vector.extract_strided_slice %189 {offsets = [0, 8], sizes = [16, 8], strides = [1, 1]} : vector<16x32xf32> to vector<16x8xf32>
    %193 = vector.shape_cast %192 : vector<16x8xf32> to vector<2x8x8xf32>
    %194 = vector.extract_strided_slice %189 {offsets = [0, 16], sizes = [16, 8], strides = [1, 1]} : vector<16x32xf32> to vector<16x8xf32>
    %195 = vector.shape_cast %194 : vector<16x8xf32> to vector<2x8x8xf32>
    %196 = vector.extract_strided_slice %189 {offsets = [0, 24], sizes = [16, 8], strides = [1, 1]} : vector<16x32xf32> to vector<16x8xf32>
    %197 = vector.shape_cast %196 : vector<16x8xf32> to vector<2x8x8xf32>
    %198 = vector.shape_cast %191 : vector<2x8x8xf32> to vector<1x2x8x8xf32>
    %199 = vector.shape_cast %193 : vector<2x8x8xf32> to vector<1x2x8x8xf32>
    %200 = vector.shape_cast %195 : vector<2x8x8xf32> to vector<1x2x8x8xf32>
    %201 = vector.shape_cast %197 : vector<2x8x8xf32> to vector<1x2x8x8xf32>
    %202 = tpu.concatenate %198, %199, %200, %201 in 0 : vector<1x2x8x8xf32>, vector<1x2x8x8xf32>, vector<1x2x8x8xf32>, vector<1x2x8x8xf32> -> vector<4x2x8x8xf32>
    %203 = vector.shape_cast %202 : vector<4x2x8x8xf32> to vector<8x8x8xf32>
    "tpu.trace_start"() <{level = 10 : i32, message = "nqd,nkd->nqk"}> : () -> ()
    %cst_68 = arith.constant dense<0.000000e+00> : vector<8x8x8xf32>
    %204 = tpu.matmul %173, %188, %cst_68 {dimension_numbers = #tpu.dot_dimension_numbers<[2], [2], [1], [1], [0, 0, 0, 1, 1, 1], [0], [0]>} : vector<8x8x8xf32>, vector<8x8x8xf32>, vector<8x8x8xf32> -> vector<8x8x8xf32>
    "tpu.trace_stop"() : () -> ()
    %205 = arith.addf %204, %2 : vector<8x8x8xf32>
    %cst_69 = arith.constant dense<0xFF800000> : vector<8x8xf32>
    %206 = vector.multi_reduction <maximumf>, %205, %cst_69 [2] : vector<8x8x8xf32> to vector<8x8xf32>
    %207 = vector.shape_cast %206 : vector<8x8xf32> to vector<8x8x1xf32>
    %208 = vector.broadcast %207 : vector<8x8x1xf32> to vector<8x8x8xf32>
    %209 = arith.subf %205, %208 : vector<8x8x8xf32>
    %210 = math.exp %209 : vector<8x8x8xf32>
    %cst_70 = arith.constant dense<0.000000e+00> : vector<8x8xf32>
    %211 = vector.multi_reduction <add>, %210, %cst_70 [2] : vector<8x8x8xf32> to vector<8x8xf32>
    %212 = vector.shape_cast %211 : vector<8x8xf32> to vector<8x8x1xf32>
    %213 = tpu.reciprocal %212 {approx = true} : vector<8x8x1xf32> -> vector<8x8x1xf32>
    %214 = vector.broadcast %213 : vector<8x8x1xf32> to vector<8x8x8xf32>
    %215 = arith.mulf %210, %214 : vector<8x8x8xf32>
    "tpu.trace_start"() <{level = 10 : i32, message = "nqk,nkd->nqd"}> : () -> ()
    %cst_71 = arith.constant dense<0.000000e+00> : vector<8x8x8xf32>
    %216 = tpu.matmul %215, %203, %cst_71 {dimension_numbers = #tpu.dot_dimension_numbers<[2], [1], [1], [2], [0, 0, 0, 1, 1, 2], [0], [0]>} : vector<8x8x8xf32>, vector<8x8x8xf32>, vector<8x8x8xf32> -> vector<8x8x8xf32>
    "tpu.trace_stop"() : () -> ()
    %c1_72 = arith.constant 1 : index
    %c0_73 = arith.constant 0 : index
    %c0_74 = arith.constant 0 : index
    %c0_75 = arith.constant 0 : index
    %217 = vector.load %arg5[%c1_72, %c0_73, %c0_74, %c0_75] : memref<2x8x8x32xf32, #tpu.memory_space<vmem>>, vector<1x8x8x32xf32>
    %218 = vector.shape_cast %217 : vector<1x8x8x32xf32> to vector<8x8x32xf32>
    "tpu.trace_start"() <{level = 10 : i32, message = "nqd,ndf->nqf"}> : () -> ()
    %cst_76 = arith.constant dense<0.000000e+00> : vector<8x8x32xf32>
    %219 = tpu.matmul %216, %218, %cst_76 {dimension_numbers = #tpu.dot_dimension_numbers<[2], [1], [1], [2], [0, 0, 0, 1, 1, 2], [0], [0]>} : vector<8x8x8xf32>, vector<8x8x32xf32>, vector<8x8x32xf32> -> vector<8x8x32xf32>
    "tpu.trace_stop"() : () -> ()
    %220 = vector.shape_cast %219 : vector<8x8x32xf32> to vector<4x2x8x32xf32>
    %cst_77 = arith.constant dense<0.000000e+00> : vector<2x8x32xf32>
    %221 = vector.multi_reduction <add>, %220, %cst_77 [0] : vector<4x2x8x32xf32> to vector<2x8x32xf32>
    %222 = vector.shape_cast %221 : vector<2x8x32xf32> to vector<16x32xf32>
    %c1_78 = arith.constant 1 : index
    %c0_79 = arith.constant 0 : index
    %c0_80 = arith.constant 0 : index
    %223 = vector.load %arg6[%c1_78, %c0_79, %c0_80] : memref<2x1x32xf32, #tpu.memory_space<vmem>>, vector<1x1x32xf32>
    %224 = vector.shape_cast %223 : vector<1x1x32xf32> to vector<1x32xf32>
    %225 = vector.broadcast %224 : vector<1x32xf32> to vector<16x32xf32>
    %226 = arith.addf %222, %225 : vector<16x32xf32>
    %227 = arith.addf %226, %151 : vector<16x32xf32>
    %c1_81 = arith.constant 1 : index
    %c0_82 = arith.constant 0 : index
    %c0_83 = arith.constant 0 : index
    %228 = vector.load %arg7[%c1_81, %c0_82, %c0_83] : memref<2x1x32xf32, #tpu.memory_space<vmem>>, vector<1x1x32xf32>
    %229 = vector.shape_cast %228 : vector<1x1x32xf32> to vector<1x32xf32>
    %c1_84 = arith.constant 1 : index
    %c0_85 = arith.constant 0 : index
    %c0_86 = arith.constant 0 : index
    %230 = vector.load %arg8[%c1_84, %c0_85, %c0_86] : memref<2x1x32xf32, #tpu.memory_space<vmem>>, vector<1x1x32xf32>
    %231 = vector.shape_cast %230 : vector<1x1x32xf32> to vector<1x32xf32>
    %cst_87 = arith.constant dense<0.000000e+00> : vector<16xf32>
    %232 = vector.multi_reduction <add>, %227, %cst_87 [1] : vector<16x32xf32> to vector<16xf32>
    %233 = vector.shape_cast %232 : vector<16xf32> to vector<16x1xf32>
    %cst_88 = arith.constant 3.200000e+01 : f32
    %234 = vector.broadcast %cst_88 : f32 to vector<16x1xf32>
    %235 = arith.divf %233, %234 : vector<16x1xf32>
    %236 = vector.broadcast %235 : vector<16x1xf32> to vector<16x32xf32>
    %237 = arith.subf %227, %236 : vector<16x32xf32>
    %238 = arith.mulf %237, %237 : vector<16x32xf32>
    %cst_89 = arith.constant dense<0.000000e+00> : vector<16xf32>
    %239 = vector.multi_reduction <add>, %238, %cst_89 [1] : vector<16x32xf32> to vector<16xf32>
    %240 = vector.shape_cast %239 : vector<16xf32> to vector<16x1xf32>
    %cst_90 = arith.constant 3.200000e+01 : f32
    %241 = vector.broadcast %cst_90 : f32 to vector<16x1xf32>
    %242 = arith.divf %240, %241 : vector<16x1xf32>
    %243 = vector.broadcast %235 : vector<16x1xf32> to vector<16x32xf32>
    %244 = arith.subf %227, %243 : vector<16x32xf32>
    %cst_91 = arith.constant 9.99999974E-6 : f32
    %245 = vector.broadcast %cst_91 : f32 to vector<16x1xf32>
    %246 = arith.addf %242, %245 : vector<16x1xf32>
    %247 = math.rsqrt %246 : vector<16x1xf32>
    %248 = vector.broadcast %247 : vector<16x1xf32> to vector<16x32xf32>
    %249 = arith.mulf %244, %248 : vector<16x32xf32>
    %250 = vector.broadcast %229 : vector<1x32xf32> to vector<16x32xf32>
    %251 = arith.mulf %249, %250 : vector<16x32xf32>
    %252 = vector.broadcast %231 : vector<1x32xf32> to vector<16x32xf32>
    %253 = arith.addf %251, %252 : vector<16x32xf32>
    %254 = vector.broadcast %1 : vector<16x1xf32> to vector<16x32xf32>
    %255 = arith.mulf %253, %254 : vector<16x32xf32>
    %c1_92 = arith.constant 1 : index
    %c0_93 = arith.constant 0 : index
    %c0_94 = arith.constant 0 : index
    %256 = vector.load %arg9[%c1_92, %c0_93, %c0_94] : memref<2x32x64xf32, #tpu.memory_space<vmem>>, vector<1x32x64xf32>
    %257 = vector.shape_cast %256 : vector<1x32x64xf32> to vector<32x64xf32>
    %cst_95 = arith.constant dense<0.000000e+00> : vector<16x64xf32>
    %258 = tpu.matmul %255, %257, %cst_95 {dimension_numbers = #tpu.dot_dimension_numbers<[1], [0], [0], [1], [0, 0, 1, 1], [], []>} : vector<16x32xf32>, vector<32x64xf32>, vector<16x64xf32> -> vector<16x64xf32>
    %c1_96 = arith.constant 1 : index
    %c0_97 = arith.constant 0 : index
    %c0_98 = arith.constant 0 : index
    %259 = vector.load %arg10[%c1_96, %c0_97, %c0_98] : memref<2x1x64xf32, #tpu.memory_space<vmem>>, vector<1x1x64xf32>
    %260 = vector.shape_cast %259 : vector<1x1x64xf32> to vector<1x64xf32>
    %261 = vector.broadcast %260 : vector<1x64xf32> to vector<16x64xf32>
    %262 = arith.addf %258, %261 : vector<16x64xf32>
    %cst_99 = arith.constant 0.000000e+00 : f32
    %263 = vector.broadcast %cst_99 : f32 to vector<16x64xf32>
    %264 = arith.maximumf %262, %263 : vector<16x64xf32>
    %c1_100 = arith.constant 1 : index
    %c0_101 = arith.constant 0 : index
    %c0_102 = arith.constant 0 : index
    %265 = vector.load %arg11[%c1_100, %c0_101, %c0_102] : memref<2x64x32xf32, #tpu.memory_space<vmem>>, vector<1x64x32xf32>
    %266 = vector.shape_cast %265 : vector<1x64x32xf32> to vector<64x32xf32>
    %cst_103 = arith.constant dense<0.000000e+00> : vector<16x32xf32>
    %267 = tpu.matmul %264, %266, %cst_103 {dimension_numbers = #tpu.dot_dimension_numbers<[1], [0], [0], [1], [0, 0, 1, 1], [], []>} : vector<16x64xf32>, vector<64x32xf32>, vector<16x32xf32> -> vector<16x32xf32>
    %c1_104 = arith.constant 1 : index
    %c0_105 = arith.constant 0 : index
    %c0_106 = arith.constant 0 : index
    %268 = vector.load %arg12[%c1_104, %c0_105, %c0_106] : memref<2x1x32xf32, #tpu.memory_space<vmem>>, vector<1x1x32xf32>
    %269 = vector.shape_cast %268 : vector<1x1x32xf32> to vector<1x32xf32>
    %270 = vector.broadcast %269 : vector<1x32xf32> to vector<16x32xf32>
    %271 = arith.addf %267, %270 : vector<16x32xf32>
    %272 = arith.addf %271, %255 : vector<16x32xf32>
    %c1_107 = arith.constant 1 : index
    %c0_108 = arith.constant 0 : index
    %c0_109 = arith.constant 0 : index
    %273 = vector.load %arg13[%c1_107, %c0_108, %c0_109] : memref<2x1x32xf32, #tpu.memory_space<vmem>>, vector<1x1x32xf32>
    %274 = vector.shape_cast %273 : vector<1x1x32xf32> to vector<1x32xf32>
    %c1_110 = arith.constant 1 : index
    %c0_111 = arith.constant 0 : index
    %c0_112 = arith.constant 0 : index
    %275 = vector.load %arg14[%c1_110, %c0_111, %c0_112] : memref<2x1x32xf32, #tpu.memory_space<vmem>>, vector<1x1x32xf32>
    %276 = vector.shape_cast %275 : vector<1x1x32xf32> to vector<1x32xf32>
    %cst_113 = arith.constant dense<0.000000e+00> : vector<16xf32>
    %277 = vector.multi_reduction <add>, %272, %cst_113 [1] : vector<16x32xf32> to vector<16xf32>
    %278 = vector.shape_cast %277 : vector<16xf32> to vector<16x1xf32>
    %cst_114 = arith.constant 3.200000e+01 : f32
    %279 = vector.broadcast %cst_114 : f32 to vector<16x1xf32>
    %280 = arith.divf %278, %279 : vector<16x1xf32>
    %281 = vector.broadcast %280 : vector<16x1xf32> to vector<16x32xf32>
    %282 = arith.subf %272, %281 : vector<16x32xf32>
    %283 = arith.mulf %282, %282 : vector<16x32xf32>
    %cst_115 = arith.constant dense<0.000000e+00> : vector<16xf32>
    %284 = vector.multi_reduction <add>, %283, %cst_115 [1] : vector<16x32xf32> to vector<16xf32>
    %285 = vector.shape_cast %284 : vector<16xf32> to vector<16x1xf32>
    %cst_116 = arith.constant 3.200000e+01 : f32
    %286 = vector.broadcast %cst_116 : f32 to vector<16x1xf32>
    %287 = arith.divf %285, %286 : vector<16x1xf32>
    %288 = vector.broadcast %280 : vector<16x1xf32> to vector<16x32xf32>
    %289 = arith.subf %272, %288 : vector<16x32xf32>
    %cst_117 = arith.constant 9.99999974E-6 : f32
    %290 = vector.broadcast %cst_117 : f32 to vector<16x1xf32>
    %291 = arith.addf %287, %290 : vector<16x1xf32>
    %292 = math.rsqrt %291 : vector<16x1xf32>
    %293 = vector.broadcast %292 : vector<16x1xf32> to vector<16x32xf32>
    %294 = arith.mulf %289, %293 : vector<16x32xf32>
    %295 = vector.broadcast %274 : vector<1x32xf32> to vector<16x32xf32>
    %296 = arith.mulf %294, %295 : vector<16x32xf32>
    %297 = vector.broadcast %276 : vector<1x32xf32> to vector<16x32xf32>
    %298 = arith.addf %296, %297 : vector<16x32xf32>
    %299 = vector.broadcast %1 : vector<16x1xf32> to vector<16x32xf32>
    %300 = arith.mulf %298, %299 : vector<16x32xf32>
    %cst_118 = arith.constant dense<0.000000e+00> : vector<32xf32>
    %301 = vector.multi_reduction <add>, %300, %cst_118 [0] : vector<16x32xf32> to vector<32xf32>
    %302 = vector.shape_cast %301 : vector<32xf32> to vector<1x32xf32>
    %cst_119 = arith.constant 1.600000e+01 : f32
    %303 = vector.broadcast %cst_119 : f32 to vector<1x32xf32>
    %304 = arith.divf %302, %303 : vector<1x32xf32>
    %305 = vector.broadcast %304 : vector<1x32xf32> to vector<16x32xf32>
    %306 = arith.subf %300, %305 : vector<16x32xf32>
    %307 = arith.mulf %306, %306 : vector<16x32xf32>
    %cst_120 = arith.constant dense<0.000000e+00> : vector<32xf32>
    %308 = vector.multi_reduction <add>, %307, %cst_120 [0] : vector<16x32xf32> to vector<32xf32>
    %309 = vector.shape_cast %308 : vector<32xf32> to vector<1x32xf32>
    %cst_121 = arith.constant 1.600000e+01 : f32
    %310 = vector.broadcast %cst_121 : f32 to vector<1x32xf32>
    %311 = arith.divf %309, %310 : vector<1x32xf32>
    %312 = vector.broadcast %304 : vector<1x32xf32> to vector<16x32xf32>
    %313 = arith.subf %300, %312 : vector<16x32xf32>
    %cst_122 = arith.constant 9.99999974E-6 : f32
    %314 = vector.broadcast %cst_122 : f32 to vector<1x32xf32>
    %315 = arith.addf %311, %314 : vector<1x32xf32>
    %316 = math.rsqrt %315 : vector<1x32xf32>
    %317 = vector.broadcast %316 : vector<1x32xf32> to vector<16x32xf32>
    %318 = arith.mulf %313, %317 : vector<16x32xf32>
    %c0_123 = arith.constant 0 : index
    %c0_124 = arith.constant 0 : index
    %319 = vector.load %arg15[%c0_123, %c0_124] : memref<1x32xf32, #tpu.memory_space<vmem>>, vector<1x32xf32>
    %320 = vector.broadcast %319 : vector<1x32xf32> to vector<16x32xf32>
    %321 = arith.mulf %318, %320 : vector<16x32xf32>
    %c0_125 = arith.constant 0 : index
    %c0_126 = arith.constant 0 : index
    %322 = vector.load %arg16[%c0_125, %c0_126] : memref<1x32xf32, #tpu.memory_space<vmem>>, vector<1x32xf32>
    %323 = vector.broadcast %322 : vector<1x32xf32> to vector<16x32xf32>
    %324 = arith.addf %321, %323 : vector<16x32xf32>
    %c0_127 = arith.constant 0 : index
    %c0_128 = arith.constant 0 : index
    %325 = vector.load %arg17[%c0_127, %c0_128] : memref<16x32xf32, #tpu.memory_space<vmem>>, vector<16x32xf32>
    tpu.vector_store %arg17[%c0_127, %c0_128], %324 {strides = array<i32>} : memref<16x32xf32, #tpu.memory_space<vmem>>, vector<16x32xf32>,
    return
  }
}

</mosaic_0001>

<llo_original>
// kernel: trans_encoder_forward.1
$region0: #{trans_encoder_forward.1}
  #allocation0 [shape = 'u32[]', space=smem, size = 0x4, offset = 0x4, fixed_abs, tag = 'smem constant byte address 0x4 - core index']
  #allocation1 [shape = 'u32[144,128]{1,0:T(1,128)}', space=vmem, size = 0x12000, scoped, tag = 'internal scratch']
  %s0 = inlined_call_operand.hbm [shape: f32[16,32], index: 0, kind: input, shape index: {}]
  %s1 = inlined_call_operand.vmem [shape: f32[16,1], index: 1, kind: input, shape index: {}]
  %s2 = inlined_call_operand.vmem [shape: f32[8,8,8], index: 2, kind: input, shape index: {}]
  %s3 = inlined_call_operand.vmem [shape: f32[2,32,96], index: 3, kind: input, shape index: {}]
  %s4 = inlined_call_operand.vmem [shape: f32[2,1,96], index: 4, kind: input, shape index: {}]
  %s5 = inlined_call_operand.vmem [shape: f32[2,8,8,32], index: 5, kind: input, shape index: {}]
  %s6 = inlined_call_operand.vmem [shape: f32[2,1,32], index: 6, kind: input, shape index: {}]
  %s7 = inlined_call_operand.vmem [shape: f32[2,1,32], index: 7, kind: input, shape index: {}]
  %s8 = inlined_call_operand.vmem [shape: f32[2,1,32], index: 8, kind: input, shape index: {}]
  %s9 = inlined_call_operand.vmem [shape: f32[2,32,64], index: 9, kind: input, shape index: {}]
  %s10 = inlined_call_operand.vmem [shape: f32[2,1,64], index: 10, kind: input, shape index: {}]
  %s11 = inlined_call_operand.vmem [shape: f32[2,64,32], index: 11, kind: input, shape index: {}]
  %s12 = inlined_call_operand.vmem [shape: f32[2,1,32], index: 12, kind: input, shape index: {}]
  %s13 = inlined_call_operand.vmem [shape: f32[2,1,32], index: 13, kind: input, shape index: {}]
  %s14 = inlined_call_operand.vmem [shape: f32[2,1,32], index: 14, kind: input, shape index: {}]
  %s15 = inlined_call_operand.vmem [shape: f32[1,32], index: 15, kind: input, shape index: {}]
  %s16 = inlined_call_operand.vmem [shape: f32[1,32], index: 16, kind: input, shape index: {}]
  %s17 = inlined_call_operand.hbm [shape: f32[16,32], index: 17, kind: output, shape index: {}]
  %s18 = sld [smem:[#allocation0]]
  $region82: #{trans_encoder_forward.1} parent=0
    _
  %s20 = ssub.s32 1, %s18
  %s21 = scalar_select 0, %s20, %s18
  $region1: #{trans_encoder_forward.1} parent=0
    #allocation2 [shape = 'u8[8192]{0}', space=vmem, size = 0x2000, scoped, tag = 'input window, operand 0, single buffered']
    #allocation3 [shape = 's32[1]{0}', space=sflag, size = 0x4, scoped, tag = 'scoped memory for trans_encoder_forward.1']
    #allocation4 [shape = 's32[1]{0}', space=sflag, size = 0x4, scoped, tag = 'scoped memory for trans_encoder_forward.1']
    #allocation5 [shape = 'u8[8192]{0}', space=vmem, size = 0x2000, scoped, tag = 'output window, operand 0, single buffered']
    %22 = vsyncpa [#allocation3], 0
    %23 = vsyncpa [#allocation4], 0
    // Predicated region
    $region2: #{trans_encoder_forward.1} parent=1 // pred_check
      _
    $region3: #{trans_encoder_forward.1} parent=1 // pred_check_branch
      %25 = sbr.rel (0) target = $region5
    $region4: #{trans_encoder_forward.1} parent=1 // pred_region
      %s27 = ssub.s32 256, 256
      %28 = vsyncadd [#allocation3], %s27
      %s29 = sshll.u32 [#allocation2], 4
      %s30 = int_to_ptr.vmem [resolvable:$true] %s29
      %35 = dma.hbm_to_vmem [thread:$0]  %s0, 256, %s30, [#allocation3], 128, 128, 8
    $region5: #{trans_encoder_forward.1} parent=1 // pred_fallthru
      _
    // Predicated region
    $region6: #{trans_encoder_forward.1} parent=1 // pred_check
      _
    $region7: #{trans_encoder_forward.1} parent=1 // pred_check_branch
      %37 = sbr.rel (0) target = $region9
    $region8: #{trans_encoder_forward.1} parent=1 // pred_region
      _
    $region9: #{trans_encoder_forward.1} parent=1 // pred_fallthru
      _
    // Predicated region
    $region10: #{trans_encoder_forward.1} parent=1 // pred_check
      _
    $region11: #{trans_encoder_forward.1} parent=1 // pred_check_branch
      %39 = sbr.rel (0) target = $region13
    $region12: #{trans_encoder_forward.1} parent=1 // pred_region
      _
    $region13: #{trans_encoder_forward.1} parent=1 // pred_fallthru
      _
    // Predicated region
    $region14: #{trans_encoder_forward.1} parent=1 // pred_check
      _
    $region15: #{trans_encoder_forward.1} parent=1 // pred_check_branch
      %41 = sbr.rel (0) target = $region17
    $region16: #{trans_encoder_forward.1} parent=1 // pred_region
      _
    $region17: #{trans_encoder_forward.1} parent=1 // pred_fallthru
      _
    // Predicated region
    $region18: #{trans_encoder_forward.1} parent=1 // pred_check
      _
    $region19: #{trans_encoder_forward.1} parent=1 // pred_check_branch
      %43 = sbr.rel (0) target = $region21
    $region20: #{trans_encoder_forward.1} parent=1 // pred_region
      _
    $region21: #{trans_encoder_forward.1} parent=1 // pred_fallthru
      _
    // Predicated region
    $region22: #{trans_encoder_forward.1} parent=1 // pred_check
      _
    $region23: #{trans_encoder_forward.1} parent=1 // pred_check_branch
      %45 = sbr.rel (0) target = $region25
    $region24: #{trans_encoder_forward.1} parent=1 // pred_region
      _
    $region25: #{trans_encoder_forward.1} parent=1 // pred_fallthru
      _
    // Predicated region
    $region26: #{trans_encoder_forward.1} parent=1 // pred_check
      _
    $region27: #{trans_encoder_forward.1} parent=1 // pred_check_branch
      %47 = sbr.rel (0) target = $region29
    $region28: #{trans_encoder_forward.1} parent=1 // pred_region
      _
    $region29: #{trans_encoder_forward.1} parent=1 // pred_fallthru
      _
    // Predicated region
    $region30: #{trans_encoder_forward.1} parent=1 // pred_check
      _
    $region31: #{trans_encoder_forward.1} parent=1 // pred_check_branch
      %49 = sbr.rel (0) target = $region33
    $region32: #{trans_encoder_forward.1} parent=1 // pred_region
      _
    $region33: #{trans_encoder_forward.1} parent=1 // pred_fallthru
      _
    // Predicated region
    $region34: #{trans_encoder_forward.1} parent=1 // pred_check
      _
    $region35: #{trans_encoder_forward.1} parent=1 // pred_check_branch
      %51 = sbr.rel (0) target = $region37
    $region36: #{trans_encoder_forward.1} parent=1 // pred_region
      _
    $region37: #{trans_encoder_forward.1} parent=1 // pred_fallthru
      _
    // Predicated region
    $region38: #{trans_encoder_forward.1} parent=1 // pred_check
      _
    $region39: #{trans_encoder_forward.1} parent=1 // pred_check_branch
      %53 = sbr.rel (0) target = $region41
    $region40: #{trans_encoder_forward.1} parent=1 // pred_region
      _
    $region41: #{trans_encoder_forward.1} parent=1 // pred_fallthru
      _
    // Predicated region
    $region42: #{trans_encoder_forward.1} parent=1 // pred_check
      _
    $region43: #{trans_encoder_forward.1} parent=1 // pred_check_branch
      %55 = sbr.rel (0) target = $region45
    $region44: #{trans_encoder_forward.1} parent=1 // pred_region
      _
    $region45: #{trans_encoder_forward.1} parent=1 // pred_fallthru
      _
    // Predicated region
    $region46: #{trans_encoder_forward.1} parent=1 // pred_check
      _
    $region47: #{trans_encoder_forward.1} parent=1 // pred_check_branch
      %57 = sbr.rel (0) target = $region49
    $region48: #{trans_encoder_forward.1} parent=1 // pred_region
      _
    $region49: #{trans_encoder_forward.1} parent=1 // pred_fallthru
      _
    // Predicated region
    $region50: #{trans_encoder_forward.1} parent=1 // pred_check
      _
    $region51: #{trans_encoder_forward.1} parent=1 // pred_check_branch
      %59 = sbr.rel (0) target = $region53
    $region52: #{trans_encoder_forward.1} parent=1 // pred_region
      _
    $region53: #{trans_encoder_forward.1} parent=1 // pred_fallthru
      _
    // Predicated region
    $region54: #{trans_encoder_forward.1} parent=1 // pred_check
      _
    $region55: #{trans_encoder_forward.1} parent=1 // pred_check_branch
      %61 = sbr.rel (0) target = $region57
    $region56: #{trans_encoder_forward.1} parent=1 // pred_region
      _
    $region57: #{trans_encoder_forward.1} parent=1 // pred_fallthru
      _
    // Predicated region
    $region58: #{trans_encoder_forward.1} parent=1 // pred_check
      _
    $region59: #{trans_encoder_forward.1} parent=1 // pred_check_branch
      %63 = sbr.rel (0) target = $region61
    $region60: #{trans_encoder_forward.1} parent=1 // pred_region
      _
    $region61: #{trans_encoder_forward.1} parent=1 // pred_fallthru
      _
    // Predicated region
    $region62: #{trans_encoder_forward.1} parent=1 // pred_check
      _
    $region63: #{trans_encoder_forward.1} parent=1 // pred_check_branch
      %65 = sbr.rel (0) target = $region65
    $region64: #{trans_encoder_forward.1} parent=1 // pred_region
      _
    $region65: #{trans_encoder_forward.1} parent=1 // pred_fallthru
      _
    // Predicated region
    $region66: #{trans_encoder_forward.1} parent=1 // pred_check
      _
    $region67: #{trans_encoder_forward.1} parent=1 // pred_check_branch
      %67 = sbr.rel (0) target = $region69
    $region68: #{trans_encoder_forward.1} parent=1 // pred_region
      _
    $region69: #{trans_encoder_forward.1} parent=1 // pred_fallthru
      _
    // Predicated region
    $region70: #{trans_encoder_forward.1} parent=1 // pred_check
      _
    $region71: #{trans_encoder_forward.1} parent=1 // pred_check_branch
      %69 = sbr.rel (0) target = $region73
    $region72: #{trans_encoder_forward.1} parent=1 // pred_region
      %70 = dma.done [#allocation3], 256
    $region73: #{trans_encoder_forward.1} parent=1 // pred_fallthru
      _
    %v71 = vld [vmem:[#allocation2] sm:$0xff]
    %v72 = vld [vmem:[#allocation2 + $0x8] sm:$0xff]
    %v73 = vld [vmem:[%s1] sm:$0xff]
    %v74 = vld [vmem:[%s1 + $0x8] sm:$0xff]
    %v75 = vld [vmem:[%s2] sm:$0xff]
    %v76 = vld [vmem:[%s2 + $0x8] sm:$0xff]
    %v77 = vld [vmem:[%s2 + $0x10] sm:$0xff]
    %v78 = vld [vmem:[%s2 + $0x18] sm:$0xff]
    %v79 = vld [vmem:[%s2 + $0x20] sm:$0xff]
    %v80 = vld [vmem:[%s2 + $0x28] sm:$0xff]
    %v81 = vld [vmem:[%s2 + $0x30] sm:$0xff]
    %v82 = vld [vmem:[%s2 + $0x38] sm:$0xff]
    %v83 = vld [vmem:[%s3] sm:$0xff]
    %v84 = vld [vmem:[%s3 + $0x8] sm:$0xff]
    %v85 = vld [vmem:[%s3 + $0x10] sm:$0xff]
    %v86 = vld [vmem:[%s3 + $0x18] sm:$0xff]
    %v87 = vld [vmem:[%s4] sm:$0x1]
    %v89 = vlaneseq
    %v90 = vshrl.u32 %v89, 7
    %v91 = vsub.s32 0, %v90
    %v92 = vrot.slane %v87, %v91
    %vm94 = vcmask 261120
    %v96 = vsel %vm94, %v71, 0
    %v99 = vsel %vm94, %v72, 0
    %101 = vmatprep.subr.mxu0 0.0
    %102 = vmatpush1.msra.mxu0 0.0
    %103 = vmatprep.subr.mxu0 0.0
    %104 = vmatpush1.msra.mxu0 0.0
    %105 = vmatprep.subr.mxu0 0.0
    %106 = vmatpush1.msra.mxu0 0.0
    %107 = vmatprep.subr.mxu0 0.0
    %108 = vmatpush1.msra.mxu0 0.0
    %109 = vmatprep.subr.mxu0 0.0
    %110 = vmatpush1.msra.mxu0 0.0
    %111 = vmatprep.subr.mxu0 0.0
    %112 = vmatpush1.msra.mxu0 0.0
    %113 = vmatprep.subr.mxu0 0.0
    %114 = vmatpush1.msra.mxu0 0.0
    %115 = vmatprep.subr.mxu0 0.0
    %116 = vmatpush1.msra.mxu0 0.0
    %117 = vmatprep.subr.mxu0 0.0
    %118 = vmatpush1.msra.mxu0 0.0
    %119 = vmatprep.subr.mxu0 0.0
    %120 = vmatpush1.msra.mxu0 0.0
    %121 = vmatprep.subr.mxu0 0.0
    %122 = vmatpush1.msra.mxu0 0.0
    %123 = vmatprep.subr.mxu0 0.0
    %124 = vmatpush1.msra.mxu0 0.0
    %125 = vmatprep.subr.mxu0 0.0
    %126 = vmatpush1.msra.mxu0 %v86
    %127 = vmatprep.subr.mxu0 0.0
    %128 = vmatpush1.msra.mxu0 %v85
    %129 = vmatprep.subr.mxu0 0.0
    %130 = vmatpush1.msra.mxu0 %v84
    %131 = vmatprep.subr.mxu0 0.0
    %132 = vmatpush1.msra.mxu0 %v83
    %133 = vmatprep.subr.mxu0 0.0
    %134 = vmatpush2.msra.mxu0 0.0
    %135 = vmatprep.subr.mxu0 0.0
    %136 = vmatpush2.msra.mxu0 0.0
    %137 = vmatprep.subr.mxu0 0.0
    %138 = vmatpush2.msra.mxu0 0.0
    %139 = vmatprep.subr.mxu0 0.0
    %140 = vmatpush2.msra.mxu0 0.0
    %141 = vmatprep.subr.mxu0 0.0
    %142 = vmatpush2.msra.mxu0 0.0
    %143 = vmatprep.subr.mxu0 0.0
    %144 = vmatpush2.msra.mxu0 0.0
    %145 = vmatprep.subr.mxu0 0.0
    %146 = vmatpush2.msra.mxu0 0.0
    %147 = vmatprep.subr.mxu0 0.0
    %148 = vmatpush2.msra.mxu0 0.0
    %149 = vmatprep.subr.mxu0 0.0
    %150 = vmatpush2.msra.mxu0 0.0
    %151 = vmatprep.subr.mxu0 0.0
    %152 = vmatpush2.msra.mxu0 0.0
    %153 = vmatprep.subr.mxu0 0.0
    %154 = vmatpush2.msra.mxu0 0.0
    %155 = vmatprep.subr.mxu0 0.0
    %156 = vmatpush2.msra.mxu0 0.0
    %157 = vmatprep.subr.mxu0 0.0
    %158 = vmatpush2.msra.mxu0 0.0
    %159 = vmatprep.subr.mxu0 0.0
    %160 = vmatpush2.msra.mxu0 0.0
    %161 = vmatprep.subr.mxu0 0.0
    %162 = vmatpush2.msra.mxu0 0.0
    %163 = vmatprep.subr.mxu0 0.0
    %164 = vmatpush2.msra.mxu0 0.0
    %165 = vmatprep.mubr.f32.mxu0 0.0
    %166 = vmatmul.mubr.f32.gmra.mxu0 %v96
    %v167 = vpop.f32.mrf.mxu0
    %v168 = vadd.f32 %v92, %v167
    %v169 = vpop.f32.mrf.mxu0
    %170 = vmatprep.mubr.f32.mxu0 0.0
    %171 = vmatmul.mubr.f32.gmra.mxu0 %v99
    %v172 = vpop.f32.mrf.mxu0
    %v173 = vadd.f32 %v92, %v172
    %v174 = vpop.f32.mrf.mxu0
    %175 = vdwg.mxu0
    %178 = vrot.lane.b32.xlu0 %v168, 120
    %v179 = vpop.permute.xlu0 %178
    %180 = vrot.lane.b32.xlu0 %v173, 120
    %v181 = vpop.permute.xlu0 %180
    %182 = vrot.lane.b32.xlu0 %v168, 112
    %v183 = vpop.permute.xlu0 %182
    %184 = vrot.lane.b32.xlu0 %v173, 112
    %v185 = vpop.permute.xlu0 %184
    %186 = vrot.lane.b32.xlu0 %v168, 104
    %v187 = vpop.permute.xlu0 %186
    %188 = vrot.lane.b32.xlu0 %v173, 104
    %v189 = vpop.permute.xlu0 %188
    %190 = vrot.lane.b32.xlu0 %v168, 96
    %v191 = vpop.permute.xlu0 %190
    %vm192 = vcmask 64512
    %v193 = vsel %vm192, %v168, 0
    %v195 = vsel %vm192, %v191, 0
    %197 = vmatprep.subr.mxu0 0.0
    %198 = vmatpush1.xpose.msra.mxu0 0.0
    %199 = vmatprep.subr.mxu0 0.0
    %200 = vmatpush1.xpose.msra.mxu0 0.0
    %201 = vmatprep.subr.mxu0 0.0
    %202 = vmatpush1.xpose.msra.mxu0 0.0
    %203 = vmatprep.subr.mxu0 0.0
    %204 = vmatpush1.xpose.msra.mxu0 0.0
    %205 = vmatprep.subr.mxu0 0.0
    %206 = vmatpush1.xpose.msra.mxu0 0.0
    %207 = vmatprep.subr.mxu0 0.0
    %208 = vmatpush1.xpose.msra.mxu0 0.0
    %209 = vmatprep.subr.mxu0 0.0
    %210 = vmatpush1.xpose.msra.mxu0 0.0
    %211 = vmatprep.subr.mxu0 0.0
    %212 = vmatpush1.xpose.msra.mxu0 0.0
    %213 = vmatprep.subr.mxu0 0.0
    %214 = vmatpush1.xpose.msra.mxu0 0.0
    %215 = vmatprep.subr.mxu0 0.0
    %216 = vmatpush1.xpose.msra.mxu0 0.0
    %217 = vmatprep.subr.mxu0 0.0
    %218 = vmatpush1.xpose.msra.mxu0 0.0
    %219 = vmatprep.subr.mxu0 0.0
    %220 = vmatpush1.xpose.msra.mxu0 0.0
    %221 = vmatprep.subr.mxu0 0.0
    %222 = vmatpush1.xpose.msra.mxu0 0.0
    %223 = vmatprep.subr.mxu0 0.0
    %224 = vmatpush1.xpose.msra.mxu0 0.0
    %225 = vmatprep.subr.mxu0 0.0
    %226 = vmatpush1.xpose.msra.mxu0 0.0
    %227 = vmatprep.subr.mxu0 0.0
    %228 = vmatpush1.xpose.msra.mxu0 %v195
    %229 = vmatprep.subr.mxu0 0.0
    %230 = vmatpush2.xpose.msra.mxu0 0.0
    %231 = vmatprep.subr.mxu0 0.0
    %232 = vmatpush2.xpose.msra.mxu0 0.0
    %233 = vmatprep.subr.mxu0 0.0
    %234 = vmatpush2.xpose.msra.mxu0 0.0
    %235 = vmatprep.subr.mxu0 0.0
    %236 = vmatpush2.xpose.msra.mxu0 0.0
    %237 = vmatprep.subr.mxu0 0.0
    %238 = vmatpush2.xpose.msra.mxu0 0.0
    %239 = vmatprep.subr.mxu0 0.0
    %240 = vmatpush2.xpose.msra.mxu0 0.0
    %241 = vmatprep.subr.mxu0 0.0
    %242 = vmatpush2.xpose.msra.mxu0 0.0
    %243 = vmatprep.subr.mxu0 0.0
    %244 = vmatpush2.xpose.msra.mxu0 0.0
    %245 = vmatprep.subr.mxu0 0.0
    %246 = vmatpush2.xpose.msra.mxu0 0.0
    %247 = vmatprep.subr.mxu0 0.0
    %248 = vmatpush2.xpose.msra.mxu0 0.0
    %249 = vmatprep.subr.mxu0 0.0
    %250 = vmatpush2.xpose.msra.mxu0 0.0
    %251 = vmatprep.subr.mxu0 0.0
    %252 = vmatpush2.xpose.msra.mxu0 0.0
    %253 = vmatprep.subr.mxu0 0.0
    %254 = vmatpush2.xpose.msra.mxu0 0.0
    %255 = vmatprep.subr.mxu0 0.0
    %256 = vmatpush2.xpose.msra.mxu0 0.0
    %257 = vmatprep.subr.mxu0 0.0
    %258 = vmatpush2.xpose.msra.mxu0 0.0
    %259 = vmatprep.subr.mxu0 0.0
    %260 = vmatpush2.xpose.msra.mxu0 0.0
    %261 = vmatprep.mubr.f32.mxu0 0.0
    %262 = vmatmul.mubr.f32.gmra.mxu0 %v193
    %v263 = vpop.f32.mrf.mxu0
    %v264 = vadd.f32 %v75, %v263
    %v265 = vpop.f32.mrf.mxu0
    %266 = vdwg.mxu0
    %267 = vrot.lane.b32.xlu0 %v173, 96
    %v268 = vpop.permute.xlu0 %267
    %v269 = vsel %vm192, %v173, 0
    %v271 = vsel %vm192, %v268, 0
    %273 = vmatprep.subr.mxu0 0.0
    %274 = vmatpush1.xpose.msra.mxu0 0.0
    %275 = vmatprep.subr.mxu0 0.0
    %276 = vmatpush1.xpose.msra.mxu0 0.0
    %277 = vmatprep.subr.mxu0 0.0
    %278 = vmatpush1.xpose.msra.mxu0 0.0
    %279 = vmatprep.subr.mxu0 0.0
    %280 = vmatpush1.xpose.msra.mxu0 0.0
    %281 = vmatprep.subr.mxu0 0.0
    %282 = vmatpush1.xpose.msra.mxu0 0.0
    %283 = vmatprep.subr.mxu0 0.0
    %284 = vmatpush1.xpose.msra.mxu0 0.0
    %285 = vmatprep.subr.mxu0 0.0
    %286 = vmatpush1.xpose.msra.mxu0 0.0
    %287 = vmatprep.subr.mxu0 0.0
    %288 = vmatpush1.xpose.msra.mxu0 0.0
    %289 = vmatprep.subr.mxu0 0.0
    %290 = vmatpush1.xpose.msra.mxu0 0.0
    %291 = vmatprep.subr.mxu0 0.0
    %292 = vmatpush1.xpose.msra.mxu0 0.0
    %293 = vmatprep.subr.mxu0 0.0
    %294 = vmatpush1.xpose.msra.mxu0 0.0
    %295 = vmatprep.subr.mxu0 0.0
    %296 = vmatpush1.xpose.msra.mxu0 0.0
    %297 = vmatprep.subr.mxu0 0.0
    %298 = vmatpush1.xpose.msra.mxu0 0.0
    %299 = vmatprep.subr.mxu0 0.0
    %300 = vmatpush1.xpose.msra.mxu0 0.0
    %301 = vmatprep.subr.mxu0 0.0
    %302 = vmatpush1.xpose.msra.mxu0 0.0
    %303 = vmatprep.subr.mxu0 0.0
    %304 = vmatpush1.xpose.msra.mxu0 %v271
    %305 = vmatprep.subr.mxu0 0.0
    %306 = vmatpush2.xpose.msra.mxu0 0.0
    %307 = vmatprep.subr.mxu0 0.0
    %308 = vmatpush2.xpose.msra.mxu0 0.0
    %309 = vmatprep.subr.mxu0 0.0
    %310 = vmatpush2.xpose.msra.mxu0 0.0
    %311 = vmatprep.subr.mxu0 0.0
    %312 = vmatpush2.xpose.msra.mxu0 0.0
    %313 = vmatprep.subr.mxu0 0.0
    %314 = vmatpush2.xpose.msra.mxu0 0.0
    %315 = vmatprep.subr.mxu0 0.0
    %316 = vmatpush2.xpose.msra.mxu0 0.0
    %317 = vmatprep.subr.mxu0 0.0
    %318 = vmatpush2.xpose.msra.mxu0 0.0
    %319 = vmatprep.subr.mxu0 0.0
    %320 = vmatpush2.xpose.msra.mxu0 0.0
    %321 = vmatprep.subr.mxu0 0.0
    %322 = vmatpush2.xpose.msra.mxu0 0.0
    %323 = vmatprep.subr.mxu0 0.0
    %324 = vmatpush2.xpose.msra.mxu0 0.0
    %325 = vmatprep.subr.mxu0 0.0
    %326 = vmatpush2.xpose.msra.mxu0 0.0
    %327 = vmatprep.subr.mxu0 0.0
    %328 = vmatpush2.xpose.msra.mxu0 0.0
    %329 = vmatprep.subr.mxu0 0.0
    %330 = vmatpush2.xpose.msra.mxu0 0.0
    %331 = vmatprep.subr.mxu0 0.0
    %332 = vmatpush2.xpose.msra.mxu0 0.0
    %333 = vmatprep.subr.mxu0 0.0
    %334 = vmatpush2.xpose.msra.mxu0 0.0
    %335 = vmatprep.subr.mxu0 0.0
    %336 = vmatpush2.xpose.msra.mxu0 0.0
    %337 = vmatprep.mubr.f32.mxu0 0.0
    %338 = vmatmul.mubr.f32.gmra.mxu0 %v269
    %v339 = vpop.f32.mrf.mxu0
    %v340 = vadd.f32 %v76, %v339
    %v341 = vpop.f32.mrf.mxu0
    %342 = vdwg.mxu0
    %343 = vrot.lane.b32.xlu0 %v179, 96
    %v344 = vpop.permute.xlu0 %343
    %v345 = vsel %vm192, %v179, 0
    %v347 = vsel %vm192, %v344, 0
    %349 = vmatprep.subr.mxu0 0.0
    %350 = vmatpush1.xpose.msra.mxu0 0.0
    %351 = vmatprep.subr.mxu0 0.0
    %352 = vmatpush1.xpose.msra.mxu0 0.0
    %353 = vmatprep.subr.mxu0 0.0
    %354 = vmatpush1.xpose.msra.mxu0 0.0
    %355 = vmatprep.subr.mxu0 0.0
    %356 = vmatpush1.xpose.msra.mxu0 0.0
    %357 = vmatprep.subr.mxu0 0.0
    %358 = vmatpush1.xpose.msra.mxu0 0.0
    %359 = vmatprep.subr.mxu0 0.0
    %360 = vmatpush1.xpose.msra.mxu0 0.0
    %361 = vmatprep.subr.mxu0 0.0
    %362 = vmatpush1.xpose.msra.mxu0 0.0
    %363 = vmatprep.subr.mxu0 0.0
    %364 = vmatpush1.xpose.msra.mxu0 0.0
    %365 = vmatprep.subr.mxu0 0.0
    %366 = vmatpush1.xpose.msra.mxu0 0.0
    %367 = vmatprep.subr.mxu0 0.0
    %368 = vmatpush1.xpose.msra.mxu0 0.0
    %369 = vmatprep.subr.mxu0 0.0
    %370 = vmatpush1.xpose.msra.mxu0 0.0
    %371 = vmatprep.subr.mxu0 0.0
    %372 = vmatpush1.xpose.msra.mxu0 0.0
    %373 = vmatprep.subr.mxu0 0.0
    %374 = vmatpush1.xpose.msra.mxu0 0.0
    %375 = vmatprep.subr.mxu0 0.0
    %376 = vmatpush1.xpose.msra.mxu0 0.0
    %377 = vmatprep.subr.mxu0 0.0
    %378 = vmatpush1.xpose.msra.mxu0 0.0
    %379 = vmatprep.subr.mxu0 0.0
    %380 = vmatpush1.xpose.msra.mxu0 %v347
    %381 = vmatprep.subr.mxu0 0.0
    %382 = vmatpush2.xpose.msra.mxu0 0.0
    %383 = vmatprep.subr.mxu0 0.0
    %384 = vmatpush2.xpose.msra.mxu0 0.0
    %385 = vmatprep.subr.mxu0 0.0
    %386 = vmatpush2.xpose.msra.mxu0 0.0
    %387 = vmatprep.subr.mxu0 0.0
    %388 = vmatpush2.xpose.msra.mxu0 0.0
    %389 = vmatprep.subr.mxu0 0.0
    %390 = vmatpush2.xpose.msra.mxu0 0.0
    %391 = vmatprep.subr.mxu0 0.0
    %392 = vmatpush2.xpose.msra.mxu0 0.0
    %393 = vmatprep.subr.mxu0 0.0
    %394 = vmatpush2.xpose.msra.mxu0 0.0
    %395 = vmatprep.subr.mxu0 0.0
    %396 = vmatpush2.xpose.msra.mxu0 0.0
    %397 = vmatprep.subr.mxu0 0.0
    %398 = vmatpush2.xpose.msra.mxu0 0.0
    %399 = vmatprep.subr.mxu0 0.0
    %400 = vmatpush2.xpose.msra.mxu0 0.0
    %401 = vmatprep.subr.mxu0 0.0
    %402 = vmatpush2.xpose.msra.mxu0 0.0
    %403 = vmatprep.subr.mxu0 0.0
    %404 = vmatpush2.xpose.msra.mxu0 0.0
    %405 = vmatprep.subr.mxu0 0.0
    %406 = vmatpush2.xpose.msra.mxu0 0.0
    %407 = vmatprep.subr.mxu0 0.0
    %408 = vmatpush2.xpose.msra.mxu0 0.0
    %409 = vmatprep.subr.mxu0 0.0
    %410 = vmatpush2.xpose.msra.mxu0 0.0
    %411 = vmatprep.subr.mxu0 0.0
    %412 = vmatpush2.xpose.msra.mxu0 0.0
    %413 = vmatprep.mubr.f32.mxu0 0.0
    %414 = vmatmul.mubr.f32.gmra.mxu0 %v345
    %v415 = vpop.f32.mrf.mxu0
    %v416 = vadd.f32 %v77, %v415
    %v417 = vpop.f32.mrf.mxu0
    %418 = vdwg.mxu0
    %419 = vrot.lane.b32.xlu0 %v181, 96
    %v420 = vpop.permute.xlu0 %419
    %v421 = vsel %vm192, %v181, 0
    %v423 = vsel %vm192, %v420, 0
    %425 = vmatprep.subr.mxu0 0.0
    %426 = vmatpush1.xpose.msra.mxu0 0.0
    %427 = vmatprep.subr.mxu0 0.0
    %428 = vmatpush1.xpose.msra.mxu0 0.0
    %429 = vmatprep.subr.mxu0 0.0
    %430 = vmatpush1.xpose.msra.mxu0 0.0
    %431 = vmatprep.subr.mxu0 0.0
    %432 = vmatpush1.xpose.msra.mxu0 0.0
    %433 = vmatprep.subr.mxu0 0.0
    %434 = vmatpush1.xpose.msra.mxu0 0.0
    %435 = vmatprep.subr.mxu0 0.0
    %436 = vmatpush1.xpose.msra.mxu0 0.0
    %437 = vmatprep.subr.mxu0 0.0
    %438 = vmatpush1.xpose.msra.mxu0 0.0
    %439 = vmatprep.subr.mxu0 0.0
    %440 = vmatpush1.xpose.msra.mxu0 0.0
    %441 = vmatprep.subr.mxu0 0.0
    %442 = vmatpush1.xpose.msra.mxu0 0.0
    %443 = vmatprep.subr.mxu0 0.0
    %444 = vmatpush1.xpose.msra.mxu0 0.0
    %445 = vmatprep.subr.mxu0 0.0
    %446 = vmatpush1.xpose.msra.mxu0 0.0
    %447 = vmatprep.subr.mxu0 0.0
    %448 = vmatpush1.xpose.msra.mxu0 0.0
    %449 = vmatprep.subr.mxu0 0.0
    %450 = vmatpush1.xpose.msra.mxu0 0.0
    %451 = vmatprep.subr.mxu0 0.0
    %452 = vmatpush1.xpose.msra.mxu0 0.0
    %453 = vmatprep.subr.mxu0 0.0
    %454 = vmatpush1.xpose.msra.mxu0 0.0
    %455 = vmatprep.subr.mxu0 0.0
    %456 = vmatpush1.xpose.msra.mxu0 %v423
    %457 = vmatprep.subr.mxu0 0.0
    %458 = vmatpush2.xpose.msra.mxu0 0.0
    %459 = vmatprep.subr.mxu0 0.0
    %460 = vmatpush2.xpose.msra.mxu0 0.0
    %461 = vmatprep.subr.mxu0 0.0
    %462 = vmatpush2.xpose.msra.mxu0 0.0
    %463 = vmatprep.subr.mxu0 0.0
    %464 = vmatpush2.xpose.msra.mxu0 0.0
    %465 = vmatprep.subr.mxu0 0.0
    %466 = vmatpush2.xpose.msra.mxu0 0.0
    %467 = vmatprep.subr.mxu0 0.0
    %468 = vmatpush2.xpose.msra.mxu0 0.0
    %469 = vmatprep.subr.mxu0 0.0
    %470 = vmatpush2.xpose.msra.mxu0 0.0
    %471 = vmatprep.subr.mxu0 0.0
    %472 = vmatpush2.xpose.msra.mxu0 0.0
    %473 = vmatprep.subr.mxu0 0.0
    %474 = vmatpush2.xpose.msra.mxu0 0.0
    %475 = vmatprep.subr.mxu0 0.0
    %476 = vmatpush2.xpose.msra.mxu0 0.0
    %477 = vmatprep.subr.mxu0 0.0
    %478 = vmatpush2.xpose.msra.mxu0 0.0
    %479 = vmatprep.subr.mxu0 0.0
    %480 = vmatpush2.xpose.msra.mxu0 0.0
    %481 = vmatprep.subr.mxu0 0.0
    %482 = vmatpush2.xpose.msra.mxu0 0.0
    %483 = vmatprep.subr.mxu0 0.0
    %484 = vmatpush2.xpose.msra.mxu0 0.0
    %485 = vmatprep.subr.mxu0 0.0
    %486 = vmatpush2.xpose.msra.mxu0 0.0
    %487 = vmatprep.subr.mxu0 0.0
    %488 = vmatpush2.xpose.msra.mxu0 0.0
    %489 = vmatprep.mubr.f32.mxu0 0.0
    %490 = vmatmul.mubr.f32.gmra.mxu0 %v421
    %v491 = vpop.f32.mrf.mxu0
    %v492 = vadd.f32 %v78, %v491
    %v493 = vpop.f32.mrf.mxu0
    %494 = vdwg.mxu0
    %495 = vrot.lane.b32.xlu0 %v183, 96
    %v496 = vpop.permute.xlu0 %495
    %v497 = vsel %vm192, %v183, 0
    %v499 = vsel %vm192, %v496, 0
    %501 = vmatprep.subr.mxu0 0.0
    %502 = vmatpush1.xpose.msra.mxu0 0.0
    %503 = vmatprep.subr.mxu0 0.0
    %504 = vmatpush1.xpose.msra.mxu0 0.0
    %505 = vmatprep.subr.mxu0 0.0
    %506 = vmatpush1.xpose.msra.mxu0 0.0
    %507 = vmatprep.subr.mxu0 0.0
    %508 = vmatpush1.xpose.msra.mxu0 0.0
    %509 = vmatprep.subr.mxu0 0.0
    %510 = vmatpush1.xpose.msra.mxu0 0.0
    %511 = vmatprep.subr.mxu0 0.0
    %512 = vmatpush1.xpose.msra.mxu0 0.0
    %513 = vmatprep.subr.mxu0 0.0
    %514 = vmatpush1.xpose.msra.mxu0 0.0
    %515 = vmatprep.subr.mxu0 0.0
    %516 = vmatpush1.xpose.msra.mxu0 0.0
    %517 = vmatprep.subr.mxu0 0.0
    %518 = vmatpush1.xpose.msra.mxu0 0.0
    %519 = vmatprep.subr.mxu0 0.0
    %520 = vmatpush1.xpose.msra.mxu0 0.0
    %521 = vmatprep.subr.mxu0 0.0
    %522 = vmatpush1.xpose.msra.mxu0 0.0
    %523 = vmatprep.subr.mxu0 0.0
    %524 = vmatpush1.xpose.msra.mxu0 0.0
    %525 = vmatprep.subr.mxu0 0.0
    %526 = vmatpush1.xpose.msra.mxu0 0.0
    %527 = vmatprep.subr.mxu0 0.0
    %528 = vmatpush1.xpose.msra.mxu0 0.0
    %529 = vmatprep.subr.mxu0 0.0
    %530 = vmatpush1.xpose.msra.mxu0 0.0
    %531 = vmatprep.subr.mxu0 0.0
    %532 = vmatpush1.xpose.msra.mxu0 %v499
    %533 = vmatprep.subr.mxu0 0.0
    %534 = vmatpush2.xpose.msra.mxu0 0.0
    %535 = vmatprep.subr.mxu0 0.0
    %536 = vmatpush2.xpose.msra.mxu0 0.0
    %537 = vmatprep.subr.mxu0 0.0
    %538 = vmatpush2.xpose.msra.mxu0 0.0
    %539 = vmatprep.subr.mxu0 0.0
    %540 = vmatpush2.xpose.msra.mxu0 0.0
    %541 = vmatprep.subr.mxu0 0.0
    %542 = vmatpush2.xpose.msra.mxu0 0.0
    %543 = vmatprep.subr.mxu0 0.0
    %544 = vmatpush2.xpose.msra.mxu0 0.0
    %545 = vmatprep.subr.mxu0 0.0
    %546 = vmatpush2.xpose.msra.mxu0 0.0
    %547 = vmatprep.subr.mxu0 0.0
    %548 = vmatpush2.xpose.msra.mxu0 0.0
    %549 = vmatprep.subr.mxu0 0.0
    %550 = vmatpush2.xpose.msra.mxu0 0.0
    %551 = vmatprep.subr.mxu0 0.0
    %552 = vmatpush2.xpose.msra.mxu0 0.0
    %553 = vmatprep.subr.mxu0 0.0
    %554 = vmatpush2.xpose.msra.mxu0 0.0
    %555 = vmatprep.subr.mxu0 0.0
    %556 = vmatpush2.xpose.msra.mxu0 0.0
    %557 = vmatprep.subr.mxu0 0.0
    %558 = vmatpush2.xpose.msra.mxu0 0.0
    %559 = vmatprep.subr.mxu0 0.0
    %560 = vmatpush2.xpose.msra.mxu0 0.0
    %561 = vmatprep.subr.mxu0 0.0
    %562 = vmatpush2.xpose.msra.mxu0 0.0
    %563 = vmatprep.subr.mxu0 0.0
    %564 = vmatpush2.xpose.msra.mxu0 0.0
    %565 = vmatprep.mubr.f32.mxu0 0.0
    %566 = vmatmul.mubr.f32.gmra.mxu0 %v497
    %v567 = vpop.f32.mrf.mxu0
    %v568 = vadd.f32 %v79, %v567
    %v569 = vpop.f32.mrf.mxu0
    %570 = vdwg.mxu0
    %571 = vrot.lane.b32.xlu0 %v185, 96
    %v572 = vpop.permute.xlu0 %571
    %v573 = vsel %vm192, %v185, 0
    %v575 = vsel %vm192, %v572, 0
    %577 = vmatprep.subr.mxu0 0.0
    %578 = vmatpush1.xpose.msra.mxu0 0.0
    %579 = vmatprep.subr.mxu0 0.0
    %580 = vmatpush1.xpose.msra.mxu0 0.0
    %581 = vmatprep.subr.mxu0 0.0
    %582 = vmatpush1.xpose.msra.mxu0 0.0
    %583 = vmatprep.subr.mxu0 0.0
    %584 = vmatpush1.xpose.msra.mxu0 0.0
    %585 = vmatprep.subr.mxu0 0.0
    %586 = vmatpush1.xpose.msra.mxu0 0.0
    %587 = vmatprep.subr.mxu0 0.0
    %588 = vmatpush1.xpose.msra.mxu0 0.0
    %589 = vmatprep.subr.mxu0 0.0
    %590 = vmatpush1.xpose.msra.mxu0 0.0
    %591 = vmatprep.subr.mxu0 0.0
    %592 = vmatpush1.xpose.msra.mxu0 0.0
    %593 = vmatprep.subr.mxu0 0.0
    %594 = vmatpush1.xpose.msra.mxu0 0.0
    %595 = vmatprep.subr.mxu0 0.0
    %596 = vmatpush1.xpose.msra.mxu0 0.0
    %597 = vmatprep.subr.mxu0 0.0
    %598 = vmatpush1.xpose.msra.mxu0 0.0
    %599 = vmatprep.subr.mxu0 0.0
    %600 = vmatpush1.xpose.msra.mxu0 0.0
    %601 = vmatprep.subr.mxu0 0.0
    %602 = vmatpush1.xpose.msra.mxu0 0.0
    %603 = vmatprep.subr.mxu0 0.0
    %604 = vmatpush1.xpose.msra.mxu0 0.0
    %605 = vmatprep.subr.mxu0 0.0
    %606 = vmatpush1.xpose.msra.mxu0 0.0
    %607 = vmatprep.subr.mxu0 0.0
    %608 = vmatpush1.xpose.msra.mxu0 %v575
    %609 = vmatprep.subr.mxu0 0.0
    %610 = vmatpush2.xpose.msra.mxu0 0.0
    %611 = vmatprep.subr.mxu0 0.0
    %612 = vmatpush2.xpose.msra.mxu0 0.0
    %613 = vmatprep.subr.mxu0 0.0
    %614 = vmatpush2.xpose.msra.mxu0 0.0
    %615 = vmatprep.subr.mxu0 0.0
    %616 = vmatpush2.xpose.msra.mxu0 0.0
    %617 = vmatprep.subr.mxu0 0.0
    %618 = vmatpush2.xpose.msra.mxu0 0.0
    %619 = vmatprep.subr.mxu0 0.0
    %620 = vmatpush2.xpose.msra.mxu0 0.0
    %621 = vmatprep.subr.mxu0 0.0
    %622 = vmatpush2.xpose.msra.mxu0 0.0
    %623 = vmatprep.subr.mxu0 0.0
    %624 = vmatpush2.xpose.msra.mxu0 0.0
    %625 = vmatprep.subr.mxu0 0.0
    %626 = vmatpush2.xpose.msra.mxu0 0.0
    %627 = vmatprep.subr.mxu0 0.0
    %628 = vmatpush2.xpose.msra.mxu0 0.0
    %629 = vmatprep.subr.mxu0 0.0
    %630 = vmatpush2.xpose.msra.mxu0 0.0
    %631 = vmatprep.subr.mxu0 0.0
    %632 = vmatpush2.xpose.msra.mxu0 0.0
    %633 = vmatprep.subr.mxu0 0.0
    %634 = vmatpush2.xpose.msra.mxu0 0.0
    %635 = vmatprep.subr.mxu0 0.0
    %636 = vmatpush2.xpose.msra.mxu0 0.0
    %637 = vmatprep.subr.mxu0 0.0
    %638 = vmatpush2.xpose.msra.mxu0 0.0
    %639 = vmatprep.subr.mxu0 0.0
    %640 = vmatpush2.xpose.msra.mxu0 0.0
    %641 = vmatprep.mubr.f32.mxu0 0.0
    %642 = vmatmul.mubr.f32.gmra.mxu0 %v573
    %v643 = vpop.f32.mrf.mxu0
    %v644 = vadd.f32 %v80, %v643
    %v645 = vpop.f32.mrf.mxu0
    %646 = vdwg.mxu0
    %647 = vrot.lane.b32.xlu0 %v187, 96
    %v648 = vpop.permute.xlu0 %647
    %v649 = vsel %vm192, %v187, 0
    %v651 = vsel %vm192, %v648, 0
    %653 = vmatprep.subr.mxu0 0.0
    %654 = vmatpush1.xpose.msra.mxu0 0.0
    %655 = vmatprep.subr.mxu0 0.0
    %656 = vmatpush1.xpose.msra.mxu0 0.0
    %657 = vmatprep.subr.mxu0 0.0
    %658 = vmatpush1.xpose.msra.mxu0 0.0
    %659 = vmatprep.subr.mxu0 0.0
    %660 = vmatpush1.xpose.msra.mxu0 0.0
    %661 = vmatprep.subr.mxu0 0.0
    %662 = vmatpush1.xpose.msra.mxu0 0.0
    %663 = vmatprep.subr.mxu0 0.0
    %664 = vmatpush1.xpose.msra.mxu0 0.0
    %665 = vmatprep.subr.mxu0 0.0
    %666 = vmatpush1.xpose.msra.mxu0 0.0
    %667 = vmatprep.subr.mxu0 0.0
    %668 = vmatpush1.xpose.msra.mxu0 0.0
    %669 = vmatprep.subr.mxu0 0.0
    %670 = vmatpush1.xpose.msra.mxu0 0.0
    %671 = vmatprep.subr.mxu0 0.0
    %672 = vmatpush1.xpose.msra.mxu0 0.0
    %673 = vmatprep.subr.mxu0 0.0
    %674 = vmatpush1.xpose.msra.mxu0 0.0
    %675 = vmatprep.subr.mxu0 0.0
    %676 = vmatpush1.xpose.msra.mxu0 0.0
    %677 = vmatprep.subr.mxu0 0.0
    %678 = vmatpush1.xpose.msra.mxu0 0.0
    %679 = vmatprep.subr.mxu0 0.0
    %680 = vmatpush1.xpose.msra.mxu0 0.0
    %681 = vmatprep.subr.mxu0 0.0
    %682 = vmatpush1.xpose.msra.mxu0 0.0
    %683 = vmatprep.subr.mxu0 0.0
    %684 = vmatpush1.xpose.msra.mxu0 %v651
    %685 = vmatprep.subr.mxu0 0.0
    %686 = vmatpush2.xpose.msra.mxu0 0.0
    %687 = vmatprep.subr.mxu0 0.0
    %688 = vmatpush2.xpose.msra.mxu0 0.0
    %689 = vmatprep.subr.mxu0 0.0
    %690 = vmatpush2.xpose.msra.mxu0 0.0
    %691 = vmatprep.subr.mxu0 0.0
    %692 = vmatpush2.xpose.msra.mxu0 0.0
    %693 = vmatprep.subr.mxu0 0.0
    %694 = vmatpush2.xpose.msra.mxu0 0.0
    %695 = vmatprep.subr.mxu0 0.0
    %696 = vmatpush2.xpose.msra.mxu0 0.0
    %697 = vmatprep.subr.mxu0 0.0
    %698 = vmatpush2.xpose.msra.mxu0 0.0
    %699 = vmatprep.subr.mxu0 0.0
    %700 = vmatpush2.xpose.msra.mxu0 0.0
    %701 = vmatprep.subr.mxu0 0.0
    %702 = vmatpush2.xpose.msra.mxu0 0.0
    %703 = vmatprep.subr.mxu0 0.0
    %704 = vmatpush2.xpose.msra.mxu0 0.0
    %705 = vmatprep.subr.mxu0 0.0
    %706 = vmatpush2.xpose.msra.mxu0 0.0
    %707 = vmatprep.subr.mxu0 0.0
    %708 = vmatpush2.xpose.msra.mxu0 0.0
    %709 = vmatprep.subr.mxu0 0.0
    %710 = vmatpush2.xpose.msra.mxu0 0.0
    %711 = vmatprep.subr.mxu0 0.0
    %712 = vmatpush2.xpose.msra.mxu0 0.0
    %713 = vmatprep.subr.mxu0 0.0
    %714 = vmatpush2.xpose.msra.mxu0 0.0
    %715 = vmatprep.subr.mxu0 0.0
    %716 = vmatpush2.xpose.msra.mxu0 0.0
    %717 = vmatprep.mubr.f32.mxu0 0.0
    %718 = vmatmul.mubr.f32.gmra.mxu0 %v649
    %v719 = vpop.f32.mrf.mxu0
    %v720 = vadd.f32 %v81, %v719
    %v721 = vpop.f32.mrf.mxu0
    %722 = vdwg.mxu0
    %723 = vrot.lane.b32.xlu0 %v189, 96
    %v724 = vpop.permute.xlu0 %723
    %v725 = vsel %vm192, %v189, 0
    %v727 = vsel %vm192, %v724, 0
    %729 = vmatprep.subr.mxu0 0.0
    %730 = vmatpush1.xpose.msra.mxu0 0.0
    %731 = vmatprep.subr.mxu0 0.0
    %732 = vmatpush1.xpose.msra.mxu0 0.0
    %733 = vmatprep.subr.mxu0 0.0
    %734 = vmatpush1.xpose.msra.mxu0 0.0
    %735 = vmatprep.subr.mxu0 0.0
    %736 = vmatpush1.xpose.msra.mxu0 0.0
    %737 = vmatprep.subr.mxu0 0.0
    %738 = vmatpush1.xpose.msra.mxu0 0.0
    %739 = vmatprep.subr.mxu0 0.0
    %740 = vmatpush1.xpose.msra.mxu0 0.0
    %741 = vmatprep.subr.mxu0 0.0
    %742 = vmatpush1.xpose.msra.mxu0 0.0
    %743 = vmatprep.subr.mxu0 0.0
    %744 = vmatpush1.xpose.msra.mxu0 0.0
    %745 = vmatprep.subr.mxu0 0.0
    %746 = vmatpush1.xpose.msra.mxu0 0.0
    %747 = vmatprep.subr.mxu0 0.0
    %748 = vmatpush1.xpose.msra.mxu0 0.0
    %749 = vmatprep.subr.mxu0 0.0
    %750 = vmatpush1.xpose.msra.mxu0 0.0
    %751 = vmatprep.subr.mxu0 0.0
    %752 = vmatpush1.xpose.msra.mxu0 0.0
    %753 = vmatprep.subr.mxu0 0.0
    %754 = vmatpush1.xpose.msra.mxu0 0.0
    %755 = vmatprep.subr.mxu0 0.0
    %756 = vmatpush1.xpose.msra.mxu0 0.0
    %757 = vmatprep.subr.mxu0 0.0
    %758 = vmatpush1.xpose.msra.mxu0 0.0
    %759 = vmatprep.subr.mxu0 0.0
    %760 = vmatpush1.xpose.msra.mxu0 %v727
    %761 = vmatprep.subr.mxu0 0.0
    %762 = vmatpush2.xpose.msra.mxu0 0.0
    %763 = vmatprep.subr.mxu0 0.0
    %764 = vmatpush2.xpose.msra.mxu0 0.0
    %765 = vmatprep.subr.mxu0 0.0
    %766 = vmatpush2.xpose.msra.mxu0 0.0
    %767 = vmatprep.subr.mxu0 0.0
    %768 = vmatpush2.xpose.msra.mxu0 0.0
    %769 = vmatprep.subr.mxu0 0.0
    %770 = vmatpush2.xpose.msra.mxu0 0.0
    %771 = vmatprep.subr.mxu0 0.0
    %772 = vmatpush2.xpose.msra.mxu0 0.0
    %773 = vmatprep.subr.mxu0 0.0
    %774 = vmatpush2.xpose.msra.mxu0 0.0
    %775 = vmatprep.subr.mxu0 0.0
    %776 = vmatpush2.xpose.msra.mxu0 0.0
    %777 = vmatprep.subr.mxu0 0.0
    %778 = vmatpush2.xpose.msra.mxu0 0.0
    %779 = vmatprep.subr.mxu0 0.0
    %780 = vmatpush2.xpose.msra.mxu0 0.0
    %781 = vmatprep.subr.mxu0 0.0
    %782 = vmatpush2.xpose.msra.mxu0 0.0
    %783 = vmatprep.subr.mxu0 0.0
    %784 = vmatpush2.xpose.msra.mxu0 0.0
    %785 = vmatprep.subr.mxu0 0.0
    %786 = vmatpush2.xpose.msra.mxu0 0.0
    %787 = vmatprep.subr.mxu0 0.0
    %788 = vmatpush2.xpose.msra.mxu0 0.0
    %789 = vmatprep.subr.mxu0 0.0
    %790 = vmatpush2.xpose.msra.mxu0 0.0
    %791 = vmatprep.subr.mxu0 0.0
    %792 = vmatpush2.xpose.msra.mxu0 0.0
    %793 = vmatprep.mubr.f32.mxu0 0.0
    %794 = vmatmul.mubr.f32.gmra.mxu0 %v725
    %v795 = vpop.f32.mrf.mxu0
    %v796 = vadd.f32 %v82, %v795
    %v797 = vpop.f32.mrf.mxu0
    %798 = vdwg.mxu0
    %v799 = vsel %vm192, %v264, -inf
    %800 = vmax.xlane.f32.xlu0 %v799
    %v801 = vpop.xlane.xlu0 %800
    %v802 = vsel %vm192, %v340, -inf
    %803 = vmax.xlane.f32.xlu0 %v802
    %v804 = vpop.xlane.xlu0 %803
    %v805 = vsel %vm192, %v416, -inf
    %806 = vmax.xlane.f32.xlu0 %v805
    %v807 = vpop.xlane.xlu0 %806
    %v808 = vsel %vm192, %v492, -inf
    %809 = vmax.xlane.f32.xlu0 %v808
    %v810 = vpop.xlane.xlu0 %809
    %v811 = vsel %vm192, %v568, -inf
    %812 = vmax.xlane.f32.xlu0 %v811
    %v813 = vpop.xlane.xlu0 %812
    %v814 = vsel %vm192, %v644, -inf
    %815 = vmax.xlane.f32.xlu0 %v814
    %v816 = vpop.xlane.xlu0 %815
    %v817 = vsel %vm192, %v720, -inf
    %818 = vmax.xlane.f32.xlu0 %v817
    %v819 = vpop.xlane.xlu0 %818
    %v820 = vsel %vm192, %v796, -inf
    %821 = vmax.xlane.f32.xlu0 %v820
    %v822 = vpop.xlane.xlu0 %821
    %v823 = vsub.f32 %v264, %v801
    %v824 = vsub.f32 %v340, %v804
    %v825 = vsub.f32 %v416, %v807
    %v826 = vsub.f32 %v492, %v810
    %v827 = vsub.f32 %v568, %v813
    %v828 = vsub.f32 %v644, %v816
    %v829 = vsub.f32 %v720, %v819
    %v830 = vsub.f32 %v796, %v822
    %v831 = vmul.f32 %v823, 1.442695
    %v832 = vpow.pop %v831
    %v833 = vmul.f32 %v824, 1.442695
    %v834 = vpow.pop %v833
    %v835 = vmul.f32 %v825, 1.442695
    %v836 = vpow.pop %v835
    %v837 = vmul.f32 %v826, 1.442695
    %v838 = vpow.pop %v837
    %v839 = vmul.f32 %v827, 1.442695
    %v840 = vpow.pop %v839
    %v841 = vmul.f32 %v828, 1.442695
    %v842 = vpow.pop %v841
    %v843 = vmul.f32 %v829, 1.442695
    %v844 = vpow.pop %v843
    %v845 = vmul.f32 %v830, 1.442695
    %v846 = vpow.pop %v845
    %v847 = vsel %vm192, %v832, 0.0
    %848 = vadd.xlane.f32.xlu0 %v847
    %v849 = vpop.xlane.xlu0 %848
    %v850 = vsel %vm192, %v834, 0.0
    %851 = vadd.xlane.f32.xlu0 %v850
    %v852 = vpop.xlane.xlu0 %851
    %v853 = vsel %vm192, %v836, 0.0
    %854 = vadd.xlane.f32.xlu0 %v853
    %v855 = vpop.xlane.xlu0 %854
    %v856 = vsel %vm192, %v838, 0.0
    %857 = vadd.xlane.f32.xlu0 %v856
    %v858 = vpop.xlane.xlu0 %857
    %v859 = vsel %vm192, %v840, 0.0
    %860 = vadd.xlane.f32.xlu0 %v859
    %v861 = vpop.xlane.xlu0 %860
    %v862 = vsel %vm192, %v842, 0.0
    %863 = vadd.xlane.f32.xlu0 %v862
    %v864 = vpop.xlane.xlu0 %863
    %v865 = vsel %vm192, %v844, 0.0
    %866 = vadd.xlane.f32.xlu0 %v865
    %v867 = vpop.xlane.xlu0 %866
    %v868 = vsel %vm192, %v846, 0.0
    %869 = vadd.xlane.f32.xlu0 %v868
    %v870 = vpop.xlane.xlu0 %869
    %v871 = vrcp.pop %v849
    %v872 = vrcp.pop %v852
    %v873 = vrcp.pop %v855
    %v874 = vrcp.pop %v858
    %v875 = vrcp.pop %v861
    %v876 = vrcp.pop %v864
    %v877 = vrcp.pop %v867
    %v878 = vrcp.pop %v870
    %v879 = vmul.f32 %v832, %v871
    %v880 = vmul.f32 %v834, %v872
    %v881 = vmul.f32 %v836, %v873
    %v882 = vmul.f32 %v838, %v874
    %v883 = vmul.f32 %v840, %v875
    %v884 = vmul.f32 %v842, %v876
    %v885 = vmul.f32 %v844, %v877
    %v886 = vmul.f32 %v846, %v878
    %887 = vrot.lane.b32.xlu0 %v168, 64
    %v888 = vpop.permute.xlu0 %887
    %v891 = vsel %vm192, %v879, 0
    %893 = vmatprep.subr.mxu0 0.0
    %894 = vmatpush1.msra.mxu0 0.0
    %895 = vmatprep.subr.mxu0 0.0
    %896 = vmatpush1.msra.mxu0 0.0
    %897 = vmatprep.subr.mxu0 0.0
    %898 = vmatpush1.msra.mxu0 0.0
    %899 = vmatprep.subr.mxu0 0.0
    %900 = vmatpush1.msra.mxu0 0.0
    %901 = vmatprep.subr.mxu0 0.0
    %902 = vmatpush1.msra.mxu0 0.0
    %903 = vmatprep.subr.mxu0 0.0
    %904 = vmatpush1.msra.mxu0 0.0
    %905 = vmatprep.subr.mxu0 0.0
    %906 = vmatpush1.msra.mxu0 0.0
    %907 = vmatprep.subr.mxu0 0.0
    %908 = vmatpush1.msra.mxu0 0.0
    %909 = vmatprep.subr.mxu0 0.0
    %910 = vmatpush1.msra.mxu0 0.0
    %911 = vmatprep.subr.mxu0 0.0
    %912 = vmatpush1.msra.mxu0 0.0
    %913 = vmatprep.subr.mxu0 0.0
    %914 = vmatpush1.msra.mxu0 0.0
    %915 = vmatprep.subr.mxu0 0.0
    %916 = vmatpush1.msra.mxu0 0.0
    %917 = vmatprep.subr.mxu0 0.0
    %918 = vmatpush1.msra.mxu0 0.0
    %919 = vmatprep.subr.mxu0 0.0
    %920 = vmatpush1.msra.mxu0 0.0
    %921 = vmatprep.subr.mxu0 0.0
    %922 = vmatpush1.msra.mxu0 0.0
    %923 = vmatprep.subr.mxu0 0.0
    %924 = vmatpush1.msra.mxu0 %v888
    %925 = vmatprep.subr.mxu0 0.0
    %926 = vmatpush2.msra.mxu0 0.0
    %927 = vmatprep.subr.mxu0 0.0
    %928 = vmatpush2.msra.mxu0 0.0
    %929 = vmatprep.subr.mxu0 0.0
    %930 = vmatpush2.msra.mxu0 0.0
    %931 = vmatprep.subr.mxu0 0.0
    %932 = vmatpush2.msra.mxu0 0.0
    %933 = vmatprep.subr.mxu0 0.0
    %934 = vmatpush2.msra.mxu0 0.0
    %935 = vmatprep.subr.mxu0 0.0
    %936 = vmatpush2.msra.mxu0 0.0
    %937 = vmatprep.subr.mxu0 0.0
    %938 = vmatpush2.msra.mxu0 0.0
    %939 = vmatprep.subr.mxu0 0.0
    %940 = vmatpush2.msra.mxu0 0.0
    %941 = vmatprep.subr.mxu0 0.0
    %942 = vmatpush2.msra.mxu0 0.0
    %943 = vmatprep.subr.mxu0 0.0
    %944 = vmatpush2.msra.mxu0 0.0
    %945 = vmatprep.subr.mxu0 0.0
    %946 = vmatpush2.msra.mxu0 0.0
    %947 = vmatprep.subr.mxu0 0.0
    %948 = vmatpush2.msra.mxu0 0.0
    %949 = vmatprep.subr.mxu0 0.0
    %950 = vmatpush2.msra.mxu0 0.0
    %951 = vmatprep.subr.mxu0 0.0
    %952 = vmatpush2.msra.mxu0 0.0
    %953 = vmatprep.subr.mxu0 0.0
    %954 = vmatpush2.msra.mxu0 0.0
    %955 = vmatprep.subr.mxu0 0.0
    %956 = vmatpush2.msra.mxu0 0.0
    %957 = vmatprep.mubr.f32.mxu0 0.0
    %958 = vmatmul.mubr.f32.gmra.mxu0 %v891
    %v959 = vpop.f32.mrf.mxu0
    %v960 = vadd.f32 0.0, %v959
    %v961 = vpop.f32.mrf.mxu0
    %962 = vdwg.mxu0
    %963 = vrot.lane.b32.xlu0 %v173, 64
    %v964 = vpop.permute.xlu0 %963
    %v967 = vsel %vm192, %v880, 0
    %969 = vmatprep.subr.mxu0 0.0
    %970 = vmatpush1.msra.mxu0 0.0
    %971 = vmatprep.subr.mxu0 0.0
    %972 = vmatpush1.msra.mxu0 0.0
    %973 = vmatprep.subr.mxu0 0.0
    %974 = vmatpush1.msra.mxu0 0.0
    %975 = vmatprep.subr.mxu0 0.0
    %976 = vmatpush1.msra.mxu0 0.0
    %977 = vmatprep.subr.mxu0 0.0
    %978 = vmatpush1.msra.mxu0 0.0
    %979 = vmatprep.subr.mxu0 0.0
    %980 = vmatpush1.msra.mxu0 0.0
    %981 = vmatprep.subr.mxu0 0.0
    %982 = vmatpush1.msra.mxu0 0.0
    %983 = vmatprep.subr.mxu0 0.0
    %984 = vmatpush1.msra.mxu0 0.0
    %985 = vmatprep.subr.mxu0 0.0
    %986 = vmatpush1.msra.mxu0 0.0
    %987 = vmatprep.subr.mxu0 0.0
    %988 = vmatpush1.msra.mxu0 0.0
    %989 = vmatprep.subr.mxu0 0.0
    %990 = vmatpush1.msra.mxu0 0.0
    %991 = vmatprep.subr.mxu0 0.0
    %992 = vmatpush1.msra.mxu0 0.0
    %993 = vmatprep.subr.mxu0 0.0
    %994 = vmatpush1.msra.mxu0 0.0
    %995 = vmatprep.subr.mxu0 0.0
    %996 = vmatpush1.msra.mxu0 0.0
    %997 = vmatprep.subr.mxu0 0.0
    %998 = vmatpush1.msra.mxu0 0.0
    %999 = vmatprep.subr.mxu0 0.0
    %1000 = vmatpush1.msra.mxu0 %v964
    %1001 = vmatprep.subr.mxu0 0.0
    %1002 = vmatpush2.msra.mxu0 0.0
    %1003 = vmatprep.subr.mxu0 0.0
    %1004 = vmatpush2.msra.mxu0 0.0
    %1005 = vmatprep.subr.mxu0 0.0
    %1006 = vmatpush2.msra.mxu0 0.0
    %1007 = vmatprep.subr.mxu0 0.0
    %1008 = vmatpush2.msra.mxu0 0.0
    %1009 = vmatprep.subr.mxu0 0.0
    %1010 = vmatpush2.msra.mxu0 0.0
    %1011 = vmatprep.subr.mxu0 0.0
    %1012 = vmatpush2.msra.mxu0 0.0
    %1013 = vmatprep.subr.mxu0 0.0
    %1014 = vmatpush2.msra.mxu0 0.0
    %1015 = vmatprep.subr.mxu0 0.0
    %1016 = vmatpush2.msra.mxu0 0.0
    %1017 = vmatprep.subr.mxu0 0.0
    %1018 = vmatpush2.msra.mxu0 0.0
    %1019 = vmatprep.subr.mxu0 0.0
    %1020 = vmatpush2.msra.mxu0 0.0
    %1021 = vmatprep.subr.mxu0 0.0
    %1022 = vmatpush2.msra.mxu0 0.0
    %1023 = vmatprep.subr.mxu0 0.0
    %1024 = vmatpush2.msra.mxu0 0.0
    %1025 = vmatprep.subr.mxu0 0.0
    %1026 = vmatpush2.msra.mxu0 0.0
    %1027 = vmatprep.subr.mxu0 0.0
    %1028 = vmatpush2.msra.mxu0 0.0
    %1029 = vmatprep.subr.mxu0 0.0
    %1030 = vmatpush2.msra.mxu0 0.0
    %1031 = vmatprep.subr.mxu0 0.0
    %1032 = vmatpush2.msra.mxu0 0.0
    %1033 = vmatprep.mubr.f32.mxu0 0.0
    %1034 = vmatmul.mubr.f32.gmra.mxu0 %v967
    %v1035 = vpop.f32.mrf.mxu0
    %v1036 = vadd.f32 0.0, %v1035
    %v1037 = vpop.f32.mrf.mxu0
    %1038 = vdwg.mxu0
    %1039 = vrot.lane.b32.xlu0 %v179, 64
    %v1040 = vpop.permute.xlu0 %1039
    %v1043 = vsel %vm192, %v881, 0
    %1045 = vmatprep.subr.mxu0 0.0
    %1046 = vmatpush1.msra.mxu0 0.0
    %1047 = vmatprep.subr.mxu0 0.0
    %1048 = vmatpush1.msra.mxu0 0.0
    %1049 = vmatprep.subr.mxu0 0.0
    %1050 = vmatpush1.msra.mxu0 0.0
    %1051 = vmatprep.subr.mxu0 0.0
    %1052 = vmatpush1.msra.mxu0 0.0
    %1053 = vmatprep.subr.mxu0 0.0
    %1054 = vmatpush1.msra.mxu0 0.0
    %1055 = vmatprep.subr.mxu0 0.0
    %1056 = vmatpush1.msra.mxu0 0.0
    %1057 = vmatprep.subr.mxu0 0.0
    %1058 = vmatpush1.msra.mxu0 0.0
    %1059 = vmatprep.subr.mxu0 0.0
    %1060 = vmatpush1.msra.mxu0 0.0
    %1061 = vmatprep.subr.mxu0 0.0
    %1062 = vmatpush1.msra.mxu0 0.0
    %1063 = vmatprep.subr.mxu0 0.0
    %1064 = vmatpush1.msra.mxu0 0.0
    %1065 = vmatprep.subr.mxu0 0.0
    %1066 = vmatpush1.msra.mxu0 0.0
    %1067 = vmatprep.subr.mxu0 0.0
    %1068 = vmatpush1.msra.mxu0 0.0
    %1069 = vmatprep.subr.mxu0 0.0
    %1070 = vmatpush1.msra.mxu0 0.0
    %1071 = vmatprep.subr.mxu0 0.0
    %1072 = vmatpush1.msra.mxu0 0.0
    %1073 = vmatprep.subr.mxu0 0.0
    %1074 = vmatpush1.msra.mxu0 0.0
    %1075 = vmatprep.subr.mxu0 0.0
    %1076 = vmatpush1.msra.mxu0 %v1040
    %1077 = vmatprep.subr.mxu0 0.0
    %1078 = vmatpush2.msra.mxu0 0.0
    %1079 = vmatprep.subr.mxu0 0.0
    %1080 = vmatpush2.msra.mxu0 0.0
    %1081 = vmatprep.subr.mxu0 0.0
    %1082 = vmatpush2.msra.mxu0 0.0
    %1083 = vmatprep.subr.mxu0 0.0
    %1084 = vmatpush2.msra.mxu0 0.0
    %1085 = vmatprep.subr.mxu0 0.0
    %1086 = vmatpush2.msra.mxu0 0.0
    %1087 = vmatprep.subr.mxu0 0.0
    %1088 = vmatpush2.msra.mxu0 0.0
    %1089 = vmatprep.subr.mxu0 0.0
    %1090 = vmatpush2.msra.mxu0 0.0
    %1091 = vmatprep.subr.mxu0 0.0
    %1092 = vmatpush2.msra.mxu0 0.0
    %1093 = vmatprep.subr.mxu0 0.0
    %1094 = vmatpush2.msra.mxu0 0.0
    %1095 = vmatprep.subr.mxu0 0.0
    %1096 = vmatpush2.msra.mxu0 0.0
    %1097 = vmatprep.subr.mxu0 0.0
    %1098 = vmatpush2.msra.mxu0 0.0
    %1099 = vmatprep.subr.mxu0 0.0
    %1100 = vmatpush2.msra.mxu0 0.0
    %1101 = vmatprep.subr.mxu0 0.0
    %1102 = vmatpush2.msra.mxu0 0.0
    %1103 = vmatprep.subr.mxu0 0.0
    %1104 = vmatpush2.msra.mxu0 0.0
    %1105 = vmatprep.subr.mxu0 0.0
    %1106 = vmatpush2.msra.mxu0 0.0
    %1107 = vmatprep.subr.mxu0 0.0
    %1108 = vmatpush2.msra.mxu0 0.0
    %1109 = vmatprep.mubr.f32.mxu0 0.0
    %1110 = vmatmul.mubr.f32.gmra.mxu0 %v1043
    %v1111 = vpop.f32.mrf.mxu0
    %v1112 = vadd.f32 0.0, %v1111
    %v1113 = vpop.f32.mrf.mxu0
    %1114 = vdwg.mxu0
    %1115 = vrot.lane.b32.xlu0 %v181, 64
    %v1116 = vpop.permute.xlu0 %1115
    %v1119 = vsel %vm192, %v882, 0
    %1121 = vmatprep.subr.mxu0 0.0
    %1122 = vmatpush1.msra.mxu0 0.0
    %1123 = vmatprep.subr.mxu0 0.0
    %1124 = vmatpush1.msra.mxu0 0.0
    %1125 = vmatprep.subr.mxu0 0.0
    %1126 = vmatpush1.msra.mxu0 0.0
    %1127 = vmatprep.subr.mxu0 0.0
    %1128 = vmatpush1.msra.mxu0 0.0
    %1129 = vmatprep.subr.mxu0 0.0
    %1130 = vmatpush1.msra.mxu0 0.0
    %1131 = vmatprep.subr.mxu0 0.0
    %1132 = vmatpush1.msra.mxu0 0.0
    %1133 = vmatprep.subr.mxu0 0.0
    %1134 = vmatpush1.msra.mxu0 0.0
    %1135 = vmatprep.subr.mxu0 0.0
    %1136 = vmatpush1.msra.mxu0 0.0
    %1137 = vmatprep.subr.mxu0 0.0
    %1138 = vmatpush1.msra.mxu0 0.0
    %1139 = vmatprep.subr.mxu0 0.0
    %1140 = vmatpush1.msra.mxu0 0.0
    %1141 = vmatprep.subr.mxu0 0.0
    %1142 = vmatpush1.msra.mxu0 0.0
    %1143 = vmatprep.subr.mxu0 0.0
    %1144 = vmatpush1.msra.mxu0 0.0
    %1145 = vmatprep.subr.mxu0 0.0
    %1146 = vmatpush1.msra.mxu0 0.0
    %1147 = vmatprep.subr.mxu0 0.0
    %1148 = vmatpush1.msra.mxu0 0.0
    %1149 = vmatprep.subr.mxu0 0.0
    %1150 = vmatpush1.msra.mxu0 0.0
    %1151 = vmatprep.subr.mxu0 0.0
    %1152 = vmatpush1.msra.mxu0 %v1116
    %1153 = vmatprep.subr.mxu0 0.0
    %1154 = vmatpush2.msra.mxu0 0.0
    %1155 = vmatprep.subr.mxu0 0.0
    %1156 = vmatpush2.msra.mxu0 0.0
    %1157 = vmatprep.subr.mxu0 0.0
    %1158 = vmatpush2.msra.mxu0 0.0
    %1159 = vmatprep.subr.mxu0 0.0
    %1160 = vmatpush2.msra.mxu0 0.0
    %1161 = vmatprep.subr.mxu0 0.0
    %1162 = vmatpush2.msra.mxu0 0.0
    %1163 = vmatprep.subr.mxu0 0.0
    %1164 = vmatpush2.msra.mxu0 0.0
    %1165 = vmatprep.subr.mxu0 0.0
    %1166 = vmatpush2.msra.mxu0 0.0
    %1167 = vmatprep.subr.mxu0 0.0
    %1168 = vmatpush2.msra.mxu0 0.0
    %1169 = vmatprep.subr.mxu0 0.0
    %1170 = vmatpush2.msra.mxu0 0.0
    %1171 = vmatprep.subr.mxu0 0.0
    %1172 = vmatpush2.msra.mxu0 0.0
    %1173 = vmatprep.subr.mxu0 0.0
    %1174 = vmatpush2.msra.mxu0 0.0
    %1175 = vmatprep.subr.mxu0 0.0
    %1176 = vmatpush2.msra.mxu0 0.0
    %1177 = vmatprep.subr.mxu0 0.0
    %1178 = vmatpush2.msra.mxu0 0.0
    %1179 = vmatprep.subr.mxu0 0.0
    %1180 = vmatpush2.msra.mxu0 0.0
    %1181 = vmatprep.subr.mxu0 0.0
    %1182 = vmatpush2.msra.mxu0 0.0
    %1183 = vmatprep.subr.mxu0 0.0
    %1184 = vmatpush2.msra.mxu0 0.0
    %1185 = vmatprep.mubr.f32.mxu0 0.0
    %1186 = vmatmul.mubr.f32.gmra.mxu0 %v1119
    %v1187 = vpop.f32.mrf.mxu0
    %v1188 = vadd.f32 0.0, %v1187
    %v1189 = vpop.f32.mrf.mxu0
    %1190 = vdwg.mxu0
    %1191 = vrot.lane.b32.xlu0 %v183, 64
    %v1192 = vpop.permute.xlu0 %1191
    %v1195 = vsel %vm192, %v883, 0
    %1197 = vmatprep.subr.mxu0 0.0
    %1198 = vmatpush1.msra.mxu0 0.0
    %1199 = vmatprep.subr.mxu0 0.0
    %1200 = vmatpush1.msra.mxu0 0.0
    %1201 = vmatprep.subr.mxu0 0.0
    %1202 = vmatpush1.msra.mxu0 0.0
    %1203 = vmatprep.subr.mxu0 0.0
    %1204 = vmatpush1.msra.mxu0 0.0
    %1205 = vmatprep.subr.mxu0 0.0
    %1206 = vmatpush1.msra.mxu0 0.0
    %1207 = vmatprep.subr.mxu0 0.0
    %1208 = vmatpush1.msra.mxu0 0.0
    %1209 = vmatprep.subr.mxu0 0.0
    %1210 = vmatpush1.msra.mxu0 0.0
    %1211 = vmatprep.subr.mxu0 0.0
    %1212 = vmatpush1.msra.mxu0 0.0
    %1213 = vmatprep.subr.mxu0 0.0
    %1214 = vmatpush1.msra.mxu0 0.0
    %1215 = vmatprep.subr.mxu0 0.0
    %1216 = vmatpush1.msra.mxu0 0.0
    %1217 = vmatprep.subr.mxu0 0.0
    %1218 = vmatpush1.msra.mxu0 0.0
    %1219 = vmatprep.subr.mxu0 0.0
    %1220 = vmatpush1.msra.mxu0 0.0
    %1221 = vmatprep.subr.mxu0 0.0
    %1222 = vmatpush1.msra.mxu0 0.0
    %1223 = vmatprep.subr.mxu0 0.0
    %1224 = vmatpush1.msra.mxu0 0.0
    %1225 = vmatprep.subr.mxu0 0.0
    %1226 = vmatpush1.msra.mxu0 0.0
    %1227 = vmatprep.subr.mxu0 0.0
    %1228 = vmatpush1.msra.mxu0 %v1192
    %1229 = vmatprep.subr.mxu0 0.0
    %1230 = vmatpush2.msra.mxu0 0.0
    %1231 = vmatprep.subr.mxu0 0.0
    %1232 = vmatpush2.msra.mxu0 0.0
    %1233 = vmatprep.subr.mxu0 0.0
    %1234 = vmatpush2.msra.mxu0 0.0
    %1235 = vmatprep.subr.mxu0 0.0
    %1236 = vmatpush2.msra.mxu0 0.0
    %1237 = vmatprep.subr.mxu0 0.0
    %1238 = vmatpush2.msra.mxu0 0.0
    %1239 = vmatprep.subr.mxu0 0.0
    %1240 = vmatpush2.msra.mxu0 0.0
    %1241 = vmatprep.subr.mxu0 0.0
    %1242 = vmatpush2.msra.mxu0 0.0
    %1243 = vmatprep.subr.mxu0 0.0
    %1244 = vmatpush2.msra.mxu0 0.0
    %1245 = vmatprep.subr.mxu0 0.0
    %1246 = vmatpush2.msra.mxu0 0.0
    %1247 = vmatprep.subr.mxu0 0.0
    %1248 = vmatpush2.msra.mxu0 0.0
    %1249 = vmatprep.subr.mxu0 0.0
    %1250 = vmatpush2.msra.mxu0 0.0
    %1251 = vmatprep.subr.mxu0 0.0
    %1252 = vmatpush2.msra.mxu0 0.0
    %1253 = vmatprep.subr.mxu0 0.0
    %1254 = vmatpush2.msra.mxu0 0.0
    %1255 = vmatprep.subr.mxu0 0.0
    %1256 = vmatpush2.msra.mxu0 0.0
    %1257 = vmatprep.subr.mxu0 0.0
    %1258 = vmatpush2.msra.mxu0 0.0
    %1259 = vmatprep.subr.mxu0 0.0
    %1260 = vmatpush2.msra.mxu0 0.0
    %1261 = vmatprep.mubr.f32.mxu0 0.0
    %1262 = vmatmul.mubr.f32.gmra.mxu0 %v1195
    %v1263 = vpop.f32.mrf.mxu0
    %v1264 = vadd.f32 0.0, %v1263
    %v1265 = vpop.f32.mrf.mxu0
    %1266 = vdwg.mxu0
    %1267 = vrot.lane.b32.xlu0 %v185, 64
    %v1268 = vpop.permute.xlu0 %1267
    %v1271 = vsel %vm192, %v884, 0
    %1273 = vmatprep.subr.mxu0 0.0
    %1274 = vmatpush1.msra.mxu0 0.0
    %1275 = vmatprep.subr.mxu0 0.0
    %1276 = vmatpush1.msra.mxu0 0.0
    %1277 = vmatprep.subr.mxu0 0.0
    %1278 = vmatpush1.msra.mxu0 0.0
    %1279 = vmatprep.subr.mxu0 0.0
    %1280 = vmatpush1.msra.mxu0 0.0
    %1281 = vmatprep.subr.mxu0 0.0
    %1282 = vmatpush1.msra.mxu0 0.0
    %1283 = vmatprep.subr.mxu0 0.0
    %1284 = vmatpush1.msra.mxu0 0.0
    %1285 = vmatprep.subr.mxu0 0.0
    %1286 = vmatpush1.msra.mxu0 0.0
    %1287 = vmatprep.subr.mxu0 0.0
    %1288 = vmatpush1.msra.mxu0 0.0
    %1289 = vmatprep.subr.mxu0 0.0
    %1290 = vmatpush1.msra.mxu0 0.0
    %1291 = vmatprep.subr.mxu0 0.0
    %1292 = vmatpush1.msra.mxu0 0.0
    %1293 = vmatprep.subr.mxu0 0.0
    %1294 = vmatpush1.msra.mxu0 0.0
    %1295 = vmatprep.subr.mxu0 0.0
    %1296 = vmatpush1.msra.mxu0 0.0
    %1297 = vmatprep.subr.mxu0 0.0
    %1298 = vmatpush1.msra.mxu0 0.0
    %1299 = vmatprep.subr.mxu0 0.0
    %1300 = vmatpush1.msra.mxu0 0.0
    %1301 = vmatprep.subr.mxu0 0.0
    %1302 = vmatpush1.msra.mxu0 0.0
    %1303 = vmatprep.subr.mxu0 0.0
    %1304 = vmatpush1.msra.mxu0 %v1268
    %1305 = vmatprep.subr.mxu0 0.0
    %1306 = vmatpush2.msra.mxu0 0.0
    %1307 = vmatprep.subr.mxu0 0.0
    %1308 = vmatpush2.msra.mxu0 0.0
    %1309 = vmatprep.subr.mxu0 0.0
    %1310 = vmatpush2.msra.mxu0 0.0
    %1311 = vmatprep.subr.mxu0 0.0
    %1312 = vmatpush2.msra.mxu0 0.0
    %1313 = vmatprep.subr.mxu0 0.0
    %1314 = vmatpush2.msra.mxu0 0.0
    %1315 = vmatprep.subr.mxu0 0.0
    %1316 = vmatpush2.msra.mxu0 0.0
    %1317 = vmatprep.subr.mxu0 0.0
    %1318 = vmatpush2.msra.mxu0 0.0
    %1319 = vmatprep.subr.mxu0 0.0
    %1320 = vmatpush2.msra.mxu0 0.0
    %1321 = vmatprep.subr.mxu0 0.0
    %1322 = vmatpush2.msra.mxu0 0.0
    %1323 = vmatprep.subr.mxu0 0.0
    %1324 = vmatpush2.msra.mxu0 0.0
    %1325 = vmatprep.subr.mxu0 0.0
    %1326 = vmatpush2.msra.mxu0 0.0
    %1327 = vmatprep.subr.mxu0 0.0
    %1328 = vmatpush2.msra.mxu0 0.0
    %1329 = vmatprep.subr.mxu0 0.0
    %1330 = vmatpush2.msra.mxu0 0.0
    %1331 = vmatprep.subr.mxu0 0.0
    %1332 = vmatpush2.msra.mxu0 0.0
    %1333 = vmatprep.subr.mxu0 0.0
    %1334 = vmatpush2.msra.mxu0 0.0
    %1335 = vmatprep.subr.mxu0 0.0
    %1336 = vmatpush2.msra.mxu0 0.0
    %1337 = vmatprep.mubr.f32.mxu0 0.0
    %1338 = vmatmul.mubr.f32.gmra.mxu0 %v1271
    %v1339 = vpop.f32.mrf.mxu0
    %v1340 = vadd.f32 0.0, %v1339
    %v1341 = vpop.f32.mrf.mxu0
    %1342 = vdwg.mxu0
    %1343 = vrot.lane.b32.xlu0 %v187, 64
    %v1344 = vpop.permute.xlu0 %1343
    %v1347 = vsel %vm192, %v885, 0
    %1349 = vmatprep.subr.mxu0 0.0
    %1350 = vmatpush1.msra.mxu0 0.0
    %1351 = vmatprep.subr.mxu0 0.0
    %1352 = vmatpush1.msra.mxu0 0.0
    %1353 = vmatprep.subr.mxu0 0.0
    %1354 = vmatpush1.msra.mxu0 0.0
    %1355 = vmatprep.subr.mxu0 0.0
    %1356 = vmatpush1.msra.mxu0 0.0
    %1357 = vmatprep.subr.mxu0 0.0
    %1358 = vmatpush1.msra.mxu0 0.0
    %1359 = vmatprep.subr.mxu0 0.0
    %1360 = vmatpush1.msra.mxu0 0.0
    %1361 = vmatprep.subr.mxu0 0.0
    %1362 = vmatpush1.msra.mxu0 0.0
    %1363 = vmatprep.subr.mxu0 0.0
    %1364 = vmatpush1.msra.mxu0 0.0
    %1365 = vmatprep.subr.mxu0 0.0
    %1366 = vmatpush1.msra.mxu0 0.0
    %1367 = vmatprep.subr.mxu0 0.0
    %1368 = vmatpush1.msra.mxu0 0.0
    %1369 = vmatprep.subr.mxu0 0.0
    %1370 = vmatpush1.msra.mxu0 0.0
    %1371 = vmatprep.subr.mxu0 0.0
    %1372 = vmatpush1.msra.mxu0 0.0
    %1373 = vmatprep.subr.mxu0 0.0
    %1374 = vmatpush1.msra.mxu0 0.0
    %1375 = vmatprep.subr.mxu0 0.0
    %1376 = vmatpush1.msra.mxu0 0.0
    %1377 = vmatprep.subr.mxu0 0.0
    %1378 = vmatpush1.msra.mxu0 0.0
    %1379 = vmatprep.subr.mxu0 0.0
    %1380 = vmatpush1.msra.mxu0 %v1344
    %1381 = vmatprep.subr.mxu0 0.0
    %1382 = vmatpush2.msra.mxu0 0.0
    %1383 = vmatprep.subr.mxu0 0.0
    %1384 = vmatpush2.msra.mxu0 0.0
    %1385 = vmatprep.subr.mxu0 0.0
    %1386 = vmatpush2.msra.mxu0 0.0
    %1387 = vmatprep.subr.mxu0 0.0
    %1388 = vmatpush2.msra.mxu0 0.0
    %1389 = vmatprep.subr.mxu0 0.0
    %1390 = vmatpush2.msra.mxu0 0.0
    %1391 = vmatprep.subr.mxu0 0.0
    %1392 = vmatpush2.msra.mxu0 0.0
    %1393 = vmatprep.subr.mxu0 0.0
    %1394 = vmatpush2.msra.mxu0 0.0
    %1395 = vmatprep.subr.mxu0 0.0
    %1396 = vmatpush2.msra.mxu0 0.0
    %1397 = vmatprep.subr.mxu0 0.0
    %1398 = vmatpush2.msra.mxu0 0.0
    %1399 = vmatprep.subr.mxu0 0.0
    %1400 = vmatpush2.msra.mxu0 0.0
    %1401 = vmatprep.subr.mxu0 0.0
    %1402 = vmatpush2.msra.mxu0 0.0
    %1403 = vmatprep.subr.mxu0 0.0
    %1404 = vmatpush2.msra.mxu0 0.0
    %1405 = vmatprep.subr.mxu0 0.0
    %1406 = vmatpush2.msra.mxu0 0.0
    %1407 = vmatprep.subr.mxu0 0.0
    %1408 = vmatpush2.msra.mxu0 0.0
    %1409 = vmatprep.subr.mxu0 0.0
    %1410 = vmatpush2.msra.mxu0 0.0
    %1411 = vmatprep.subr.mxu0 0.0
    %1412 = vmatpush2.msra.mxu0 0.0
    %1413 = vmatprep.mubr.f32.mxu0 0.0
    %1414 = vmatmul.mubr.f32.gmra.mxu0 %v1347
    %v1415 = vpop.f32.mrf.mxu0
    %v1416 = vadd.f32 0.0, %v1415
    %v1417 = vpop.f32.mrf.mxu0
    %1418 = vdwg.mxu0
    %1419 = vrot.lane.b32.xlu0 %v189, 64
    %v1420 = vpop.permute.xlu0 %1419
    %v1423 = vsel %vm192, %v886, 0
    %1425 = vmatprep.subr.mxu0 0.0
    %1426 = vmatpush1.msra.mxu0 0.0
    %1427 = vmatprep.subr.mxu0 0.0
    %1428 = vmatpush1.msra.mxu0 0.0
    %1429 = vmatprep.subr.mxu0 0.0
    %1430 = vmatpush1.msra.mxu0 0.0
    %1431 = vmatprep.subr.mxu0 0.0
    %1432 = vmatpush1.msra.mxu0 0.0
    %1433 = vmatprep.subr.mxu0 0.0
    %1434 = vmatpush1.msra.mxu0 0.0
    %1435 = vmatprep.subr.mxu0 0.0
    %1436 = vmatpush1.msra.mxu0 0.0
    %1437 = vmatprep.subr.mxu0 0.0
    %1438 = vmatpush1.msra.mxu0 0.0
    %1439 = vmatprep.subr.mxu0 0.0
    %1440 = vmatpush1.msra.mxu0 0.0
    %1441 = vmatprep.subr.mxu0 0.0
    %1442 = vmatpush1.msra.mxu0 0.0
    %1443 = vmatprep.subr.mxu0 0.0
    %1444 = vmatpush1.msra.mxu0 0.0
    %1445 = vmatprep.subr.mxu0 0.0
    %1446 = vmatpush1.msra.mxu0 0.0
    %1447 = vmatprep.subr.mxu0 0.0
    %1448 = vmatpush1.msra.mxu0 0.0
    %1449 = vmatprep.subr.mxu0 0.0
    %1450 = vmatpush1.msra.mxu0 0.0
    %1451 = vmatprep.subr.mxu0 0.0
    %1452 = vmatpush1.msra.mxu0 0.0
    %1453 = vmatprep.subr.mxu0 0.0
    %1454 = vmatpush1.msra.mxu0 0.0
    %1455 = vmatprep.subr.mxu0 0.0
    %1456 = vmatpush1.msra.mxu0 %v1420
    %1457 = vmatprep.subr.mxu0 0.0
    %1458 = vmatpush2.msra.mxu0 0.0
    %1459 = vmatprep.subr.mxu0 0.0
    %1460 = vmatpush2.msra.mxu0 0.0
    %1461 = vmatprep.subr.mxu0 0.0
    %1462 = vmatpush2.msra.mxu0 0.0
    %1463 = vmatprep.subr.mxu0 0.0
    %1464 = vmatpush2.msra.mxu0 0.0
    %1465 = vmatprep.subr.mxu0 0.0
    %1466 = vmatpush2.msra.mxu0 0.0
    %1467 = vmatprep.subr.mxu0 0.0
    %1468 = vmatpush2.msra.mxu0 0.0
    %1469 = vmatprep.subr.mxu0 0.0
    %1470 = vmatpush2.msra.mxu0 0.0
    %1471 = vmatprep.subr.mxu0 0.0
    %1472 = vmatpush2.msra.mxu0 0.0
    %1473 = vmatprep.subr.mxu0 0.0
    %1474 = vmatpush2.msra.mxu0 0.0
    %1475 = vmatprep.subr.mxu0 0.0
    %1476 = vmatpush2.msra.mxu0 0.0
    %1477 = vmatprep.subr.mxu0 0.0
    %1478 = vmatpush2.msra.mxu0 0.0
    %1479 = vmatprep.subr.mxu0 0.0
    %1480 = vmatpush2.msra.mxu0 0.0
    %1481 = vmatprep.subr.mxu0 0.0
    %1482 = vmatpush2.msra.mxu0 0.0
    %1483 = vmatprep.subr.mxu0 0.0
    %1484 = vmatpush2.msra.mxu0 0.0
    %1485 = vmatprep.subr.mxu0 0.0
    %1486 = vmatpush2.msra.mxu0 0.0
    %1487 = vmatprep.subr.mxu0 0.0
    %1488 = vmatpush2.msra.mxu0 0.0
    %1489 = vmatprep.mubr.f32.mxu0 0.0
    %1490 = vmatmul.mubr.f32.gmra.mxu0 %v1423
    %v1491 = vpop.f32.mrf.mxu0
    %v1492 = vadd.f32 0.0, %v1491
    %v1493 = vpop.f32.mrf.mxu0
    %1494 = vdwg.mxu0
    %v1495 = vld [vmem:[%s5] sm:$0xff]
    %v1496 = vld [vmem:[%s5 + $0x8] sm:$0xff]
    %v1497 = vld [vmem:[%s5 + $0x10] sm:$0xff]
    %v1498 = vld [vmem:[%s5 + $0x18] sm:$0xff]
    %v1499 = vld [vmem:[%s5 + $0x20] sm:$0xff]
    %v1500 = vld [vmem:[%s5 + $0x28] sm:$0xff]
    %v1501 = vld [vmem:[%s5 + $0x30] sm:$0xff]
    %v1502 = vld [vmem:[%s5 + $0x38] sm:$0xff]
    %v1504 = vsel %vm192, %v960, 0
    %1506 = vmatprep.subr.mxu0 0.0
    %1507 = vmatpush1.msra.mxu0 0.0
    %1508 = vmatprep.subr.mxu0 0.0
    %1509 = vmatpush1.msra.mxu0 0.0
    %1510 = vmatprep.subr.mxu0 0.0
    %1511 = vmatpush1.msra.mxu0 0.0
    %1512 = vmatprep.subr.mxu0 0.0
    %1513 = vmatpush1.msra.mxu0 0.0
    %1514 = vmatprep.subr.mxu0 0.0
    %1515 = vmatpush1.msra.mxu0 0.0
    %1516 = vmatprep.subr.mxu0 0.0
    %1517 = vmatpush1.msra.mxu0 0.0
    %1518 = vmatprep.subr.mxu0 0.0
    %1519 = vmatpush1.msra.mxu0 0.0
    %1520 = vmatprep.subr.mxu0 0.0
    %1521 = vmatpush1.msra.mxu0 0.0
    %1522 = vmatprep.subr.mxu0 0.0
    %1523 = vmatpush1.msra.mxu0 0.0
    %1524 = vmatprep.subr.mxu0 0.0
    %1525 = vmatpush1.msra.mxu0 0.0
    %1526 = vmatprep.subr.mxu0 0.0
    %1527 = vmatpush1.msra.mxu0 0.0
    %1528 = vmatprep.subr.mxu0 0.0
    %1529 = vmatpush1.msra.mxu0 0.0
    %1530 = vmatprep.subr.mxu0 0.0
    %1531 = vmatpush1.msra.mxu0 0.0
    %1532 = vmatprep.subr.mxu0 0.0
    %1533 = vmatpush1.msra.mxu0 0.0
    %1534 = vmatprep.subr.mxu0 0.0
    %1535 = vmatpush1.msra.mxu0 0.0
    %1536 = vmatprep.subr.mxu0 0.0
    %1537 = vmatpush1.msra.mxu0 %v1495
    %1538 = vmatprep.subr.mxu0 0.0
    %1539 = vmatpush2.msra.mxu0 0.0
    %1540 = vmatprep.subr.mxu0 0.0
    %1541 = vmatpush2.msra.mxu0 0.0
    %1542 = vmatprep.subr.mxu0 0.0
    %1543 = vmatpush2.msra.mxu0 0.0
    %1544 = vmatprep.subr.mxu0 0.0
    %1545 = vmatpush2.msra.mxu0 0.0
    %1546 = vmatprep.subr.mxu0 0.0
    %1547 = vmatpush2.msra.mxu0 0.0
    %1548 = vmatprep.subr.mxu0 0.0
    %1549 = vmatpush2.msra.mxu0 0.0
    %1550 = vmatprep.subr.mxu0 0.0
    %1551 = vmatpush2.msra.mxu0 0.0
    %1552 = vmatprep.subr.mxu0 0.0
    %1553 = vmatpush2.msra.mxu0 0.0
    %1554 = vmatprep.subr.mxu0 0.0
    %1555 = vmatpush2.msra.mxu0 0.0
    %1556 = vmatprep.subr.mxu0 0.0
    %1557 = vmatpush2.msra.mxu0 0.0
    %1558 = vmatprep.subr.mxu0 0.0
    %1559 = vmatpush2.msra.mxu0 0.0
    %1560 = vmatprep.subr.mxu0 0.0
    %1561 = vmatpush2.msra.mxu0 0.0
    %1562 = vmatprep.subr.mxu0 0.0
    %1563 = vmatpush2.msra.mxu0 0.0
    %1564 = vmatprep.subr.mxu0 0.0
    %1565 = vmatpush2.msra.mxu0 0.0
    %1566 = vmatprep.subr.mxu0 0.0
    %1567 = vmatpush2.msra.mxu0 0.0
    %1568 = vmatprep.subr.mxu0 0.0
    %1569 = vmatpush2.msra.mxu0 0.0
    %1570 = vmatprep.mubr.f32.mxu0 0.0
    %1571 = vmatmul.mubr.f32.gmra.mxu0 %v1504
    %v1572 = vpop.f32.mrf.mxu0
    %v1573 = vadd.f32 0.0, %v1572
    %v1574 = vpop.f32.mrf.mxu0
    %1575 = vdwg.mxu0
    %v1577 = vsel %vm192, %v1036, 0
    %1579 = vmatprep.subr.mxu0 0.0
    %1580 = vmatpush1.msra.mxu0 0.0
    %1581 = vmatprep.subr.mxu0 0.0
    %1582 = vmatpush1.msra.mxu0 0.0
    %1583 = vmatprep.subr.mxu0 0.0
    %1584 = vmatpush1.msra.mxu0 0.0
    %1585 = vmatprep.subr.mxu0 0.0
    %1586 = vmatpush1.msra.mxu0 0.0
    %1587 = vmatprep.subr.mxu0 0.0
    %1588 = vmatpush1.msra.mxu0 0.0
    %1589 = vmatprep.subr.mxu0 0.0
    %1590 = vmatpush1.msra.mxu0 0.0
    %1591 = vmatprep.subr.mxu0 0.0
    %1592 = vmatpush1.msra.mxu0 0.0
    %1593 = vmatprep.subr.mxu0 0.0
    %1594 = vmatpush1.msra.mxu0 0.0
    %1595 = vmatprep.subr.mxu0 0.0
    %1596 = vmatpush1.msra.mxu0 0.0
    %1597 = vmatprep.subr.mxu0 0.0
    %1598 = vmatpush1.msra.mxu0 0.0
    %1599 = vmatprep.subr.mxu0 0.0
    %1600 = vmatpush1.msra.mxu0 0.0
    %1601 = vmatprep.subr.mxu0 0.0
    %1602 = vmatpush1.msra.mxu0 0.0
    %1603 = vmatprep.subr.mxu0 0.0
    %1604 = vmatpush1.msra.mxu0 0.0
    %1605 = vmatprep.subr.mxu0 0.0
    %1606 = vmatpush1.msra.mxu0 0.0
    %1607 = vmatprep.subr.mxu0 0.0
    %1608 = vmatpush1.msra.mxu0 0.0
    %1609 = vmatprep.subr.mxu0 0.0
    %1610 = vmatpush1.msra.mxu0 %v1496
    %1611 = vmatprep.subr.mxu0 0.0
    %1612 = vmatpush2.msra.mxu0 0.0
    %1613 = vmatprep.subr.mxu0 0.0
    %1614 = vmatpush2.msra.mxu0 0.0
    %1615 = vmatprep.subr.mxu0 0.0
    %1616 = vmatpush2.msra.mxu0 0.0
    %1617 = vmatprep.subr.mxu0 0.0
    %1618 = vmatpush2.msra.mxu0 0.0
    %1619 = vmatprep.subr.mxu0 0.0
    %1620 = vmatpush2.msra.mxu0 0.0
    %1621 = vmatprep.subr.mxu0 0.0
    %1622 = vmatpush2.msra.mxu0 0.0
    %1623 = vmatprep.subr.mxu0 0.0
    %1624 = vmatpush2.msra.mxu0 0.0
    %1625 = vmatprep.subr.mxu0 0.0
    %1626 = vmatpush2.msra.mxu0 0.0
    %1627 = vmatprep.subr.mxu0 0.0
    %1628 = vmatpush2.msra.mxu0 0.0
    %1629 = vmatprep.subr.mxu0 0.0
    %1630 = vmatpush2.msra.mxu0 0.0
    %1631 = vmatprep.subr.mxu0 0.0
    %1632 = vmatpush2.msra.mxu0 0.0
    %1633 = vmatprep.subr.mxu0 0.0
    %1634 = vmatpush2.msra.mxu0 0.0
    %1635 = vmatprep.subr.mxu0 0.0
    %1636 = vmatpush2.msra.mxu0 0.0
    %1637 = vmatprep.subr.mxu0 0.0
    %1638 = vmatpush2.msra.mxu0 0.0
    %1639 = vmatprep.subr.mxu0 0.0
    %1640 = vmatpush2.msra.mxu0 0.0
    %1641 = vmatprep.subr.mxu0 0.0
    %1642 = vmatpush2.msra.mxu0 0.0
    %1643 = vmatprep.mubr.f32.mxu0 0.0
    %1644 = vmatmul.mubr.f32.gmra.mxu0 %v1577
    %v1645 = vpop.f32.mrf.mxu0
    %v1646 = vadd.f32 0.0, %v1645
    %v1647 = vpop.f32.mrf.mxu0
    %1648 = vdwg.mxu0
    %v1650 = vsel %vm192, %v1112, 0
    %1652 = vmatprep.subr.mxu0 0.0
    %1653 = vmatpush1.msra.mxu0 0.0
    %1654 = vmatprep.subr.mxu0 0.0
    %1655 = vmatpush1.msra.mxu0 0.0
    %1656 = vmatprep.subr.mxu0 0.0
    %1657 = vmatpush1.msra.mxu0 0.0
    %1658 = vmatprep.subr.mxu0 0.0
    %1659 = vmatpush1.msra.mxu0 0.0
    %1660 = vmatprep.subr.mxu0 0.0
    %1661 = vmatpush1.msra.mxu0 0.0
    %1662 = vmatprep.subr.mxu0 0.0
    %1663 = vmatpush1.msra.mxu0 0.0
    %1664 = vmatprep.subr.mxu0 0.0
    %1665 = vmatpush1.msra.mxu0 0.0
    %1666 = vmatprep.subr.mxu0 0.0
    %1667 = vmatpush1.msra.mxu0 0.0
    %1668 = vmatprep.subr.mxu0 0.0
    %1669 = vmatpush1.msra.mxu0 0.0
    %1670 = vmatprep.subr.mxu0 0.0
    %1671 = vmatpush1.msra.mxu0 0.0
    %1672 = vmatprep.subr.mxu0 0.0
    %1673 = vmatpush1.msra.mxu0 0.0
    %1674 = vmatprep.subr.mxu0 0.0
    %1675 = vmatpush1.msra.mxu0 0.0
    %1676 = vmatprep.subr.mxu0 0.0
    %1677 = vmatpush1.msra.mxu0 0.0
    %1678 = vmatprep.subr.mxu0 0.0
    %1679 = vmatpush1.msra.mxu0 0.0
    %1680 = vmatprep.subr.mxu0 0.0
    %1681 = vmatpush1.msra.mxu0 0.0
    %1682 = vmatprep.subr.mxu0 0.0
    %1683 = vmatpush1.msra.mxu0 %v1497
    %1684 = vmatprep.subr.mxu0 0.0
    %1685 = vmatpush2.msra.mxu0 0.0
    %1686 = vmatprep.subr.mxu0 0.0
    %1687 = vmatpush2.msra.mxu0 0.0
    %1688 = vmatprep.subr.mxu0 0.0
    %1689 = vmatpush2.msra.mxu0 0.0
    %1690 = vmatprep.subr.mxu0 0.0
    %1691 = vmatpush2.msra.mxu0 0.0
    %1692 = vmatprep.subr.mxu0 0.0
    %1693 = vmatpush2.msra.mxu0 0.0
    %1694 = vmatprep.subr.mxu0 0.0
    %1695 = vmatpush2.msra.mxu0 0.0
    %1696 = vmatprep.subr.mxu0 0.0
    %1697 = vmatpush2.msra.mxu0 0.0
    %1698 = vmatprep.subr.mxu0 0.0
    %1699 = vmatpush2.msra.mxu0 0.0
    %1700 = vmatprep.subr.mxu0 0.0
    %1701 = vmatpush2.msra.mxu0 0.0
    %1702 = vmatprep.subr.mxu0 0.0
    %1703 = vmatpush2.msra.mxu0 0.0
    %1704 = vmatprep.subr.mxu0 0.0
    %1705 = vmatpush2.msra.mxu0 0.0
    %1706 = vmatprep.subr.mxu0 0.0
    %1707 = vmatpush2.msra.mxu0 0.0
    %1708 = vmatprep.subr.mxu0 0.0
    %1709 = vmatpush2.msra.mxu0 0.0
    %1710 = vmatprep.subr.mxu0 0.0
    %1711 = vmatpush2.msra.mxu0 0.0
    %1712 = vmatprep.subr.mxu0 0.0
    %1713 = vmatpush2.msra.mxu0 0.0
    %1714 = vmatprep.subr.mxu0 0.0
    %1715 = vmatpush2.msra.mxu0 0.0
    %1716 = vmatprep.mubr.f32.mxu0 0.0
    %1717 = vmatmul.mubr.f32.gmra.mxu0 %v1650
    %v1718 = vpop.f32.mrf.mxu0
    %v1719 = vadd.f32 0.0, %v1718
    %v1720 = vpop.f32.mrf.mxu0
    %1721 = vdwg.mxu0
    %v1723 = vsel %vm192, %v1188, 0
    %1725 = vmatprep.subr.mxu0 0.0
    %1726 = vmatpush1.msra.mxu0 0.0
    %1727 = vmatprep.subr.mxu0 0.0
    %1728 = vmatpush1.msra.mxu0 0.0
    %1729 = vmatprep.subr.mxu0 0.0
    %1730 = vmatpush1.msra.mxu0 0.0
    %1731 = vmatprep.subr.mxu0 0.0
    %1732 = vmatpush1.msra.mxu0 0.0
    %1733 = vmatprep.subr.mxu0 0.0
    %1734 = vmatpush1.msra.mxu0 0.0
    %1735 = vmatprep.subr.mxu0 0.0
    %1736 = vmatpush1.msra.mxu0 0.0
    %1737 = vmatprep.subr.mxu0 0.0
    %1738 = vmatpush1.msra.mxu0 0.0
    %1739 = vmatprep.subr.mxu0 0.0
    %1740 = vmatpush1.msra.mxu0 0.0
    %1741 = vmatprep.subr.mxu0 0.0
    %1742 = vmatpush1.msra.mxu0 0.0
    %1743 = vmatprep.subr.mxu0 0.0
    %1744 = vmatpush1.msra.mxu0 0.0
    %1745 = vmatprep.subr.mxu0 0.0
    %1746 = vmatpush1.msra.mxu0 0.0
    %1747 = vmatprep.subr.mxu0 0.0
    %1748 = vmatpush1.msra.mxu0 0.0
    %1749 = vmatprep.subr.mxu0 0.0
    %1750 = vmatpush1.msra.mxu0 0.0
    %1751 = vmatprep.subr.mxu0 0.0
    %1752 = vmatpush1.msra.mxu0 0.0
    %1753 = vmatprep.subr.mxu0 0.0
    %1754 = vmatpush1.msra.mxu0 0.0
    %1755 = vmatprep.subr.mxu0 0.0
    %1756 = vmatpush1.msra.mxu0 %v1498
    %1757 = vmatprep.subr.mxu0 0.0
    %1758 = vmatpush2.msra.mxu0 0.0
    %1759 = vmatprep.subr.mxu0 0.0
    %1760 = vmatpush2.msra.mxu0 0.0
    %1761 = vmatprep.subr.mxu0 0.0
    %1762 = vmatpush2.msra.mxu0 0.0
    %1763 = vmatprep.subr.mxu0 0.0
    %1764 = vmatpush2.msra.mxu0 0.0
    %1765 = vmatprep.subr.mxu0 0.0
    %1766 = vmatpush2.msra.mxu0 0.0
    %1767 = vmatprep.subr.mxu0 0.0
    %1768 = vmatpush2.msra.mxu0 0.0
    %1769 = vmatprep.subr.mxu0 0.0
    %1770 = vmatpush2.msra.mxu0 0.0
    %1771 = vmatprep.subr.mxu0 0.0
    %1772 = vmatpush2.msra.mxu0 0.0
    %1773 = vmatprep.subr.mxu0 0.0
    %1774 = vmatpush2.msra.mxu0 0.0
    %1775 = vmatprep.subr.mxu0 0.0
    %1776 = vmatpush2.msra.mxu0 0.0
    %1777 = vmatprep.subr.mxu0 0.0
    %1778 = vmatpush2.msra.mxu0 0.0
    %1779 = vmatprep.subr.mxu0 0.0
    %1780 = vmatpush2.msra.mxu0 0.0
    %1781 = vmatprep.subr.mxu0 0.0
    %1782 = vmatpush2.msra.mxu0 0.0
    %1783 = vmatprep.subr.mxu0 0.0
    %1784 = vmatpush2.msra.mxu0 0.0
    %1785 = vmatprep.subr.mxu0 0.0
    %1786 = vmatpush2.msra.mxu0 0.0
    %1787 = vmatprep.subr.mxu0 0.0
    %1788 = vmatpush2.msra.mxu0 0.0
    %1789 = vmatprep.mubr.f32.mxu0 0.0
    %1790 = vmatmul.mubr.f32.gmra.mxu0 %v1723
    %v1791 = vpop.f32.mrf.mxu0
    %v1792 = vadd.f32 0.0, %v1791
    %v1793 = vpop.f32.mrf.mxu0
    %1794 = vdwg.mxu0
    %v1796 = vsel %vm192, %v1264, 0
    %1798 = vmatprep.subr.mxu0 0.0
    %1799 = vmatpush1.msra.mxu0 0.0
    %1800 = vmatprep.subr.mxu0 0.0
    %1801 = vmatpush1.msra.mxu0 0.0
    %1802 = vmatprep.subr.mxu0 0.0
    %1803 = vmatpush1.msra.mxu0 0.0
    %1804 = vmatprep.subr.mxu0 0.0
    %1805 = vmatpush1.msra.mxu0 0.0
    %1806 = vmatprep.subr.mxu0 0.0
    %1807 = vmatpush1.msra.mxu0 0.0
    %1808 = vmatprep.subr.mxu0 0.0
    %1809 = vmatpush1.msra.mxu0 0.0
    %1810 = vmatprep.subr.mxu0 0.0
    %1811 = vmatpush1.msra.mxu0 0.0
    %1812 = vmatprep.subr.mxu0 0.0
    %1813 = vmatpush1.msra.mxu0 0.0
    %1814 = vmatprep.subr.mxu0 0.0
    %1815 = vmatpush1.msra.mxu0 0.0
    %1816 = vmatprep.subr.mxu0 0.0
    %1817 = vmatpush1.msra.mxu0 0.0
    %1818 = vmatprep.subr.mxu0 0.0
    %1819 = vmatpush1.msra.mxu0 0.0
    %1820 = vmatprep.subr.mxu0 0.0
    %1821 = vmatpush1.msra.mxu0 0.0
    %1822 = vmatprep.subr.mxu0 0.0
    %1823 = vmatpush1.msra.mxu0 0.0
    %1824 = vmatprep.subr.mxu0 0.0
    %1825 = vmatpush1.msra.mxu0 0.0
    %1826 = vmatprep.subr.mxu0 0.0
    %1827 = vmatpush1.msra.mxu0 0.0
    %1828 = vmatprep.subr.mxu0 0.0
    %1829 = vmatpush1.msra.mxu0 %v1499
    %1830 = vmatprep.subr.mxu0 0.0
    %1831 = vmatpush2.msra.mxu0 0.0
    %1832 = vmatprep.subr.mxu0 0.0
    %1833 = vmatpush2.msra.mxu0 0.0
    %1834 = vmatprep.subr.mxu0 0.0
    %1835 = vmatpush2.msra.mxu0 0.0
    %1836 = vmatprep.subr.mxu0 0.0
    %1837 = vmatpush2.msra.mxu0 0.0
    %1838 = vmatprep.subr.mxu0 0.0
    %1839 = vmatpush2.msra.mxu0 0.0
    %1840 = vmatprep.subr.mxu0 0.0
    %1841 = vmatpush2.msra.mxu0 0.0
    %1842 = vmatprep.subr.mxu0 0.0
    %1843 = vmatpush2.msra.mxu0 0.0
    %1844 = vmatprep.subr.mxu0 0.0
    %1845 = vmatpush2.msra.mxu0 0.0
    %1846 = vmatprep.subr.mxu0 0.0
    %1847 = vmatpush2.msra.mxu0 0.0
    %1848 = vmatprep.subr.mxu0 0.0
    %1849 = vmatpush2.msra.mxu0 0.0
    %1850 = vmatprep.subr.mxu0 0.0
    %1851 = vmatpush2.msra.mxu0 0.0
    %1852 = vmatprep.subr.mxu0 0.0
    %1853 = vmatpush2.msra.mxu0 0.0
    %1854 = vmatprep.subr.mxu0 0.0
    %1855 = vmatpush2.msra.mxu0 0.0
    %1856 = vmatprep.subr.mxu0 0.0
    %1857 = vmatpush2.msra.mxu0 0.0
    %1858 = vmatprep.subr.mxu0 0.0
    %1859 = vmatpush2.msra.mxu0 0.0
    %1860 = vmatprep.subr.mxu0 0.0
    %1861 = vmatpush2.msra.mxu0 0.0
    %1862 = vmatprep.mubr.f32.mxu0 0.0
    %1863 = vmatmul.mubr.f32.gmra.mxu0 %v1796
    %v1864 = vpop.f32.mrf.mxu0
    %v1865 = vadd.f32 0.0, %v1864
    %v1866 = vpop.f32.mrf.mxu0
    %1867 = vdwg.mxu0
    %v1869 = vsel %vm192, %v1340, 0
    %1871 = vmatprep.subr.mxu0 0.0
    %1872 = vmatpush1.msra.mxu0 0.0
    %1873 = vmatprep.subr.mxu0 0.0
    %1874 = vmatpush1.msra.mxu0 0.0
    %1875 = vmatprep.subr.mxu0 0.0
    %1876 = vmatpush1.msra.mxu0 0.0
    %1877 = vmatprep.subr.mxu0 0.0
    %1878 = vmatpush1.msra.mxu0 0.0
    %1879 = vmatprep.subr.mxu0 0.0
    %1880 = vmatpush1.msra.mxu0 0.0
    %1881 = vmatprep.subr.mxu0 0.0
    %1882 = vmatpush1.msra.mxu0 0.0
    %1883 = vmatprep.subr.mxu0 0.0
    %1884 = vmatpush1.msra.mxu0 0.0
    %1885 = vmatprep.subr.mxu0 0.0
    %1886 = vmatpush1.msra.mxu0 0.0
    %1887 = vmatprep.subr.mxu0 0.0
    %1888 = vmatpush1.msra.mxu0 0.0
    %1889 = vmatprep.subr.mxu0 0.0
    %1890 = vmatpush1.msra.mxu0 0.0
    %1891 = vmatprep.subr.mxu0 0.0
    %1892 = vmatpush1.msra.mxu0 0.0
    %1893 = vmatprep.subr.mxu0 0.0
    %1894 = vmatpush1.msra.mxu0 0.0
    %1895 = vmatprep.subr.mxu0 0.0
    %1896 = vmatpush1.msra.mxu0 0.0
    %1897 = vmatprep.subr.mxu0 0.0
    %1898 = vmatpush1.msra.mxu0 0.0
    %1899 = vmatprep.subr.mxu0 0.0
    %1900 = vmatpush1.msra.mxu0 0.0
    %1901 = vmatprep.subr.mxu0 0.0
    %1902 = vmatpush1.msra.mxu0 %v1500
    %1903 = vmatprep.subr.mxu0 0.0
    %1904 = vmatpush2.msra.mxu0 0.0
    %1905 = vmatprep.subr.mxu0 0.0
    %1906 = vmatpush2.msra.mxu0 0.0
    %1907 = vmatprep.subr.mxu0 0.0
    %1908 = vmatpush2.msra.mxu0 0.0
    %1909 = vmatprep.subr.mxu0 0.0
    %1910 = vmatpush2.msra.mxu0 0.0
    %1911 = vmatprep.subr.mxu0 0.0
    %1912 = vmatpush2.msra.mxu0 0.0
    %1913 = vmatprep.subr.mxu0 0.0
    %1914 = vmatpush2.msra.mxu0 0.0
    %1915 = vmatprep.subr.mxu0 0.0
    %1916 = vmatpush2.msra.mxu0 0.0
    %1917 = vmatprep.subr.mxu0 0.0
    %1918 = vmatpush2.msra.mxu0 0.0
    %1919 = vmatprep.subr.mxu0 0.0
    %1920 = vmatpush2.msra.mxu0 0.0
    %1921 = vmatprep.subr.mxu0 0.0
    %1922 = vmatpush2.msra.mxu0 0.0
    %1923 = vmatprep.subr.mxu0 0.0
    %1924 = vmatpush2.msra.mxu0 0.0
    %1925 = vmatprep.subr.mxu0 0.0
    %1926 = vmatpush2.msra.mxu0 0.0
    %1927 = vmatprep.subr.mxu0 0.0
    %1928 = vmatpush2.msra.mxu0 0.0
    %1929 = vmatprep.subr.mxu0 0.0
    %1930 = vmatpush2.msra.mxu0 0.0
    %1931 = vmatprep.subr.mxu0 0.0
    %1932 = vmatpush2.msra.mxu0 0.0
    %1933 = vmatprep.subr.mxu0 0.0
    %1934 = vmatpush2.msra.mxu0 0.0
    %1935 = vmatprep.mubr.f32.mxu0 0.0
    %1936 = vmatmul.mubr.f32.gmra.mxu0 %v1869
    %v1937 = vpop.f32.mrf.mxu0
    %v1938 = vadd.f32 0.0, %v1937
    %v1939 = vpop.f32.mrf.mxu0
    %1940 = vdwg.mxu0
    %v1942 = vsel %vm192, %v1416, 0
    %1944 = vmatprep.subr.mxu0 0.0
    %1945 = vmatpush1.msra.mxu0 0.0
    %1946 = vmatprep.subr.mxu0 0.0
    %1947 = vmatpush1.msra.mxu0 0.0
    %1948 = vmatprep.subr.mxu0 0.0
    %1949 = vmatpush1.msra.mxu0 0.0
    %1950 = vmatprep.subr.mxu0 0.0
    %1951 = vmatpush1.msra.mxu0 0.0
    %1952 = vmatprep.subr.mxu0 0.0
    %1953 = vmatpush1.msra.mxu0 0.0
    %1954 = vmatprep.subr.mxu0 0.0
    %1955 = vmatpush1.msra.mxu0 0.0
    %1956 = vmatprep.subr.mxu0 0.0
    %1957 = vmatpush1.msra.mxu0 0.0
    %1958 = vmatprep.subr.mxu0 0.0
    %1959 = vmatpush1.msra.mxu0 0.0
    %1960 = vmatprep.subr.mxu0 0.0
    %1961 = vmatpush1.msra.mxu0 0.0
    %1962 = vmatprep.subr.mxu0 0.0
    %1963 = vmatpush1.msra.mxu0 0.0
    %1964 = vmatprep.subr.mxu0 0.0
    %1965 = vmatpush1.msra.mxu0 0.0
    %1966 = vmatprep.subr.mxu0 0.0
    %1967 = vmatpush1.msra.mxu0 0.0
    %1968 = vmatprep.subr.mxu0 0.0
    %1969 = vmatpush1.msra.mxu0 0.0
    %1970 = vmatprep.subr.mxu0 0.0
    %1971 = vmatpush1.msra.mxu0 0.0
    %1972 = vmatprep.subr.mxu0 0.0
    %1973 = vmatpush1.msra.mxu0 0.0
    %1974 = vmatprep.subr.mxu0 0.0
    %1975 = vmatpush1.msra.mxu0 %v1501
    %1976 = vmatprep.subr.mxu0 0.0
    %1977 = vmatpush2.msra.mxu0 0.0
    %1978 = vmatprep.subr.mxu0 0.0
    %1979 = vmatpush2.msra.mxu0 0.0
    %1980 = vmatprep.subr.mxu0 0.0
    %1981 = vmatpush2.msra.mxu0 0.0
    %1982 = vmatprep.subr.mxu0 0.0
    %1983 = vmatpush2.msra.mxu0 0.0
    %1984 = vmatprep.subr.mxu0 0.0
    %1985 = vmatpush2.msra.mxu0 0.0
    %1986 = vmatprep.subr.mxu0 0.0
    %1987 = vmatpush2.msra.mxu0 0.0
    %1988 = vmatprep.subr.mxu0 0.0
    %1989 = vmatpush2.msra.mxu0 0.0
    %1990 = vmatprep.subr.mxu0 0.0
    %1991 = vmatpush2.msra.mxu0 0.0
    %1992 = vmatprep.subr.mxu0 0.0
    %1993 = vmatpush2.msra.mxu0 0.0
    %1994 = vmatprep.subr.mxu0 0.0
    %1995 = vmatpush2.msra.mxu0 0.0
    %1996 = vmatprep.subr.mxu0 0.0
    %1997 = vmatpush2.msra.mxu0 0.0
    %1998 = vmatprep.subr.mxu0 0.0
    %1999 = vmatpush2.msra.mxu0 0.0
    %2000 = vmatprep.subr.mxu0 0.0
    %2001 = vmatpush2.msra.mxu0 0.0
    %2002 = vmatprep.subr.mxu0 0.0
    %2003 = vmatpush2.msra.mxu0 0.0
    %2004 = vmatprep.subr.mxu0 0.0
    %2005 = vmatpush2.msra.mxu0 0.0
    %2006 = vmatprep.subr.mxu0 0.0
    %2007 = vmatpush2.msra.mxu0 0.0
    %2008 = vmatprep.mubr.f32.mxu0 0.0
    %2009 = vmatmul.mubr.f32.gmra.mxu0 %v1942
    %v2010 = vpop.f32.mrf.mxu0
    %v2011 = vadd.f32 0.0, %v2010
    %v2012 = vpop.f32.mrf.mxu0
    %2013 = vdwg.mxu0
    %v2015 = vsel %vm192, %v1492, 0
    %2017 = vmatprep.subr.mxu0 0.0
    %2018 = vmatpush1.msra.mxu0 0.0
    %2019 = vmatprep.subr.mxu0 0.0
    %2020 = vmatpush1.msra.mxu0 0.0
    %2021 = vmatprep.subr.mxu0 0.0
    %2022 = vmatpush1.msra.mxu0 0.0
    %2023 = vmatprep.subr.mxu0 0.0
    %2024 = vmatpush1.msra.mxu0 0.0
    %2025 = vmatprep.subr.mxu0 0.0
    %2026 = vmatpush1.msra.mxu0 0.0
    %2027 = vmatprep.subr.mxu0 0.0
    %2028 = vmatpush1.msra.mxu0 0.0
    %2029 = vmatprep.subr.mxu0 0.0
    %2030 = vmatpush1.msra.mxu0 0.0
    %2031 = vmatprep.subr.mxu0 0.0
    %2032 = vmatpush1.msra.mxu0 0.0
    %2033 = vmatprep.subr.mxu0 0.0
    %2034 = vmatpush1.msra.mxu0 0.0
    %2035 = vmatprep.subr.mxu0 0.0
    %2036 = vmatpush1.msra.mxu0 0.0
    %2037 = vmatprep.subr.mxu0 0.0
    %2038 = vmatpush1.msra.mxu0 0.0
    %2039 = vmatprep.subr.mxu0 0.0
    %2040 = vmatpush1.msra.mxu0 0.0
    %2041 = vmatprep.subr.mxu0 0.0
    %2042 = vmatpush1.msra.mxu0 0.0
    %2043 = vmatprep.subr.mxu0 0.0
    %2044 = vmatpush1.msra.mxu0 0.0
    %2045 = vmatprep.subr.mxu0 0.0
    %2046 = vmatpush1.msra.mxu0 0.0
    %2047 = vmatprep.subr.mxu0 0.0
    %2048 = vmatpush1.msra.mxu0 %v1502
    %2049 = vmatprep.subr.mxu0 0.0
    %2050 = vmatpush2.msra.mxu0 0.0
    %2051 = vmatprep.subr.mxu0 0.0
    %2052 = vmatpush2.msra.mxu0 0.0
    %2053 = vmatprep.subr.mxu0 0.0
    %2054 = vmatpush2.msra.mxu0 0.0
    %2055 = vmatprep.subr.mxu0 0.0
    %2056 = vmatpush2.msra.mxu0 0.0
    %2057 = vmatprep.subr.mxu0 0.0
    %2058 = vmatpush2.msra.mxu0 0.0
    %2059 = vmatprep.subr.mxu0 0.0
    %2060 = vmatpush2.msra.mxu0 0.0
    %2061 = vmatprep.subr.mxu0 0.0
    %2062 = vmatpush2.msra.mxu0 0.0
    %2063 = vmatprep.subr.mxu0 0.0
    %2064 = vmatpush2.msra.mxu0 0.0
    %2065 = vmatprep.subr.mxu0 0.0
    %2066 = vmatpush2.msra.mxu0 0.0
    %2067 = vmatprep.subr.mxu0 0.0
    %2068 = vmatpush2.msra.mxu0 0.0
    %2069 = vmatprep.subr.mxu0 0.0
    %2070 = vmatpush2.msra.mxu0 0.0
    %2071 = vmatprep.subr.mxu0 0.0
    %2072 = vmatpush2.msra.mxu0 0.0
    %2073 = vmatprep.subr.mxu0 0.0
    %2074 = vmatpush2.msra.mxu0 0.0
    %2075 = vmatprep.subr.mxu0 0.0
    %2076 = vmatpush2.msra.mxu0 0.0
    %2077 = vmatprep.subr.mxu0 0.0
    %2078 = vmatpush2.msra.mxu0 0.0
    %2079 = vmatprep.subr.mxu0 0.0
    %2080 = vmatpush2.msra.mxu0 0.0
    %2081 = vmatprep.mubr.f32.mxu0 0.0
    %2082 = vmatmul.mubr.f32.gmra.mxu0 %v2015
    %v2083 = vpop.f32.mrf.mxu0
    %v2084 = vadd.f32 0.0, %v2083
    %v2085 = vpop.f32.mrf.mxu0
    %2086 = vdwg.mxu0
    %v2087 = vsel %vm94, %v1573, 0.0
    %v2088 = vsel %vm94, %v1719, 0.0
    %v2089 = vadd.f32 %v2087, %v2088
    %v2090 = vsel %vm94, %v1865, 0.0
    %v2091 = vadd.f32 %v2089, %v2090
    %v2092 = vsel %vm94, %v2011, 0.0
    %v2093 = vadd.f32 %v2091, %v2092
    %v2094 = vsel %vm94, %v1646, 0.0
    %v2095 = vsel %vm94, %v1792, 0.0
    %v2096 = vadd.f32 %v2094, %v2095
    %v2097 = vsel %vm94, %v1938, 0.0
    %v2098 = vadd.f32 %v2096, %v2097
    %v2099 = vsel %vm94, %v2084, 0.0
    %v2100 = vadd.f32 %v2098, %v2099
    %v2101 = vld [vmem:[%s6] sm:$0x1]
    %v2103 = vlaneseq
    %v2104 = vshrl.u32 %v2103, 7
    %v2105 = vsub.s32 0, %v2104
    %v2106 = vrot.slane %v2101, %v2105
    %v2108 = vadd.f32 %v2093, %v2106
    %v2109 = vadd.f32 %v2100, %v2106
    %v2110 = vadd.f32 %v2108, %v71
    %v2111 = vadd.f32 %v2109, %v72
    %v2112 = vld [vmem:[%s7] sm:$0x1]
    %v2113 = vld [vmem:[%s8] sm:$0x1]
    %v2114 = vsel %vm94, %v2110, 0.0
    %2115 = vadd.xlane.f32.xlu0 %v2114
    %v2116 = vpop.xlane.xlu0 %2115
    %v2117 = vsel %vm94, %v2111, 0.0
    %2118 = vadd.xlane.f32.xlu0 %v2117
    %v2119 = vpop.xlane.xlu0 %2118
    %v2120 = vrcp.pop 32.0
    %v2121 = vmul.f32 %v2116, %v2120
    %v2122 = vmul.f32 %v2119, %v2120
    %v2123 = vsub.f32 %v2110, %v2121
    %v2124 = vsub.f32 %v2111, %v2122
    %v2125 = vmul.f32 %v2123, %v2123
    %v2126 = vmul.f32 %v2124, %v2124
    %v2127 = vsel %vm94, %v2125, 0.0
    %2128 = vadd.xlane.f32.xlu0 %v2127
    %v2129 = vpop.xlane.xlu0 %2128
    %v2130 = vsel %vm94, %v2126, 0.0
    %2131 = vadd.xlane.f32.xlu0 %v2130
    %v2132 = vpop.xlane.xlu0 %2131
    %v2133 = vmul.f32 %v2129, %v2120
    %v2134 = vmul.f32 %v2132, %v2120
    %v2135 = vadd.f32 %v2133, 1e-05
    %v2136 = vadd.f32 %v2134, 1e-05
    %v2137 = vrsqrt.pop %v2135
    %v2138 = vrsqrt.pop %v2136
    %v2139 = vmul.f32 %v2123, %v2137
    %v2140 = vmul.f32 %v2124, %v2138
    %v2142 = vlaneseq
    %v2143 = vshrl.u32 %v2142, 7
    %v2144 = vsub.s32 0, %v2143
    %v2145 = vrot.slane %v2112, %v2144
    %v2147 = vmul.f32 %v2139, %v2145
    %v2148 = vmul.f32 %v2140, %v2145
    %v2150 = vlaneseq
    %v2151 = vshrl.u32 %v2150, 7
    %v2152 = vsub.s32 0, %v2151
    %v2153 = vrot.slane %v2113, %v2152
    %v2155 = vadd.f32 %v2147, %v2153
    %v2156 = vadd.f32 %v2148, %v2153
    %2158 = vset.pattern.permute.xlu0 0
    %2159 = vperm.xlu0 %2158, %v73
    %v2160 = vpop.permute.xlu0 %2159
    %2163 = vset.pattern.permute.xlu0 0
    %2164 = vperm.xlu0 %2163, %v74
    %v2165 = vpop.permute.xlu0 %2164
    %v2167 = vmul.f32 %v2155, %v2160
    %v2168 = vmul.f32 %v2156, %v2165
    %v2169 = vld [vmem:[%s9] sm:$0xff]
    %v2170 = vld [vmem:[%s9 + $0x8] sm:$0xff]
    %v2171 = vld [vmem:[%s9 + $0x10] sm:$0xff]
    %v2172 = vld [vmem:[%s9 + $0x18] sm:$0xff]
    %v2173 = vld [vmem:[%s10] sm:$0x1]
    %v2175 = vlaneseq
    %v2176 = vshrl.u32 %v2175, 7
    %v2177 = vsub.s32 0, %v2176
    %v2178 = vrot.slane %v2173, %v2177
    %v2181 = vsel %vm94, %v2167, 0
    %v2184 = vsel %vm94, %v2168, 0
    %2186 = vmatprep.subr.mxu0 0.0
    %2187 = vmatpush1.msra.mxu0 0.0
    %2188 = vmatprep.subr.mxu0 0.0
    %2189 = vmatpush1.msra.mxu0 0.0
    %2190 = vmatprep.subr.mxu0 0.0
    %2191 = vmatpush1.msra.mxu0 0.0
    %2192 = vmatprep.subr.mxu0 0.0
    %2193 = vmatpush1.msra.mxu0 0.0
    %2194 = vmatprep.subr.mxu0 0.0
    %2195 = vmatpush1.msra.mxu0 0.0
    %2196 = vmatprep.subr.mxu0 0.0
    %2197 = vmatpush1.msra.mxu0 0.0
    %2198 = vmatprep.subr.mxu0 0.0
    %2199 = vmatpush1.msra.mxu0 0.0
    %2200 = vmatprep.subr.mxu0 0.0
    %2201 = vmatpush1.msra.mxu0 0.0
    %2202 = vmatprep.subr.mxu0 0.0
    %2203 = vmatpush1.msra.mxu0 0.0
    %2204 = vmatprep.subr.mxu0 0.0
    %2205 = vmatpush1.msra.mxu0 0.0
    %2206 = vmatprep.subr.mxu0 0.0
    %2207 = vmatpush1.msra.mxu0 0.0
    %2208 = vmatprep.subr.mxu0 0.0
    %2209 = vmatpush1.msra.mxu0 0.0
    %2210 = vmatprep.subr.mxu0 0.0
    %2211 = vmatpush1.msra.mxu0 %v2172
    %2212 = vmatprep.subr.mxu0 0.0
    %2213 = vmatpush1.msra.mxu0 %v2171
    %2214 = vmatprep.subr.mxu0 0.0
    %2215 = vmatpush1.msra.mxu0 %v2170
    %2216 = vmatprep.subr.mxu0 0.0
    %2217 = vmatpush1.msra.mxu0 %v2169
    %2218 = vmatprep.subr.mxu0 0.0
    %2219 = vmatpush2.msra.mxu0 0.0
    %2220 = vmatprep.subr.mxu0 0.0
    %2221 = vmatpush2.msra.mxu0 0.0
    %2222 = vmatprep.subr.mxu0 0.0
    %2223 = vmatpush2.msra.mxu0 0.0
    %2224 = vmatprep.subr.mxu0 0.0
    %2225 = vmatpush2.msra.mxu0 0.0
    %2226 = vmatprep.subr.mxu0 0.0
    %2227 = vmatpush2.msra.mxu0 0.0
    %2228 = vmatprep.subr.mxu0 0.0
    %2229 = vmatpush2.msra.mxu0 0.0
    %2230 = vmatprep.subr.mxu0 0.0
    %2231 = vmatpush2.msra.mxu0 0.0
    %2232 = vmatprep.subr.mxu0 0.0
    %2233 = vmatpush2.msra.mxu0 0.0
    %2234 = vmatprep.subr.mxu0 0.0
    %2235 = vmatpush2.msra.mxu0 0.0
    %2236 = vmatprep.subr.mxu0 0.0
    %2237 = vmatpush2.msra.mxu0 0.0
    %2238 = vmatprep.subr.mxu0 0.0
    %2239 = vmatpush2.msra.mxu0 0.0
    %2240 = vmatprep.subr.mxu0 0.0
    %2241 = vmatpush2.msra.mxu0 0.0
    %2242 = vmatprep.subr.mxu0 0.0
    %2243 = vmatpush2.msra.mxu0 0.0
    %2244 = vmatprep.subr.mxu0 0.0
    %2245 = vmatpush2.msra.mxu0 0.0
    %2246 = vmatprep.subr.mxu0 0.0
    %2247 = vmatpush2.msra.mxu0 0.0
    %2248 = vmatprep.subr.mxu0 0.0
    %2249 = vmatpush2.msra.mxu0 0.0
    %2250 = vmatprep.mubr.f32.mxu0 0.0
    %2251 = vmatmul.mubr.f32.gmra.mxu0 %v2181
    %v2252 = vpop.f32.mrf.mxu0
    %v2253 = vadd.f32 %v2178, %v2252
    %v2254 = vpop.f32.mrf.mxu0
    %2255 = vmatprep.mubr.f32.mxu0 0.0
    %2256 = vmatmul.mubr.f32.gmra.mxu0 %v2184
    %v2257 = vpop.f32.mrf.mxu0
    %v2258 = vadd.f32 %v2178, %v2257
    %v2259 = vpop.f32.mrf.mxu0
    %2260 = vdwg.mxu0
    %v2261 = vmax.f32 %v2253, 0.0
    %v2262 = vmax.f32 %v2258, 0.0
    %v2263 = vld [vmem:[%s11] sm:$0xff]
    %v2264 = vld [vmem:[%s11 + $0x8] sm:$0xff]
    %v2265 = vld [vmem:[%s11 + $0x10] sm:$0xff]
    %v2266 = vld [vmem:[%s11 + $0x18] sm:$0xff]
    %v2267 = vld [vmem:[%s11 + $0x20] sm:$0xff]
    %v2268 = vld [vmem:[%s11 + $0x28] sm:$0xff]
    %v2269 = vld [vmem:[%s11 + $0x30] sm:$0xff]
    %v2270 = vld [vmem:[%s11 + $0x38] sm:$0xff]
    %v2271 = vld [vmem:[%s12] sm:$0x1]
    %v2273 = vlaneseq
    %v2274 = vshrl.u32 %v2273, 7
    %v2275 = vsub.s32 0, %v2274
    %v2276 = vrot.slane %v2271, %v2275
    %vm2278 = vcmask 523264
    %v2280 = vsel %vm2278, %v2261, 0
    %v2283 = vsel %vm2278, %v2262, 0
    %2285 = vmatprep.subr.mxu0 0.0
    %2286 = vmatpush1.msra.mxu0 0.0
    %2287 = vmatprep.subr.mxu0 0.0
    %2288 = vmatpush1.msra.mxu0 0.0
    %2289 = vmatprep.subr.mxu0 0.0
    %2290 = vmatpush1.msra.mxu0 0.0
    %2291 = vmatprep.subr.mxu0 0.0
    %2292 = vmatpush1.msra.mxu0 0.0
    %2293 = vmatprep.subr.mxu0 0.0
    %2294 = vmatpush1.msra.mxu0 0.0
    %2295 = vmatprep.subr.mxu0 0.0
    %2296 = vmatpush1.msra.mxu0 0.0
    %2297 = vmatprep.subr.mxu0 0.0
    %2298 = vmatpush1.msra.mxu0 0.0
    %2299 = vmatprep.subr.mxu0 0.0
    %2300 = vmatpush1.msra.mxu0 0.0
    %2301 = vmatprep.subr.mxu0 0.0
    %2302 = vmatpush1.msra.mxu0 %v2270
    %2303 = vmatprep.subr.mxu0 0.0
    %2304 = vmatpush1.msra.mxu0 %v2269
    %2305 = vmatprep.subr.mxu0 0.0
    %2306 = vmatpush1.msra.mxu0 %v2268
    %2307 = vmatprep.subr.mxu0 0.0
    %2308 = vmatpush1.msra.mxu0 %v2267
    %2309 = vmatprep.subr.mxu0 0.0
    %2310 = vmatpush1.msra.mxu0 %v2266
    %2311 = vmatprep.subr.mxu0 0.0
    %2312 = vmatpush1.msra.mxu0 %v2265
    %2313 = vmatprep.subr.mxu0 0.0
    %2314 = vmatpush1.msra.mxu0 %v2264
    %2315 = vmatprep.subr.mxu0 0.0
    %2316 = vmatpush1.msra.mxu0 %v2263
    %2317 = vmatprep.subr.mxu0 0.0
    %2318 = vmatpush2.msra.mxu0 0.0
    %2319 = vmatprep.subr.mxu0 0.0
    %2320 = vmatpush2.msra.mxu0 0.0
    %2321 = vmatprep.subr.mxu0 0.0
    %2322 = vmatpush2.msra.mxu0 0.0
    %2323 = vmatprep.subr.mxu0 0.0
    %2324 = vmatpush2.msra.mxu0 0.0
    %2325 = vmatprep.subr.mxu0 0.0
    %2326 = vmatpush2.msra.mxu0 0.0
    %2327 = vmatprep.subr.mxu0 0.0
    %2328 = vmatpush2.msra.mxu0 0.0
    %2329 = vmatprep.subr.mxu0 0.0
    %2330 = vmatpush2.msra.mxu0 0.0
    %2331 = vmatprep.subr.mxu0 0.0
    %2332 = vmatpush2.msra.mxu0 0.0
    %2333 = vmatprep.subr.mxu0 0.0
    %2334 = vmatpush2.msra.mxu0 0.0
    %2335 = vmatprep.subr.mxu0 0.0
    %2336 = vmatpush2.msra.mxu0 0.0
    %2337 = vmatprep.subr.mxu0 0.0
    %2338 = vmatpush2.msra.mxu0 0.0
    %2339 = vmatprep.subr.mxu0 0.0
    %2340 = vmatpush2.msra.mxu0 0.0
    %2341 = vmatprep.subr.mxu0 0.0
    %2342 = vmatpush2.msra.mxu0 0.0
    %2343 = vmatprep.subr.mxu0 0.0
    %2344 = vmatpush2.msra.mxu0 0.0
    %2345 = vmatprep.subr.mxu0 0.0
    %2346 = vmatpush2.msra.mxu0 0.0
    %2347 = vmatprep.subr.mxu0 0.0
    %2348 = vmatpush2.msra.mxu0 0.0
    %2349 = vmatprep.mubr.f32.mxu0 0.0
    %2350 = vmatmul.mubr.f32.gmra.mxu0 %v2280
    %v2351 = vpop.f32.mrf.mxu0
    %v2352 = vadd.f32 %v2276, %v2351
    %v2353 = vpop.f32.mrf.mxu0
    %2354 = vmatprep.mubr.f32.mxu0 0.0
    %2355 = vmatmul.mubr.f32.gmra.mxu0 %v2283
    %v2356 = vpop.f32.mrf.mxu0
    %v2357 = vadd.f32 %v2276, %v2356
    %v2358 = vpop.f32.mrf.mxu0
    %2359 = vdwg.mxu0
    %v2360 = vadd.f32 %v2352, %v2167
    %v2361 = vadd.f32 %v2357, %v2168
    %v2362 = vld [vmem:[%s13] sm:$0x1]
    %v2363 = vld [vmem:[%s14] sm:$0x1]
    %v2364 = vsel %vm94, %v2360, 0.0
    %2365 = vadd.xlane.f32.xlu0 %v2364
    %v2366 = vpop.xlane.xlu0 %2365
    %v2367 = vsel %vm94, %v2361, 0.0
    %2368 = vadd.xlane.f32.xlu0 %v2367
    %v2369 = vpop.xlane.xlu0 %2368
    %v2370 = vmul.f32 %v2366, %v2120
    %v2371 = vmul.f32 %v2369, %v2120
    %v2372 = vsub.f32 %v2360, %v2370
    %v2373 = vsub.f32 %v2361, %v2371
    %v2374 = vmul.f32 %v2372, %v2372
    %v2375 = vmul.f32 %v2373, %v2373
    %v2376 = vsel %vm94, %v2374, 0.0
    %2377 = vadd.xlane.f32.xlu0 %v2376
    %v2378 = vpop.xlane.xlu0 %2377
    %v2379 = vsel %vm94, %v2375, 0.0
    %2380 = vadd.xlane.f32.xlu0 %v2379
    %v2381 = vpop.xlane.xlu0 %2380
    %v2382 = vmul.f32 %v2378, %v2120
    %v2383 = vmul.f32 %v2381, %v2120
    %v2384 = vadd.f32 %v2382, 1e-05
    %v2385 = vadd.f32 %v2383, 1e-05
    %v2386 = vrsqrt.pop %v2384
    %v2387 = vrsqrt.pop %v2385
    %v2388 = vmul.f32 %v2372, %v2386
    %v2389 = vmul.f32 %v2373, %v2387
    %v2391 = vlaneseq
    %v2392 = vshrl.u32 %v2391, 7
    %v2393 = vsub.s32 0, %v2392
    %v2394 = vrot.slane %v2362, %v2393
    %v2396 = vmul.f32 %v2388, %v2394
    %v2397 = vmul.f32 %v2389, %v2394
    %v2399 = vlaneseq
    %v2400 = vshrl.u32 %v2399, 7
    %v2401 = vsub.s32 0, %v2400
    %v2402 = vrot.slane %v2363, %v2401
    %v2404 = vadd.f32 %v2396, %v2402
    %v2405 = vadd.f32 %v2397, %v2402
    %v2406 = vmul.f32 %v2404, %v2160
    %v2407 = vmul.f32 %v2405, %v2165
    %s2408 = scalar_lea.vmem %s3, 32
    %v2409 = vld [vmem:[%s2408] sm:$0xff]
    %v2410 = vld [vmem:[%s2408 + $0x8] sm:$0xff]
    %v2411 = vld [vmem:[%s2408 + $0x10] sm:$0xff]
    %v2412 = vld [vmem:[%s2408 + $0x18] sm:$0xff]
    %s2413 = scalar_lea.vmem %s4, 1
    %v2414 = vld [vmem:[%s2413] sm:$0x1]
    %v2416 = vlaneseq
    %v2417 = vshrl.u32 %v2416, 7
    %v2418 = vsub.s32 0, %v2417
    %v2419 = vrot.slane %v2414, %v2418
    %v2422 = vsel %vm94, %v2406, 0
    %v2425 = vsel %vm94, %v2407, 0
    %2427 = vmatprep.subr.mxu0 0.0
    %2428 = vmatpush1.msra.mxu0 0.0
    %2429 = vmatprep.subr.mxu0 0.0
    %2430 = vmatpush1.msra.mxu0 0.0
    %2431 = vmatprep.subr.mxu0 0.0
    %2432 = vmatpush1.msra.mxu0 0.0
    %2433 = vmatprep.subr.mxu0 0.0
    %2434 = vmatpush1.msra.mxu0 0.0
    %2435 = vmatprep.subr.mxu0 0.0
    %2436 = vmatpush1.msra.mxu0 0.0
    %2437 = vmatprep.subr.mxu0 0.0
    %2438 = vmatpush1.msra.mxu0 0.0
    %2439 = vmatprep.subr.mxu0 0.0
    %2440 = vmatpush1.msra.mxu0 0.0
    %2441 = vmatprep.subr.mxu0 0.0
    %2442 = vmatpush1.msra.mxu0 0.0
    %2443 = vmatprep.subr.mxu0 0.0
    %2444 = vmatpush1.msra.mxu0 0.0
    %2445 = vmatprep.subr.mxu0 0.0
    %2446 = vmatpush1.msra.mxu0 0.0
    %2447 = vmatprep.subr.mxu0 0.0
    %2448 = vmatpush1.msra.mxu0 0.0
    %2449 = vmatprep.subr.mxu0 0.0
    %2450 = vmatpush1.msra.mxu0 0.0
    %2451 = vmatprep.subr.mxu0 0.0
    %2452 = vmatpush1.msra.mxu0 %v2412
    %2453 = vmatprep.subr.mxu0 0.0
    %2454 = vmatpush1.msra.mxu0 %v2411
    %2455 = vmatprep.subr.mxu0 0.0
    %2456 = vmatpush1.msra.mxu0 %v2410
    %2457 = vmatprep.subr.mxu0 0.0
    %2458 = vmatpush1.msra.mxu0 %v2409
    %2459 = vmatprep.subr.mxu0 0.0
    %2460 = vmatpush2.msra.mxu0 0.0
    %2461 = vmatprep.subr.mxu0 0.0
    %2462 = vmatpush2.msra.mxu0 0.0
    %2463 = vmatprep.subr.mxu0 0.0
    %2464 = vmatpush2.msra.mxu0 0.0
    %2465 = vmatprep.subr.mxu0 0.0
    %2466 = vmatpush2.msra.mxu0 0.0
    %2467 = vmatprep.subr.mxu0 0.0
    %2468 = vmatpush2.msra.mxu0 0.0
    %2469 = vmatprep.subr.mxu0 0.0
    %2470 = vmatpush2.msra.mxu0 0.0
    %2471 = vmatprep.subr.mxu0 0.0
    %2472 = vmatpush2.msra.mxu0 0.0
    %2473 = vmatprep.subr.mxu0 0.0
    %2474 = vmatpush2.msra.mxu0 0.0
    %2475 = vmatprep.subr.mxu0 0.0
    %2476 = vmatpush2.msra.mxu0 0.0
    %2477 = vmatprep.subr.mxu0 0.0
    %2478 = vmatpush2.msra.mxu0 0.0
    %2479 = vmatprep.subr.mxu0 0.0
    %2480 = vmatpush2.msra.mxu0 0.0
    %2481 = vmatprep.subr.mxu0 0.0
    %2482 = vmatpush2.msra.mxu0 0.0
    %2483 = vmatprep.subr.mxu0 0.0
    %2484 = vmatpush2.msra.mxu0 0.0
    %2485 = vmatprep.subr.mxu0 0.0
    %2486 = vmatpush2.msra.mxu0 0.0
    %2487 = vmatprep.subr.mxu0 0.0
    %2488 = vmatpush2.msra.mxu0 0.0
    %2489 = vmatprep.subr.mxu0 0.0
    %2490 = vmatpush2.msra.mxu0 0.0
    %2491 = vmatprep.mubr.f32.mxu0 0.0
    %2492 = vmatmul.mubr.f32.gmra.mxu0 %v2422
    %v2493 = vpop.f32.mrf.mxu0
    %v2494 = vadd.f32 %v2419, %v2493
    %v2495 = vpop.f32.mrf.mxu0
    %2496 = vmatprep.mubr.f32.mxu0 0.0
    %2497 = vmatmul.mubr.f32.gmra.mxu0 %v2425
    %v2498 = vpop.f32.mrf.mxu0
    %v2499 = vadd.f32 %v2419, %v2498
    %v2500 = vpop.f32.mrf.mxu0
    %2501 = vdwg.mxu0
    %2504 = vrot.lane.b32.xlu0 %v2494, 120
    %v2505 = vpop.permute.xlu0 %2504
    %2506 = vrot.lane.b32.xlu0 %v2499, 120
    %v2507 = vpop.permute.xlu0 %2506
    %2508 = vrot.lane.b32.xlu0 %v2494, 112
    %v2509 = vpop.permute.xlu0 %2508
    %2510 = vrot.lane.b32.xlu0 %v2499, 112
    %v2511 = vpop.permute.xlu0 %2510
    %2512 = vrot.lane.b32.xlu0 %v2494, 104
    %v2513 = vpop.permute.xlu0 %2512
    %2514 = vrot.lane.b32.xlu0 %v2499, 104
    %v2515 = vpop.permute.xlu0 %2514
    %2516 = vrot.lane.b32.xlu0 %v2494, 96
    %v2517 = vpop.permute.xlu0 %2516
    %v2518 = vsel %vm192, %v2494, 0
    %v2520 = vsel %vm192, %v2517, 0
    %2522 = vmatprep.subr.mxu0 0.0
    %2523 = vmatpush1.xpose.msra.mxu0 0.0
    %2524 = vmatprep.subr.mxu0 0.0
    %2525 = vmatpush1.xpose.msra.mxu0 0.0
    %2526 = vmatprep.subr.mxu0 0.0
    %2527 = vmatpush1.xpose.msra.mxu0 0.0
    %2528 = vmatprep.subr.mxu0 0.0
    %2529 = vmatpush1.xpose.msra.mxu0 0.0
    %2530 = vmatprep.subr.mxu0 0.0
    %2531 = vmatpush1.xpose.msra.mxu0 0.0
    %2532 = vmatprep.subr.mxu0 0.0
    %2533 = vmatpush1.xpose.msra.mxu0 0.0
    %2534 = vmatprep.subr.mxu0 0.0
    %2535 = vmatpush1.xpose.msra.mxu0 0.0
    %2536 = vmatprep.subr.mxu0 0.0
    %2537 = vmatpush1.xpose.msra.mxu0 0.0
    %2538 = vmatprep.subr.mxu0 0.0
    %2539 = vmatpush1.xpose.msra.mxu0 0.0
    %2540 = vmatprep.subr.mxu0 0.0
    %2541 = vmatpush1.xpose.msra.mxu0 0.0
    %2542 = vmatprep.subr.mxu0 0.0
    %2543 = vmatpush1.xpose.msra.mxu0 0.0
    %2544 = vmatprep.subr.mxu0 0.0
    %2545 = vmatpush1.xpose.msra.mxu0 0.0
    %2546 = vmatprep.subr.mxu0 0.0
    %2547 = vmatpush1.xpose.msra.mxu0 0.0
    %2548 = vmatprep.subr.mxu0 0.0
    %2549 = vmatpush1.xpose.msra.mxu0 0.0
    %2550 = vmatprep.subr.mxu0 0.0
    %2551 = vmatpush1.xpose.msra.mxu0 0.0
    %2552 = vmatprep.subr.mxu0 0.0
    %2553 = vmatpush1.xpose.msra.mxu0 %v2520
    %2554 = vmatprep.subr.mxu0 0.0
    %2555 = vmatpush2.xpose.msra.mxu0 0.0
    %2556 = vmatprep.subr.mxu0 0.0
    %2557 = vmatpush2.xpose.msra.mxu0 0.0
    %2558 = vmatprep.subr.mxu0 0.0
    %2559 = vmatpush2.xpose.msra.mxu0 0.0
    %2560 = vmatprep.subr.mxu0 0.0
    %2561 = vmatpush2.xpose.msra.mxu0 0.0
    %2562 = vmatprep.subr.mxu0 0.0
    %2563 = vmatpush2.xpose.msra.mxu0 0.0
    %2564 = vmatprep.subr.mxu0 0.0
    %2565 = vmatpush2.xpose.msra.mxu0 0.0
    %2566 = vmatprep.subr.mxu0 0.0
    %2567 = vmatpush2.xpose.msra.mxu0 0.0
    %2568 = vmatprep.subr.mxu0 0.0
    %2569 = vmatpush2.xpose.msra.mxu0 0.0
    %2570 = vmatprep.subr.mxu0 0.0
    %2571 = vmatpush2.xpose.msra.mxu0 0.0
    %2572 = vmatprep.subr.mxu0 0.0
    %2573 = vmatpush2.xpose.msra.mxu0 0.0
    %2574 = vmatprep.subr.mxu0 0.0
    %2575 = vmatpush2.xpose.msra.mxu0 0.0
    %2576 = vmatprep.subr.mxu0 0.0
    %2577 = vmatpush2.xpose.msra.mxu0 0.0
    %2578 = vmatprep.subr.mxu0 0.0
    %2579 = vmatpush2.xpose.msra.mxu0 0.0
    %2580 = vmatprep.subr.mxu0 0.0
    %2581 = vmatpush2.xpose.msra.mxu0 0.0
    %2582 = vmatprep.subr.mxu0 0.0
    %2583 = vmatpush2.xpose.msra.mxu0 0.0
    %2584 = vmatprep.subr.mxu0 0.0
    %2585 = vmatpush2.xpose.msra.mxu0 0.0
    %2586 = vmatprep.mubr.f32.mxu0 0.0
    %2587 = vmatmul.mubr.f32.gmra.mxu0 %v2518
    %v2588 = vpop.f32.mrf.mxu0
    %v2589 = vadd.f32 %v75, %v2588
    %v2590 = vpop.f32.mrf.mxu0
    %2591 = vdwg.mxu0
    %2592 = vrot.lane.b32.xlu0 %v2499, 96
    %v2593 = vpop.permute.xlu0 %2592
    %v2594 = vsel %vm192, %v2499, 0
    %v2596 = vsel %vm192, %v2593, 0
    %2598 = vmatprep.subr.mxu0 0.0
    %2599 = vmatpush1.xpose.msra.mxu0 0.0
    %2600 = vmatprep.subr.mxu0 0.0
    %2601 = vmatpush1.xpose.msra.mxu0 0.0
    %2602 = vmatprep.subr.mxu0 0.0
    %2603 = vmatpush1.xpose.msra.mxu0 0.0
    %2604 = vmatprep.subr.mxu0 0.0
    %2605 = vmatpush1.xpose.msra.mxu0 0.0
    %2606 = vmatprep.subr.mxu0 0.0
    %2607 = vmatpush1.xpose.msra.mxu0 0.0
    %2608 = vmatprep.subr.mxu0 0.0
    %2609 = vmatpush1.xpose.msra.mxu0 0.0
    %2610 = vmatprep.subr.mxu0 0.0
    %2611 = vmatpush1.xpose.msra.mxu0 0.0
    %2612 = vmatprep.subr.mxu0 0.0
    %2613 = vmatpush1.xpose.msra.mxu0 0.0
    %2614 = vmatprep.subr.mxu0 0.0
    %2615 = vmatpush1.xpose.msra.mxu0 0.0
    %2616 = vmatprep.subr.mxu0 0.0
    %2617 = vmatpush1.xpose.msra.mxu0 0.0
    %2618 = vmatprep.subr.mxu0 0.0
    %2619 = vmatpush1.xpose.msra.mxu0 0.0
    %2620 = vmatprep.subr.mxu0 0.0
    %2621 = vmatpush1.xpose.msra.mxu0 0.0
    %2622 = vmatprep.subr.mxu0 0.0
    %2623 = vmatpush1.xpose.msra.mxu0 0.0
    %2624 = vmatprep.subr.mxu0 0.0
    %2625 = vmatpush1.xpose.msra.mxu0 0.0
    %2626 = vmatprep.subr.mxu0 0.0
    %2627 = vmatpush1.xpose.msra.mxu0 0.0
    %2628 = vmatprep.subr.mxu0 0.0
    %2629 = vmatpush1.xpose.msra.mxu0 %v2596
    %2630 = vmatprep.subr.mxu0 0.0
    %2631 = vmatpush2.xpose.msra.mxu0 0.0
    %2632 = vmatprep.subr.mxu0 0.0
    %2633 = vmatpush2.xpose.msra.mxu0 0.0
    %2634 = vmatprep.subr.mxu0 0.0
    %2635 = vmatpush2.xpose.msra.mxu0 0.0
    %2636 = vmatprep.subr.mxu0 0.0
    %2637 = vmatpush2.xpose.msra.mxu0 0.0
    %2638 = vmatprep.subr.mxu0 0.0
    %2639 = vmatpush2.xpose.msra.mxu0 0.0
    %2640 = vmatprep.subr.mxu0 0.0
    %2641 = vmatpush2.xpose.msra.mxu0 0.0
    %2642 = vmatprep.subr.mxu0 0.0
    %2643 = vmatpush2.xpose.msra.mxu0 0.0
    %2644 = vmatprep.subr.mxu0 0.0
    %2645 = vmatpush2.xpose.msra.mxu0 0.0
    %2646 = vmatprep.subr.mxu0 0.0
    %2647 = vmatpush2.xpose.msra.mxu0 0.0
    %2648 = vmatprep.subr.mxu0 0.0
    %2649 = vmatpush2.xpose.msra.mxu0 0.0
    %2650 = vmatprep.subr.mxu0 0.0
    %2651 = vmatpush2.xpose.msra.mxu0 0.0
    %2652 = vmatprep.subr.mxu0 0.0
    %2653 = vmatpush2.xpose.msra.mxu0 0.0
    %2654 = vmatprep.subr.mxu0 0.0
    %2655 = vmatpush2.xpose.msra.mxu0 0.0
    %2656 = vmatprep.subr.mxu0 0.0
    %2657 = vmatpush2.xpose.msra.mxu0 0.0
    %2658 = vmatprep.subr.mxu0 0.0
    %2659 = vmatpush2.xpose.msra.mxu0 0.0
    %2660 = vmatprep.subr.mxu0 0.0
    %2661 = vmatpush2.xpose.msra.mxu0 0.0
    %2662 = vmatprep.mubr.f32.mxu0 0.0
    %2663 = vmatmul.mubr.f32.gmra.mxu0 %v2594
    %v2664 = vpop.f32.mrf.mxu0
    %v2665 = vadd.f32 %v76, %v2664
    %v2666 = vpop.f32.mrf.mxu0
    %2667 = vdwg.mxu0
    %2668 = vrot.lane.b32.xlu0 %v2505, 96
    %v2669 = vpop.permute.xlu0 %2668
    %v2670 = vsel %vm192, %v2505, 0
    %v2672 = vsel %vm192, %v2669, 0
    %2674 = vmatprep.subr.mxu0 0.0
    %2675 = vmatpush1.xpose.msra.mxu0 0.0
    %2676 = vmatprep.subr.mxu0 0.0
    %2677 = vmatpush1.xpose.msra.mxu0 0.0
    %2678 = vmatprep.subr.mxu0 0.0
    %2679 = vmatpush1.xpose.msra.mxu0 0.0
    %2680 = vmatprep.subr.mxu0 0.0
    %2681 = vmatpush1.xpose.msra.mxu0 0.0
    %2682 = vmatprep.subr.mxu0 0.0
    %2683 = vmatpush1.xpose.msra.mxu0 0.0
    %2684 = vmatprep.subr.mxu0 0.0
    %2685 = vmatpush1.xpose.msra.mxu0 0.0
    %2686 = vmatprep.subr.mxu0 0.0
    %2687 = vmatpush1.xpose.msra.mxu0 0.0
    %2688 = vmatprep.subr.mxu0 0.0
    %2689 = vmatpush1.xpose.msra.mxu0 0.0
    %2690 = vmatprep.subr.mxu0 0.0
    %2691 = vmatpush1.xpose.msra.mxu0 0.0
    %2692 = vmatprep.subr.mxu0 0.0
    %2693 = vmatpush1.xpose.msra.mxu0 0.0
    %2694 = vmatprep.subr.mxu0 0.0
    %2695 = vmatpush1.xpose.msra.mxu0 0.0
    %2696 = vmatprep.subr.mxu0 0.0
    %2697 = vmatpush1.xpose.msra.mxu0 0.0
    %2698 = vmatprep.subr.mxu0 0.0
    %2699 = vmatpush1.xpose.msra.mxu0 0.0
    %2700 = vmatprep.subr.mxu0 0.0
    %2701 = vmatpush1.xpose.msra.mxu0 0.0
    %2702 = vmatprep.subr.mxu0 0.0
    %2703 = vmatpush1.xpose.msra.mxu0 0.0
    %2704 = vmatprep.subr.mxu0 0.0
    %2705 = vmatpush1.xpose.msra.mxu0 %v2672
    %2706 = vmatprep.subr.mxu0 0.0
    %2707 = vmatpush2.xpose.msra.mxu0 0.0
    %2708 = vmatprep.subr.mxu0 0.0
    %2709 = vmatpush2.xpose.msra.mxu0 0.0
    %2710 = vmatprep.subr.mxu0 0.0
    %2711 = vmatpush2.xpose.msra.mxu0 0.0
    %2712 = vmatprep.subr.mxu0 0.0
    %2713 = vmatpush2.xpose.msra.mxu0 0.0
    %2714 = vmatprep.subr.mxu0 0.0
    %2715 = vmatpush2.xpose.msra.mxu0 0.0
    %2716 = vmatprep.subr.mxu0 0.0
    %2717 = vmatpush2.xpose.msra.mxu0 0.0
    %2718 = vmatprep.subr.mxu0 0.0
    %2719 = vmatpush2.xpose.msra.mxu0 0.0
    %2720 = vmatprep.subr.mxu0 0.0
    %2721 = vmatpush2.xpose.msra.mxu0 0.0
    %2722 = vmatprep.subr.mxu0 0.0
    %2723 = vmatpush2.xpose.msra.mxu0 0.0
    %2724 = vmatprep.subr.mxu0 0.0
    %2725 = vmatpush2.xpose.msra.mxu0 0.0
    %2726 = vmatprep.subr.mxu0 0.0
    %2727 = vmatpush2.xpose.msra.mxu0 0.0
    %2728 = vmatprep.subr.mxu0 0.0
    %2729 = vmatpush2.xpose.msra.mxu0 0.0
    %2730 = vmatprep.subr.mxu0 0.0
    %2731 = vmatpush2.xpose.msra.mxu0 0.0
    %2732 = vmatprep.subr.mxu0 0.0
    %2733 = vmatpush2.xpose.msra.mxu0 0.0
    %2734 = vmatprep.subr.mxu0 0.0
    %2735 = vmatpush2.xpose.msra.mxu0 0.0
    %2736 = vmatprep.subr.mxu0 0.0
    %2737 = vmatpush2.xpose.msra.mxu0 0.0
    %2738 = vmatprep.mubr.f32.mxu0 0.0
    %2739 = vmatmul.mubr.f32.gmra.mxu0 %v2670
    %v2740 = vpop.f32.mrf.mxu0
    %v2741 = vadd.f32 %v77, %v2740
    %v2742 = vpop.f32.mrf.mxu0
    %2743 = vdwg.mxu0
    %2744 = vrot.lane.b32.xlu0 %v2507, 96
    %v2745 = vpop.permute.xlu0 %2744
    %v2746 = vsel %vm192, %v2507, 0
    %v2748 = vsel %vm192, %v2745, 0
    %2750 = vmatprep.subr.mxu0 0.0
    %2751 = vmatpush1.xpose.msra.mxu0 0.0
    %2752 = vmatprep.subr.mxu0 0.0
    %2753 = vmatpush1.xpose.msra.mxu0 0.0
    %2754 = vmatprep.subr.mxu0 0.0
    %2755 = vmatpush1.xpose.msra.mxu0 0.0
    %2756 = vmatprep.subr.mxu0 0.0
    %2757 = vmatpush1.xpose.msra.mxu0 0.0
    %2758 = vmatprep.subr.mxu0 0.0
    %2759 = vmatpush1.xpose.msra.mxu0 0.0
    %2760 = vmatprep.subr.mxu0 0.0
    %2761 = vmatpush1.xpose.msra.mxu0 0.0
    %2762 = vmatprep.subr.mxu0 0.0
    %2763 = vmatpush1.xpose.msra.mxu0 0.0
    %2764 = vmatprep.subr.mxu0 0.0
    %2765 = vmatpush1.xpose.msra.mxu0 0.0
    %2766 = vmatprep.subr.mxu0 0.0
    %2767 = vmatpush1.xpose.msra.mxu0 0.0
    %2768 = vmatprep.subr.mxu0 0.0
    %2769 = vmatpush1.xpose.msra.mxu0 0.0
    %2770 = vmatprep.subr.mxu0 0.0
    %2771 = vmatpush1.xpose.msra.mxu0 0.0
    %2772 = vmatprep.subr.mxu0 0.0
    %2773 = vmatpush1.xpose.msra.mxu0 0.0
    %2774 = vmatprep.subr.mxu0 0.0
    %2775 = vmatpush1.xpose.msra.mxu0 0.0
    %2776 = vmatprep.subr.mxu0 0.0
    %2777 = vmatpush1.xpose.msra.mxu0 0.0
    %2778 = vmatprep.subr.mxu0 0.0
    %2779 = vmatpush1.xpose.msra.mxu0 0.0
    %2780 = vmatprep.subr.mxu0 0.0
    %2781 = vmatpush1.xpose.msra.mxu0 %v2748
    %2782 = vmatprep.subr.mxu0 0.0
    %2783 = vmatpush2.xpose.msra.mxu0 0.0
    %2784 = vmatprep.subr.mxu0 0.0
    %2785 = vmatpush2.xpose.msra.mxu0 0.0
    %2786 = vmatprep.subr.mxu0 0.0
    %2787 = vmatpush2.xpose.msra.mxu0 0.0
    %2788 = vmatprep.subr.mxu0 0.0
    %2789 = vmatpush2.xpose.msra.mxu0 0.0
    %2790 = vmatprep.subr.mxu0 0.0
    %2791 = vmatpush2.xpose.msra.mxu0 0.0
    %2792 = vmatprep.subr.mxu0 0.0
    %2793 = vmatpush2.xpose.msra.mxu0 0.0
    %2794 = vmatprep.subr.mxu0 0.0
    %2795 = vmatpush2.xpose.msra.mxu0 0.0
    %2796 = vmatprep.subr.mxu0 0.0
    %2797 = vmatpush2.xpose.msra.mxu0 0.0
    %2798 = vmatprep.subr.mxu0 0.0
    %2799 = vmatpush2.xpose.msra.mxu0 0.0
    %2800 = vmatprep.subr.mxu0 0.0
    %2801 = vmatpush2.xpose.msra.mxu0 0.0
    %2802 = vmatprep.subr.mxu0 0.0
    %2803 = vmatpush2.xpose.msra.mxu0 0.0
    %2804 = vmatprep.subr.mxu0 0.0
    %2805 = vmatpush2.xpose.msra.mxu0 0.0
    %2806 = vmatprep.subr.mxu0 0.0
    %2807 = vmatpush2.xpose.msra.mxu0 0.0
    %2808 = vmatprep.subr.mxu0 0.0
    %2809 = vmatpush2.xpose.msra.mxu0 0.0
    %2810 = vmatprep.subr.mxu0 0.0
    %2811 = vmatpush2.xpose.msra.mxu0 0.0
    %2812 = vmatprep.subr.mxu0 0.0
    %2813 = vmatpush2.xpose.msra.mxu0 0.0
    %2814 = vmatprep.mubr.f32.mxu0 0.0
    %2815 = vmatmul.mubr.f32.gmra.mxu0 %v2746
    %v2816 = vpop.f32.mrf.mxu0
    %v2817 = vadd.f32 %v78, %v2816
    %v2818 = vpop.f32.mrf.mxu0
    %2819 = vdwg.mxu0
    %2820 = vrot.lane.b32.xlu0 %v2509, 96
    %v2821 = vpop.permute.xlu0 %2820
    %v2822 = vsel %vm192, %v2509, 0
    %v2824 = vsel %vm192, %v2821, 0
    %2826 = vmatprep.subr.mxu0 0.0
    %2827 = vmatpush1.xpose.msra.mxu0 0.0
    %2828 = vmatprep.subr.mxu0 0.0
    %2829 = vmatpush1.xpose.msra.mxu0 0.0
    %2830 = vmatprep.subr.mxu0 0.0
    %2831 = vmatpush1.xpose.msra.mxu0 0.0
    %2832 = vmatprep.subr.mxu0 0.0
    %2833 = vmatpush1.xpose.msra.mxu0 0.0
    %2834 = vmatprep.subr.mxu0 0.0
    %2835 = vmatpush1.xpose.msra.mxu0 0.0
    %2836 = vmatprep.subr.mxu0 0.0
    %2837 = vmatpush1.xpose.msra.mxu0 0.0
    %2838 = vmatprep.subr.mxu0 0.0
    %2839 = vmatpush1.xpose.msra.mxu0 0.0
    %2840 = vmatprep.subr.mxu0 0.0
    %2841 = vmatpush1.xpose.msra.mxu0 0.0
    %2842 = vmatprep.subr.mxu0 0.0
    %2843 = vmatpush1.xpose.msra.mxu0 0.0
    %2844 = vmatprep.subr.mxu0 0.0
    %2845 = vmatpush1.xpose.msra.mxu0 0.0
    %2846 = vmatprep.subr.mxu0 0.0
    %2847 = vmatpush1.xpose.msra.mxu0 0.0
    %2848 = vmatprep.subr.mxu0 0.0
    %2849 = vmatpush1.xpose.msra.mxu0 0.0
    %2850 = vmatprep.subr.mxu0 0.0
    %2851 = vmatpush1.xpose.msra.mxu0 0.0
    %2852 = vmatprep.subr.mxu0 0.0
    %2853 = vmatpush1.xpose.msra.mxu0 0.0
    %2854 = vmatprep.subr.mxu0 0.0
    %2855 = vmatpush1.xpose.msra.mxu0 0.0
    %2856 = vmatprep.subr.mxu0 0.0
    %2857 = vmatpush1.xpose.msra.mxu0 %v2824
    %2858 = vmatprep.subr.mxu0 0.0
    %2859 = vmatpush2.xpose.msra.mxu0 0.0
    %2860 = vmatprep.subr.mxu0 0.0
    %2861 = vmatpush2.xpose.msra.mxu0 0.0
    %2862 = vmatprep.subr.mxu0 0.0
    %2863 = vmatpush2.xpose.msra.mxu0 0.0
    %2864 = vmatprep.subr.mxu0 0.0
    %2865 = vmatpush2.xpose.msra.mxu0 0.0
    %2866 = vmatprep.subr.mxu0 0.0
    %2867 = vmatpush2.xpose.msra.mxu0 0.0
    %2868 = vmatprep.subr.mxu0 0.0
    %2869 = vmatpush2.xpose.msra.mxu0 0.0
    %2870 = vmatprep.subr.mxu0 0.0
    %2871 = vmatpush2.xpose.msra.mxu0 0.0
    %2872 = vmatprep.subr.mxu0 0.0
    %2873 = vmatpush2.xpose.msra.mxu0 0.0
    %2874 = vmatprep.subr.mxu0 0.0
    %2875 = vmatpush2.xpose.msra.mxu0 0.0
    %2876 = vmatprep.subr.mxu0 0.0
    %2877 = vmatpush2.xpose.msra.mxu0 0.0
    %2878 = vmatprep.subr.mxu0 0.0
    %2879 = vmatpush2.xpose.msra.mxu0 0.0
    %2880 = vmatprep.subr.mxu0 0.0
    %2881 = vmatpush2.xpose.msra.mxu0 0.0
    %2882 = vmatprep.subr.mxu0 0.0
    %2883 = vmatpush2.xpose.msra.mxu0 0.0
    %2884 = vmatprep.subr.mxu0 0.0
    %2885 = vmatpush2.xpose.msra.mxu0 0.0
    %2886 = vmatprep.subr.mxu0 0.0
    %2887 = vmatpush2.xpose.msra.mxu0 0.0
    %2888 = vmatprep.subr.mxu0 0.0
    %2889 = vmatpush2.xpose.msra.mxu0 0.0
    %2890 = vmatprep.mubr.f32.mxu0 0.0
    %2891 = vmatmul.mubr.f32.gmra.mxu0 %v2822
    %v2892 = vpop.f32.mrf.mxu0
    %v2893 = vadd.f32 %v79, %v2892
    %v2894 = vpop.f32.mrf.mxu0
    %2895 = vdwg.mxu0
    %2896 = vrot.lane.b32.xlu0 %v2511, 96
    %v2897 = vpop.permute.xlu0 %2896
    %v2898 = vsel %vm192, %v2511, 0
    %v2900 = vsel %vm192, %v2897, 0
    %2902 = vmatprep.subr.mxu0 0.0
    %2903 = vmatpush1.xpose.msra.mxu0 0.0
    %2904 = vmatprep.subr.mxu0 0.0
    %2905 = vmatpush1.xpose.msra.mxu0 0.0
    %2906 = vmatprep.subr.mxu0 0.0
    %2907 = vmatpush1.xpose.msra.mxu0 0.0
    %2908 = vmatprep.subr.mxu0 0.0
    %2909 = vmatpush1.xpose.msra.mxu0 0.0
    %2910 = vmatprep.subr.mxu0 0.0
    %2911 = vmatpush1.xpose.msra.mxu0 0.0
    %2912 = vmatprep.subr.mxu0 0.0
    %2913 = vmatpush1.xpose.msra.mxu0 0.0
    %2914 = vmatprep.subr.mxu0 0.0
    %2915 = vmatpush1.xpose.msra.mxu0 0.0
    %2916 = vmatprep.subr.mxu0 0.0
    %2917 = vmatpush1.xpose.msra.mxu0 0.0
    %2918 = vmatprep.subr.mxu0 0.0
    %2919 = vmatpush1.xpose.msra.mxu0 0.0
    %2920 = vmatprep.subr.mxu0 0.0
    %2921 = vmatpush1.xpose.msra.mxu0 0.0
    %2922 = vmatprep.subr.mxu0 0.0
    %2923 = vmatpush1.xpose.msra.mxu0 0.0
    %2924 = vmatprep.subr.mxu0 0.0
    %2925 = vmatpush1.xpose.msra.mxu0 0.0
    %2926 = vmatprep.subr.mxu0 0.0
    %2927 = vmatpush1.xpose.msra.mxu0 0.0
    %2928 = vmatprep.subr.mxu0 0.0
    %2929 = vmatpush1.xpose.msra.mxu0 0.0
    %2930 = vmatprep.subr.mxu0 0.0
    %2931 = vmatpush1.xpose.msra.mxu0 0.0
    %2932 = vmatprep.subr.mxu0 0.0
    %2933 = vmatpush1.xpose.msra.mxu0 %v2900
    %2934 = vmatprep.subr.mxu0 0.0
    %2935 = vmatpush2.xpose.msra.mxu0 0.0
    %2936 = vmatprep.subr.mxu0 0.0
    %2937 = vmatpush2.xpose.msra.mxu0 0.0
    %2938 = vmatprep.subr.mxu0 0.0
    %2939 = vmatpush2.xpose.msra.mxu0 0.0
    %2940 = vmatprep.subr.mxu0 0.0
    %2941 = vmatpush2.xpose.msra.mxu0 0.0
    %2942 = vmatprep.subr.mxu0 0.0
    %2943 = vmatpush2.xpose.msra.mxu0 0.0
    %2944 = vmatprep.subr.mxu0 0.0
    %2945 = vmatpush2.xpose.msra.mxu0 0.0
    %2946 = vmatprep.subr.mxu0 0.0
    %2947 = vmatpush2.xpose.msra.mxu0 0.0
    %2948 = vmatprep.subr.mxu0 0.0
    %2949 = vmatpush2.xpose.msra.mxu0 0.0
    %2950 = vmatprep.subr.mxu0 0.0
    %2951 = vmatpush2.xpose.msra.mxu0 0.0
    %2952 = vmatprep.subr.mxu0 0.0
    %2953 = vmatpush2.xpose.msra.mxu0 0.0
    %2954 = vmatprep.subr.mxu0 0.0
    %2955 = vmatpush2.xpose.msra.mxu0 0.0
    %2956 = vmatprep.subr.mxu0 0.0
    %2957 = vmatpush2.xpose.msra.mxu0 0.0
    %2958 = vmatprep.subr.mxu0 0.0
    %2959 = vmatpush2.xpose.msra.mxu0 0.0
    %2960 = vmatprep.subr.mxu0 0.0
    %2961 = vmatpush2.xpose.msra.mxu0 0.0
    %2962 = vmatprep.subr.mxu0 0.0
    %2963 = vmatpush2.xpose.msra.mxu0 0.0
    %2964 = vmatprep.subr.mxu0 0.0
    %2965 = vmatpush2.xpose.msra.mxu0 0.0
    %2966 = vmatprep.mubr.f32.mxu0 0.0
    %2967 = vmatmul.mubr.f32.gmra.mxu0 %v2898
    %v2968 = vpop.f32.mrf.mxu0
    %v2969 = vadd.f32 %v80, %v2968
    %v2970 = vpop.f32.mrf.mxu0
    %2971 = vdwg.mxu0
    %2972 = vrot.lane.b32.xlu0 %v2513, 96
    %v2973 = vpop.permute.xlu0 %2972
    %v2974 = vsel %vm192, %v2513, 0
    %v2976 = vsel %vm192, %v2973, 0
    %2978 = vmatprep.subr.mxu0 0.0
    %2979 = vmatpush1.xpose.msra.mxu0 0.0
    %2980 = vmatprep.subr.mxu0 0.0
    %2981 = vmatpush1.xpose.msra.mxu0 0.0
    %2982 = vmatprep.subr.mxu0 0.0
    %2983 = vmatpush1.xpose.msra.mxu0 0.0
    %2984 = vmatprep.subr.mxu0 0.0
    %2985 = vmatpush1.xpose.msra.mxu0 0.0
    %2986 = vmatprep.subr.mxu0 0.0
    %2987 = vmatpush1.xpose.msra.mxu0 0.0
    %2988 = vmatprep.subr.mxu0 0.0
    %2989 = vmatpush1.xpose.msra.mxu0 0.0
    %2990 = vmatprep.subr.mxu0 0.0
    %2991 = vmatpush1.xpose.msra.mxu0 0.0
    %2992 = vmatprep.subr.mxu0 0.0
    %2993 = vmatpush1.xpose.msra.mxu0 0.0
    %2994 = vmatprep.subr.mxu0 0.0
    %2995 = vmatpush1.xpose.msra.mxu0 0.0
    %2996 = vmatprep.subr.mxu0 0.0
    %2997 = vmatpush1.xpose.msra.mxu0 0.0
    %2998 = vmatprep.subr.mxu0 0.0
    %2999 = vmatpush1.xpose.msra.mxu0 0.0
    %3000 = vmatprep.subr.mxu0 0.0
    %3001 = vmatpush1.xpose.msra.mxu0 0.0
    %3002 = vmatprep.subr.mxu0 0.0
    %3003 = vmatpush1.xpose.msra.mxu0 0.0
    %3004 = vmatprep.subr.mxu0 0.0
    %3005 = vmatpush1.xpose.msra.mxu0 0.0
    %3006 = vmatprep.subr.mxu0 0.0
    %3007 = vmatpush1.xpose.msra.mxu0 0.0
    %3008 = vmatprep.subr.mxu0 0.0
    %3009 = vmatpush1.xpose.msra.mxu0 %v2976
    %3010 = vmatprep.subr.mxu0 0.0
    %3011 = vmatpush2.xpose.msra.mxu0 0.0
    %3012 = vmatprep.subr.mxu0 0.0
    %3013 = vmatpush2.xpose.msra.mxu0 0.0
    %3014 = vmatprep.subr.mxu0 0.0
    %3015 = vmatpush2.xpose.msra.mxu0 0.0
    %3016 = vmatprep.subr.mxu0 0.0
    %3017 = vmatpush2.xpose.msra.mxu0 0.0
    %3018 = vmatprep.subr.mxu0 0.0
    %3019 = vmatpush2.xpose.msra.mxu0 0.0
    %3020 = vmatprep.subr.mxu0 0.0
    %3021 = vmatpush2.xpose.msra.mxu0 0.0
    %3022 = vmatprep.subr.mxu0 0.0
    %3023 = vmatpush2.xpose.msra.mxu0 0.0
    %3024 = vmatprep.subr.mxu0 0.0
    %3025 = vmatpush2.xpose.msra.mxu0 0.0
    %3026 = vmatprep.subr.mxu0 0.0
    %3027 = vmatpush2.xpose.msra.mxu0 0.0
    %3028 = vmatprep.subr.mxu0 0.0
    %3029 = vmatpush2.xpose.msra.mxu0 0.0
    %3030 = vmatprep.subr.mxu0 0.0
    %3031 = vmatpush2.xpose.msra.mxu0 0.0
    %3032 = vmatprep.subr.mxu0 0.0
    %3033 = vmatpush2.xpose.msra.mxu0 0.0
    %3034 = vmatprep.subr.mxu0 0.0
    %3035 = vmatpush2.xpose.msra.mxu0 0.0
    %3036 = vmatprep.subr.mxu0 0.0
    %3037 = vmatpush2.xpose.msra.mxu0 0.0
    %3038 = vmatprep.subr.mxu0 0.0
    %3039 = vmatpush2.xpose.msra.mxu0 0.0
    %3040 = vmatprep.subr.mxu0 0.0
    %3041 = vmatpush2.xpose.msra.mxu0 0.0
    %3042 = vmatprep.mubr.f32.mxu0 0.0
    %3043 = vmatmul.mubr.f32.gmra.mxu0 %v2974
    %v3044 = vpop.f32.mrf.mxu0
    %v3045 = vadd.f32 %v81, %v3044
    %v3046 = vpop.f32.mrf.mxu0
    %3047 = vdwg.mxu0
    %3048 = vrot.lane.b32.xlu0 %v2515, 96
    %v3049 = vpop.permute.xlu0 %3048
    %v3050 = vsel %vm192, %v2515, 0
    %v3052 = vsel %vm192, %v3049, 0
    %3054 = vmatprep.subr.mxu0 0.0
    %3055 = vmatpush1.xpose.msra.mxu0 0.0
    %3056 = vmatprep.subr.mxu0 0.0
    %3057 = vmatpush1.xpose.msra.mxu0 0.0
    %3058 = vmatprep.subr.mxu0 0.0
    %3059 = vmatpush1.xpose.msra.mxu0 0.0
    %3060 = vmatprep.subr.mxu0 0.0
    %3061 = vmatpush1.xpose.msra.mxu0 0.0
    %3062 = vmatprep.subr.mxu0 0.0
    %3063 = vmatpush1.xpose.msra.mxu0 0.0
    %3064 = vmatprep.subr.mxu0 0.0
    %3065 = vmatpush1.xpose.msra.mxu0 0.0
    %3066 = vmatprep.subr.mxu0 0.0
    %3067 = vmatpush1.xpose.msra.mxu0 0.0
    %3068 = vmatprep.subr.mxu0 0.0
    %3069 = vmatpush1.xpose.msra.mxu0 0.0
    %3070 = vmatprep.subr.mxu0 0.0
    %3071 = vmatpush1.xpose.msra.mxu0 0.0
    %3072 = vmatprep.subr.mxu0 0.0
    %3073 = vmatpush1.xpose.msra.mxu0 0.0
    %3074 = vmatprep.subr.mxu0 0.0
    %3075 = vmatpush1.xpose.msra.mxu0 0.0
    %3076 = vmatprep.subr.mxu0 0.0
    %3077 = vmatpush1.xpose.msra.mxu0 0.0
    %3078 = vmatprep.subr.mxu0 0.0
    %3079 = vmatpush1.xpose.msra.mxu0 0.0
    %3080 = vmatprep.subr.mxu0 0.0
    %3081 = vmatpush1.xpose.msra.mxu0 0.0
    %3082 = vmatprep.subr.mxu0 0.0
    %3083 = vmatpush1.xpose.msra.mxu0 0.0
    %3084 = vmatprep.subr.mxu0 0.0
    %3085 = vmatpush1.xpose.msra.mxu0 %v3052
    %3086 = vmatprep.subr.mxu0 0.0
    %3087 = vmatpush2.xpose.msra.mxu0 0.0
    %3088 = vmatprep.subr.mxu0 0.0
    %3089 = vmatpush2.xpose.msra.mxu0 0.0
    %3090 = vmatprep.subr.mxu0 0.0
    %3091 = vmatpush2.xpose.msra.mxu0 0.0
    %3092 = vmatprep.subr.mxu0 0.0
    %3093 = vmatpush2.xpose.msra.mxu0 0.0
    %3094 = vmatprep.subr.mxu0 0.0
    %3095 = vmatpush2.xpose.msra.mxu0 0.0
    %3096 = vmatprep.subr.mxu0 0.0
    %3097 = vmatpush2.xpose.msra.mxu0 0.0
    %3098 = vmatprep.subr.mxu0 0.0
    %3099 = vmatpush2.xpose.msra.mxu0 0.0
    %3100 = vmatprep.subr.mxu0 0.0
    %3101 = vmatpush2.xpose.msra.mxu0 0.0
    %3102 = vmatprep.subr.mxu0 0.0
    %3103 = vmatpush2.xpose.msra.mxu0 0.0
    %3104 = vmatprep.subr.mxu0 0.0
    %3105 = vmatpush2.xpose.msra.mxu0 0.0
    %3106 = vmatprep.subr.mxu0 0.0
    %3107 = vmatpush2.xpose.msra.mxu0 0.0
    %3108 = vmatprep.subr.mxu0 0.0
    %3109 = vmatpush2.xpose.msra.mxu0 0.0
    %3110 = vmatprep.subr.mxu0 0.0
    %3111 = vmatpush2.xpose.msra.mxu0 0.0
    %3112 = vmatprep.subr.mxu0 0.0
    %3113 = vmatpush2.xpose.msra.mxu0 0.0
    %3114 = vmatprep.subr.mxu0 0.0
    %3115 = vmatpush2.xpose.msra.mxu0 0.0
    %3116 = vmatprep.subr.mxu0 0.0
    %3117 = vmatpush2.xpose.msra.mxu0 0.0
    %3118 = vmatprep.mubr.f32.mxu0 0.0
    %3119 = vmatmul.mubr.f32.gmra.mxu0 %v3050
    %v3120 = vpop.f32.mrf.mxu0
    %v3121 = vadd.f32 %v82, %v3120
    %v3122 = vpop.f32.mrf.mxu0
    %3123 = vdwg.mxu0
    %v3124 = vsel %vm192, %v2589, -inf
    %3125 = vmax.xlane.f32.xlu0 %v3124
    %v3126 = vpop.xlane.xlu0 %3125
    %v3127 = vsel %vm192, %v2665, -inf
    %3128 = vmax.xlane.f32.xlu0 %v3127
    %v3129 = vpop.xlane.xlu0 %3128
    %v3130 = vsel %vm192, %v2741, -inf
    %3131 = vmax.xlane.f32.xlu0 %v3130
    %v3132 = vpop.xlane.xlu0 %3131
    %v3133 = vsel %vm192, %v2817, -inf
    %3134 = vmax.xlane.f32.xlu0 %v3133
    %v3135 = vpop.xlane.xlu0 %3134
    %v3136 = vsel %vm192, %v2893, -inf
    %3137 = vmax.xlane.f32.xlu0 %v3136
    %v3138 = vpop.xlane.xlu0 %3137
    %v3139 = vsel %vm192, %v2969, -inf
    %3140 = vmax.xlane.f32.xlu0 %v3139
    %v3141 = vpop.xlane.xlu0 %3140
    %v3142 = vsel %vm192, %v3045, -inf
    %3143 = vmax.xlane.f32.xlu0 %v3142
    %v3144 = vpop.xlane.xlu0 %3143
    %v3145 = vsel %vm192, %v3121, -inf
    %3146 = vmax.xlane.f32.xlu0 %v3145
    %v3147 = vpop.xlane.xlu0 %3146
    %v3148 = vsub.f32 %v2589, %v3126
    %v3149 = vsub.f32 %v2665, %v3129
    %v3150 = vsub.f32 %v2741, %v3132
    %v3151 = vsub.f32 %v2817, %v3135
    %v3152 = vsub.f32 %v2893, %v3138
    %v3153 = vsub.f32 %v2969, %v3141
    %v3154 = vsub.f32 %v3045, %v3144
    %v3155 = vsub.f32 %v3121, %v3147
    %v3156 = vmul.f32 %v3148, 1.442695
    %v3157 = vpow.pop %v3156
    %v3158 = vmul.f32 %v3149, 1.442695
    %v3159 = vpow.pop %v3158
    %v3160 = vmul.f32 %v3150, 1.442695
    %v3161 = vpow.pop %v3160
    %v3162 = vmul.f32 %v3151, 1.442695
    %v3163 = vpow.pop %v3162
    %v3164 = vmul.f32 %v3152, 1.442695
    %v3165 = vpow.pop %v3164
    %v3166 = vmul.f32 %v3153, 1.442695
    %v3167 = vpow.pop %v3166
    %v3168 = vmul.f32 %v3154, 1.442695
    %v3169 = vpow.pop %v3168
    %v3170 = vmul.f32 %v3155, 1.442695
    %v3171 = vpow.pop %v3170
    %v3172 = vsel %vm192, %v3157, 0.0
    %3173 = vadd.xlane.f32.xlu0 %v3172
    %v3174 = vpop.xlane.xlu0 %3173
    %v3175 = vsel %vm192, %v3159, 0.0
    %3176 = vadd.xlane.f32.xlu0 %v3175
    %v3177 = vpop.xlane.xlu0 %3176
    %v3178 = vsel %vm192, %v3161, 0.0
    %3179 = vadd.xlane.f32.xlu0 %v3178
    %v3180 = vpop.xlane.xlu0 %3179
    %v3181 = vsel %vm192, %v3163, 0.0
    %3182 = vadd.xlane.f32.xlu0 %v3181
    %v3183 = vpop.xlane.xlu0 %3182
    %v3184 = vsel %vm192, %v3165, 0.0
    %3185 = vadd.xlane.f32.xlu0 %v3184
    %v3186 = vpop.xlane.xlu0 %3185
    %v3187 = vsel %vm192, %v3167, 0.0
    %3188 = vadd.xlane.f32.xlu0 %v3187
    %v3189 = vpop.xlane.xlu0 %3188
    %v3190 = vsel %vm192, %v3169, 0.0
    %3191 = vadd.xlane.f32.xlu0 %v3190
    %v3192 = vpop.xlane.xlu0 %3191
    %v3193 = vsel %vm192, %v3171, 0.0
    %3194 = vadd.xlane.f32.xlu0 %v3193
    %v3195 = vpop.xlane.xlu0 %3194
    %v3196 = vrcp.pop %v3174
    %v3197 = vrcp.pop %v3177
    %v3198 = vrcp.pop %v3180
    %v3199 = vrcp.pop %v3183
    %v3200 = vrcp.pop %v3186
    %v3201 = vrcp.pop %v3189
    %v3202 = vrcp.pop %v3192
    %v3203 = vrcp.pop %v3195
    %v3204 = vmul.f32 %v3157, %v3196
    %v3205 = vmul.f32 %v3159, %v3197
    %v3206 = vmul.f32 %v3161, %v3198
    %v3207 = vmul.f32 %v3163, %v3199
    %v3208 = vmul.f32 %v3165, %v3200
    %v3209 = vmul.f32 %v3167, %v3201
    %v3210 = vmul.f32 %v3169, %v3202
    %v3211 = vmul.f32 %v3171, %v3203
    %3212 = vrot.lane.b32.xlu0 %v2494, 64
    %v3213 = vpop.permute.xlu0 %3212
    %v3216 = vsel %vm192, %v3204, 0
    %3218 = vmatprep.subr.mxu0 0.0
    %3219 = vmatpush1.msra.mxu0 0.0
    %3220 = vmatprep.subr.mxu0 0.0
    %3221 = vmatpush1.msra.mxu0 0.0
    %3222 = vmatprep.subr.mxu0 0.0
    %3223 = vmatpush1.msra.mxu0 0.0
    %3224 = vmatprep.subr.mxu0 0.0
    %3225 = vmatpush1.msra.mxu0 0.0
    %3226 = vmatprep.subr.mxu0 0.0
    %3227 = vmatpush1.msra.mxu0 0.0
    %3228 = vmatprep.subr.mxu0 0.0
    %3229 = vmatpush1.msra.mxu0 0.0
    %3230 = vmatprep.subr.mxu0 0.0
    %3231 = vmatpush1.msra.mxu0 0.0
    %3232 = vmatprep.subr.mxu0 0.0
    %3233 = vmatpush1.msra.mxu0 0.0
    %3234 = vmatprep.subr.mxu0 0.0
    %3235 = vmatpush1.msra.mxu0 0.0
    %3236 = vmatprep.subr.mxu0 0.0
    %3237 = vmatpush1.msra.mxu0 0.0
    %3238 = vmatprep.subr.mxu0 0.0
    %3239 = vmatpush1.msra.mxu0 0.0
    %3240 = vmatprep.subr.mxu0 0.0
    %3241 = vmatpush1.msra.mxu0 0.0
    %3242 = vmatprep.subr.mxu0 0.0
    %3243 = vmatpush1.msra.mxu0 0.0
    %3244 = vmatprep.subr.mxu0 0.0
    %3245 = vmatpush1.msra.mxu0 0.0
    %3246 = vmatprep.subr.mxu0 0.0
    %3247 = vmatpush1.msra.mxu0 0.0
    %3248 = vmatprep.subr.mxu0 0.0
    %3249 = vmatpush1.msra.mxu0 %v3213
    %3250 = vmatprep.subr.mxu0 0.0
    %3251 = vmatpush2.msra.mxu0 0.0
    %3252 = vmatprep.subr.mxu0 0.0
    %3253 = vmatpush2.msra.mxu0 0.0
    %3254 = vmatprep.subr.mxu0 0.0
    %3255 = vmatpush2.msra.mxu0 0.0
    %3256 = vmatprep.subr.mxu0 0.0
    %3257 = vmatpush2.msra.mxu0 0.0
    %3258 = vmatprep.subr.mxu0 0.0
    %3259 = vmatpush2.msra.mxu0 0.0
    %3260 = vmatprep.subr.mxu0 0.0
    %3261 = vmatpush2.msra.mxu0 0.0
    %3262 = vmatprep.subr.mxu0 0.0
    %3263 = vmatpush2.msra.mxu0 0.0
    %3264 = vmatprep.subr.mxu0 0.0
    %3265 = vmatpush2.msra.mxu0 0.0
    %3266 = vmatprep.subr.mxu0 0.0
    %3267 = vmatpush2.msra.mxu0 0.0
    %3268 = vmatprep.subr.mxu0 0.0
    %3269 = vmatpush2.msra.mxu0 0.0
    %3270 = vmatprep.subr.mxu0 0.0
    %3271 = vmatpush2.msra.mxu0 0.0
    %3272 = vmatprep.subr.mxu0 0.0
    %3273 = vmatpush2.msra.mxu0 0.0
    %3274 = vmatprep.subr.mxu0 0.0
    %3275 = vmatpush2.msra.mxu0 0.0
    %3276 = vmatprep.subr.mxu0 0.0
    %3277 = vmatpush2.msra.mxu0 0.0
    %3278 = vmatprep.subr.mxu0 0.0
    %3279 = vmatpush2.msra.mxu0 0.0
    %3280 = vmatprep.subr.mxu0 0.0
    %3281 = vmatpush2.msra.mxu0 0.0
    %3282 = vmatprep.mubr.f32.mxu0 0.0
    %3283 = vmatmul.mubr.f32.gmra.mxu0 %v3216
    %v3284 = vpop.f32.mrf.mxu0
    %v3285 = vadd.f32 0.0, %v3284
    %v3286 = vpop.f32.mrf.mxu0
    %3287 = vdwg.mxu0
    %3288 = vrot.lane.b32.xlu0 %v2499, 64
    %v3289 = vpop.permute.xlu0 %3288
    %v3292 = vsel %vm192, %v3205, 0
    %3294 = vmatprep.subr.mxu0 0.0
    %3295 = vmatpush1.msra.mxu0 0.0
    %3296 = vmatprep.subr.mxu0 0.0
    %3297 = vmatpush1.msra.mxu0 0.0
    %3298 = vmatprep.subr.mxu0 0.0
    %3299 = vmatpush1.msra.mxu0 0.0
    %3300 = vmatprep.subr.mxu0 0.0
    %3301 = vmatpush1.msra.mxu0 0.0
    %3302 = vmatprep.subr.mxu0 0.0
    %3303 = vmatpush1.msra.mxu0 0.0
    %3304 = vmatprep.subr.mxu0 0.0
    %3305 = vmatpush1.msra.mxu0 0.0
    %3306 = vmatprep.subr.mxu0 0.0
    %3307 = vmatpush1.msra.mxu0 0.0
    %3308 = vmatprep.subr.mxu0 0.0
    %3309 = vmatpush1.msra.mxu0 0.0
    %3310 = vmatprep.subr.mxu0 0.0
    %3311 = vmatpush1.msra.mxu0 0.0
    %3312 = vmatprep.subr.mxu0 0.0
    %3313 = vmatpush1.msra.mxu0 0.0
    %3314 = vmatprep.subr.mxu0 0.0
    %3315 = vmatpush1.msra.mxu0 0.0
    %3316 = vmatprep.subr.mxu0 0.0
    %3317 = vmatpush1.msra.mxu0 0.0
    %3318 = vmatprep.subr.mxu0 0.0
    %3319 = vmatpush1.msra.mxu0 0.0
    %3320 = vmatprep.subr.mxu0 0.0
    %3321 = vmatpush1.msra.mxu0 0.0
    %3322 = vmatprep.subr.mxu0 0.0
    %3323 = vmatpush1.msra.mxu0 0.0
    %3324 = vmatprep.subr.mxu0 0.0
    %3325 = vmatpush1.msra.mxu0 %v3289
    %3326 = vmatprep.subr.mxu0 0.0
    %3327 = vmatpush2.msra.mxu0 0.0
    %3328 = vmatprep.subr.mxu0 0.0
    %3329 = vmatpush2.msra.mxu0 0.0
    %3330 = vmatprep.subr.mxu0 0.0
    %3331 = vmatpush2.msra.mxu0 0.0
    %3332 = vmatprep.subr.mxu0 0.0
    %3333 = vmatpush2.msra.mxu0 0.0
    %3334 = vmatprep.subr.mxu0 0.0
    %3335 = vmatpush2.msra.mxu0 0.0
    %3336 = vmatprep.subr.mxu0 0.0
    %3337 = vmatpush2.msra.mxu0 0.0
    %3338 = vmatprep.subr.mxu0 0.0
    %3339 = vmatpush2.msra.mxu0 0.0
    %3340 = vmatprep.subr.mxu0 0.0
    %3341 = vmatpush2.msra.mxu0 0.0
    %3342 = vmatprep.subr.mxu0 0.0
    %3343 = vmatpush2.msra.mxu0 0.0
    %3344 = vmatprep.subr.mxu0 0.0
    %3345 = vmatpush2.msra.mxu0 0.0
    %3346 = vmatprep.subr.mxu0 0.0
    %3347 = vmatpush2.msra.mxu0 0.0
    %3348 = vmatprep.subr.mxu0 0.0
    %3349 = vmatpush2.msra.mxu0 0.0
    %3350 = vmatprep.subr.mxu0 0.0
    %3351 = vmatpush2.msra.mxu0 0.0
    %3352 = vmatprep.subr.mxu0 0.0
    %3353 = vmatpush2.msra.mxu0 0.0
    %3354 = vmatprep.subr.mxu0 0.0
    %3355 = vmatpush2.msra.mxu0 0.0
    %3356 = vmatprep.subr.mxu0 0.0
    %3357 = vmatpush2.msra.mxu0 0.0
    %3358 = vmatprep.mubr.f32.mxu0 0.0
    %3359 = vmatmul.mubr.f32.gmra.mxu0 %v3292
    %v3360 = vpop.f32.mrf.mxu0
    %v3361 = vadd.f32 0.0, %v3360
    %v3362 = vpop.f32.mrf.mxu0
    %3363 = vdwg.mxu0
    %3364 = vrot.lane.b32.xlu0 %v2505, 64
    %v3365 = vpop.permute.xlu0 %3364
    %v3368 = vsel %vm192, %v3206, 0
    %3370 = vmatprep.subr.mxu0 0.0
    %3371 = vmatpush1.msra.mxu0 0.0
    %3372 = vmatprep.subr.mxu0 0.0
    %3373 = vmatpush1.msra.mxu0 0.0
    %3374 = vmatprep.subr.mxu0 0.0
    %3375 = vmatpush1.msra.mxu0 0.0
    %3376 = vmatprep.subr.mxu0 0.0
    %3377 = vmatpush1.msra.mxu0 0.0
    %3378 = vmatprep.subr.mxu0 0.0
    %3379 = vmatpush1.msra.mxu0 0.0
    %3380 = vmatprep.subr.mxu0 0.0
    %3381 = vmatpush1.msra.mxu0 0.0
    %3382 = vmatprep.subr.mxu0 0.0
    %3383 = vmatpush1.msra.mxu0 0.0
    %3384 = vmatprep.subr.mxu0 0.0
    %3385 = vmatpush1.msra.mxu0 0.0
    %3386 = vmatprep.subr.mxu0 0.0
    %3387 = vmatpush1.msra.mxu0 0.0
    %3388 = vmatprep.subr.mxu0 0.0
    %3389 = vmatpush1.msra.mxu0 0.0
    %3390 = vmatprep.subr.mxu0 0.0
    %3391 = vmatpush1.msra.mxu0 0.0
    %3392 = vmatprep.subr.mxu0 0.0
    %3393 = vmatpush1.msra.mxu0 0.0
    %3394 = vmatprep.subr.mxu0 0.0
    %3395 = vmatpush1.msra.mxu0 0.0
    %3396 = vmatprep.subr.mxu0 0.0
    %3397 = vmatpush1.msra.mxu0 0.0
    %3398 = vmatprep.subr.mxu0 0.0
    %3399 = vmatpush1.msra.mxu0 0.0
    %3400 = vmatprep.subr.mxu0 0.0
    %3401 = vmatpush1.msra.mxu0 %v3365
    %3402 = vmatprep.subr.mxu0 0.0
    %3403 = vmatpush2.msra.mxu0 0.0
    %3404 = vmatprep.subr.mxu0 0.0
    %3405 = vmatpush2.msra.mxu0 0.0
    %3406 = vmatprep.subr.mxu0 0.0
    %3407 = vmatpush2.msra.mxu0 0.0
    %3408 = vmatprep.subr.mxu0 0.0
    %3409 = vmatpush2.msra.mxu0 0.0
    %3410 = vmatprep.subr.mxu0 0.0
    %3411 = vmatpush2.msra.mxu0 0.0
    %3412 = vmatprep.subr.mxu0 0.0
    %3413 = vmatpush2.msra.mxu0 0.0
    %3414 = vmatprep.subr.mxu0 0.0
    %3415 = vmatpush2.msra.mxu0 0.0
    %3416 = vmatprep.subr.mxu0 0.0
    %3417 = vmatpush2.msra.mxu0 0.0
    %3418 = vmatprep.subr.mxu0 0.0
    %3419 = vmatpush2.msra.mxu0 0.0
    %3420 = vmatprep.subr.mxu0 0.0
    %3421 = vmatpush2.msra.mxu0 0.0
    %3422 = vmatprep.subr.mxu0 0.0
    %3423 = vmatpush2.msra.mxu0 0.0
    %3424 = vmatprep.subr.mxu0 0.0
    %3425 = vmatpush2.msra.mxu0 0.0
    %3426 = vmatprep.subr.mxu0 0.0
    %3427 = vmatpush2.msra.mxu0 0.0
    %3428 = vmatprep.subr.mxu0 0.0
    %3429 = vmatpush2.msra.mxu0 0.0
    %3430 = vmatprep.subr.mxu0 0.0
    %3431 = vmatpush2.msra.mxu0 0.0
    %3432 = vmatprep.subr.mxu0 0.0
    %3433 = vmatpush2.msra.mxu0 0.0
    %3434 = vmatprep.mubr.f32.mxu0 0.0
    %3435 = vmatmul.mubr.f32.gmra.mxu0 %v3368
    %v3436 = vpop.f32.mrf.mxu0
    %v3437 = vadd.f32 0.0, %v3436
    %v3438 = vpop.f32.mrf.mxu0
    %3439 = vdwg.mxu0
    %3440 = vrot.lane.b32.xlu0 %v2507, 64
    %v3441 = vpop.permute.xlu0 %3440
    %v3444 = vsel %vm192, %v3207, 0
    %3446 = vmatprep.subr.mxu0 0.0
    %3447 = vmatpush1.msra.mxu0 0.0
    %3448 = vmatprep.subr.mxu0 0.0
    %3449 = vmatpush1.msra.mxu0 0.0
    %3450 = vmatprep.subr.mxu0 0.0
    %3451 = vmatpush1.msra.mxu0 0.0
    %3452 = vmatprep.subr.mxu0 0.0
    %3453 = vmatpush1.msra.mxu0 0.0
    %3454 = vmatprep.subr.mxu0 0.0
    %3455 = vmatpush1.msra.mxu0 0.0
    %3456 = vmatprep.subr.mxu0 0.0
    %3457 = vmatpush1.msra.mxu0 0.0
    %3458 = vmatprep.subr.mxu0 0.0
    %3459 = vmatpush1.msra.mxu0 0.0
    %3460 = vmatprep.subr.mxu0 0.0
    %3461 = vmatpush1.msra.mxu0 0.0
    %3462 = vmatprep.subr.mxu0 0.0
    %3463 = vmatpush1.msra.mxu0 0.0
    %3464 = vmatprep.subr.mxu0 0.0
    %3465 = vmatpush1.msra.mxu0 0.0
    %3466 = vmatprep.subr.mxu0 0.0
    %3467 = vmatpush1.msra.mxu0 0.0
    %3468 = vmatprep.subr.mxu0 0.0
    %3469 = vmatpush1.msra.mxu0 0.0
    %3470 = vmatprep.subr.mxu0 0.0
    %3471 = vmatpush1.msra.mxu0 0.0
    %3472 = vmatprep.subr.mxu0 0.0
    %3473 = vmatpush1.msra.mxu0 0.0
    %3474 = vmatprep.subr.mxu0 0.0
    %3475 = vmatpush1.msra.mxu0 0.0
    %3476 = vmatprep.subr.mxu0 0.0
    %3477 = vmatpush1.msra.mxu0 %v3441
    %3478 = vmatprep.subr.mxu0 0.0
    %3479 = vmatpush2.msra.mxu0 0.0
    %3480 = vmatprep.subr.mxu0 0.0
    %3481 = vmatpush2.msra.mxu0 0.0
    %3482 = vmatprep.subr.mxu0 0.0
    %3483 = vmatpush2.msra.mxu0 0.0
    %3484 = vmatprep.subr.mxu0 0.0
    %3485 = vmatpush2.msra.mxu0 0.0
    %3486 = vmatprep.subr.mxu0 0.0
    %3487 = vmatpush2.msra.mxu0 0.0
    %3488 = vmatprep.subr.mxu0 0.0
    %3489 = vmatpush2.msra.mxu0 0.0
    %3490 = vmatprep.subr.mxu0 0.0
    %3491 = vmatpush2.msra.mxu0 0.0
    %3492 = vmatprep.subr.mxu0 0.0
    %3493 = vmatpush2.msra.mxu0 0.0
    %3494 = vmatprep.subr.mxu0 0.0
    %3495 = vmatpush2.msra.mxu0 0.0
    %3496 = vmatprep.subr.mxu0 0.0
    %3497 = vmatpush2.msra.mxu0 0.0
    %3498 = vmatprep.subr.mxu0 0.0
    %3499 = vmatpush2.msra.mxu0 0.0
    %3500 = vmatprep.subr.mxu0 0.0
    %3501 = vmatpush2.msra.mxu0 0.0
    %3502 = vmatprep.subr.mxu0 0.0
    %3503 = vmatpush2.msra.mxu0 0.0
    %3504 = vmatprep.subr.mxu0 0.0
    %3505 = vmatpush2.msra.mxu0 0.0
    %3506 = vmatprep.subr.mxu0 0.0
    %3507 = vmatpush2.msra.mxu0 0.0
    %3508 = vmatprep.subr.mxu0 0.0
    %3509 = vmatpush2.msra.mxu0 0.0
    %3510 = vmatprep.mubr.f32.mxu0 0.0
    %3511 = vmatmul.mubr.f32.gmra.mxu0 %v3444
    %v3512 = vpop.f32.mrf.mxu0
    %v3513 = vadd.f32 0.0, %v3512
    %v3514 = vpop.f32.mrf.mxu0
    %3515 = vdwg.mxu0
    %3516 = vrot.lane.b32.xlu0 %v2509, 64
    %v3517 = vpop.permute.xlu0 %3516
    %v3520 = vsel %vm192, %v3208, 0
    %3522 = vmatprep.subr.mxu0 0.0
    %3523 = vmatpush1.msra.mxu0 0.0
    %3524 = vmatprep.subr.mxu0 0.0
    %3525 = vmatpush1.msra.mxu0 0.0
    %3526 = vmatprep.subr.mxu0 0.0
    %3527 = vmatpush1.msra.mxu0 0.0
    %3528 = vmatprep.subr.mxu0 0.0
    %3529 = vmatpush1.msra.mxu0 0.0
    %3530 = vmatprep.subr.mxu0 0.0
    %3531 = vmatpush1.msra.mxu0 0.0
    %3532 = vmatprep.subr.mxu0 0.0
    %3533 = vmatpush1.msra.mxu0 0.0
    %3534 = vmatprep.subr.mxu0 0.0
    %3535 = vmatpush1.msra.mxu0 0.0
    %3536 = vmatprep.subr.mxu0 0.0
    %3537 = vmatpush1.msra.mxu0 0.0
    %3538 = vmatprep.subr.mxu0 0.0
    %3539 = vmatpush1.msra.mxu0 0.0
    %3540 = vmatprep.subr.mxu0 0.0
    %3541 = vmatpush1.msra.mxu0 0.0
    %3542 = vmatprep.subr.mxu0 0.0
    %3543 = vmatpush1.msra.mxu0 0.0
    %3544 = vmatprep.subr.mxu0 0.0
    %3545 = vmatpush1.msra.mxu0 0.0
    %3546 = vmatprep.subr.mxu0 0.0
    %3547 = vmatpush1.msra.mxu0 0.0
    %3548 = vmatprep.subr.mxu0 0.0
    %3549 = vmatpush1.msra.mxu0 0.0
    %3550 = vmatprep.subr.mxu0 0.0
    %3551 = vmatpush1.msra.mxu0 0.0
    %3552 = vmatprep.subr.mxu0 0.0
    %3553 = vmatpush1.msra.mxu0 %v3517
    %3554 = vmatprep.subr.mxu0 0.0
    %3555 = vmatpush2.msra.mxu0 0.0
    %3556 = vmatprep.subr.mxu0 0.0
    %3557 = vmatpush2.msra.mxu0 0.0
    %3558 = vmatprep.subr.mxu0 0.0
    %3559 = vmatpush2.msra.mxu0 0.0
    %3560 = vmatprep.subr.mxu0 0.0
    %3561 = vmatpush2.msra.mxu0 0.0
    %3562 = vmatprep.subr.mxu0 0.0
    %3563 = vmatpush2.msra.mxu0 0.0
    %3564 = vmatprep.subr.mxu0 0.0
    %3565 = vmatpush2.msra.mxu0 0.0
    %3566 = vmatprep.subr.mxu0 0.0
    %3567 = vmatpush2.msra.mxu0 0.0
    %3568 = vmatprep.subr.mxu0 0.0
    %3569 = vmatpush2.msra.mxu0 0.0
    %3570 = vmatprep.subr.mxu0 0.0
    %3571 = vmatpush2.msra.mxu0 0.0
    %3572 = vmatprep.subr.mxu0 0.0
    %3573 = vmatpush2.msra.mxu0 0.0
    %3574 = vmatprep.subr.mxu0 0.0
    %3575 = vmatpush2.msra.mxu0 0.0
    %3576 = vmatprep.subr.mxu0 0.0
    %3577 = vmatpush2.msra.mxu0 0.0
    %3578 = vmatprep.subr.mxu0 0.0
    %3579 = vmatpush2.msra.mxu0 0.0
    %3580 = vmatprep.subr.mxu0 0.0
    %3581 = vmatpush2.msra.mxu0 0.0
    %3582 = vmatprep.subr.mxu0 0.0
    %3583 = vmatpush2.msra.mxu0 0.0
    %3584 = vmatprep.subr.mxu0 0.0
    %3585 = vmatpush2.msra.mxu0 0.0
    %3586 = vmatprep.mubr.f32.mxu0 0.0
    %3587 = vmatmul.mubr.f32.gmra.mxu0 %v3520
    %v3588 = vpop.f32.mrf.mxu0
    %v3589 = vadd.f32 0.0, %v3588
    %v3590 = vpop.f32.mrf.mxu0
    %3591 = vdwg.mxu0
    %3592 = vrot.lane.b32.xlu0 %v2511, 64
    %v3593 = vpop.permute.xlu0 %3592
    %v3596 = vsel %vm192, %v3209, 0
    %3598 = vmatprep.subr.mxu0 0.0
    %3599 = vmatpush1.msra.mxu0 0.0
    %3600 = vmatprep.subr.mxu0 0.0
    %3601 = vmatpush1.msra.mxu0 0.0
    %3602 = vmatprep.subr.mxu0 0.0
    %3603 = vmatpush1.msra.mxu0 0.0
    %3604 = vmatprep.subr.mxu0 0.0
    %3605 = vmatpush1.msra.mxu0 0.0
    %3606 = vmatprep.subr.mxu0 0.0
    %3607 = vmatpush1.msra.mxu0 0.0
    %3608 = vmatprep.subr.mxu0 0.0
    %3609 = vmatpush1.msra.mxu0 0.0
    %3610 = vmatprep.subr.mxu0 0.0
    %3611 = vmatpush1.msra.mxu0 0.0
    %3612 = vmatprep.subr.mxu0 0.0
    %3613 = vmatpush1.msra.mxu0 0.0
    %3614 = vmatprep.subr.mxu0 0.0
    %3615 = vmatpush1.msra.mxu0 0.0
    %3616 = vmatprep.subr.mxu0 0.0
    %3617 = vmatpush1.msra.mxu0 0.0
    %3618 = vmatprep.subr.mxu0 0.0
    %3619 = vmatpush1.msra.mxu0 0.0
    %3620 = vmatprep.subr.mxu0 0.0
    %3621 = vmatpush1.msra.mxu0 0.0
    %3622 = vmatprep.subr.mxu0 0.0
    %3623 = vmatpush1.msra.mxu0 0.0
    %3624 = vmatprep.subr.mxu0 0.0
    %3625 = vmatpush1.msra.mxu0 0.0
    %3626 = vmatprep.subr.mxu0 0.0
    %3627 = vmatpush1.msra.mxu0 0.0
    %3628 = vmatprep.subr.mxu0 0.0
    %3629 = vmatpush1.msra.mxu0 %v3593
    %3630 = vmatprep.subr.mxu0 0.0
    %3631 = vmatpush2.msra.mxu0 0.0
    %3632 = vmatprep.subr.mxu0 0.0
    %3633 = vmatpush2.msra.mxu0 0.0
    %3634 = vmatprep.subr.mxu0 0.0
    %3635 = vmatpush2.msra.mxu0 0.0
    %3636 = vmatprep.subr.mxu0 0.0
    %3637 = vmatpush2.msra.mxu0 0.0
    %3638 = vmatprep.subr.mxu0 0.0
    %3639 = vmatpush2.msra.mxu0 0.0
    %3640 = vmatprep.subr.mxu0 0.0
    %3641 = vmatpush2.msra.mxu0 0.0
    %3642 = vmatprep.subr.mxu0 0.0
    %3643 = vmatpush2.msra.mxu0 0.0
    %3644 = vmatprep.subr.mxu0 0.0
    %3645 = vmatpush2.msra.mxu0 0.0
    %3646 = vmatprep.subr.mxu0 0.0
    %3647 = vmatpush2.msra.mxu0 0.0
    %3648 = vmatprep.subr.mxu0 0.0
    %3649 = vmatpush2.msra.mxu0 0.0
    %3650 = vmatprep.subr.mxu0 0.0
    %3651 = vmatpush2.msra.mxu0 0.0
    %3652 = vmatprep.subr.mxu0 0.0
    %3653 = vmatpush2.msra.mxu0 0.0
    %3654 = vmatprep.subr.mxu0 0.0
    %3655 = vmatpush2.msra.mxu0 0.0
    %3656 = vmatprep.subr.mxu0 0.0
    %3657 = vmatpush2.msra.mxu0 0.0
    %3658 = vmatprep.subr.mxu0 0.0
    %3659 = vmatpush2.msra.mxu0 0.0
    %3660 = vmatprep.subr.mxu0 0.0
    %3661 = vmatpush2.msra.mxu0 0.0
    %3662 = vmatprep.mubr.f32.mxu0 0.0
    %3663 = vmatmul.mubr.f32.gmra.mxu0 %v3596
    %v3664 = vpop.f32.mrf.mxu0
    %v3665 = vadd.f32 0.0, %v3664
    %v3666 = vpop.f32.mrf.mxu0
    %3667 = vdwg.mxu0
    %3668 = vrot.lane.b32.xlu0 %v2513, 64
    %v3669 = vpop.permute.xlu0 %3668
    %v3672 = vsel %vm192, %v3210, 0
    %3674 = vmatprep.subr.mxu0 0.0
    %3675 = vmatpush1.msra.mxu0 0.0
    %3676 = vmatprep.subr.mxu0 0.0
    %3677 = vmatpush1.msra.mxu0 0.0
    %3678 = vmatprep.subr.mxu0 0.0
    %3679 = vmatpush1.msra.mxu0 0.0
    %3680 = vmatprep.subr.mxu0 0.0
    %3681 = vmatpush1.msra.mxu0 0.0
    %3682 = vmatprep.subr.mxu0 0.0
    %3683 = vmatpush1.msra.mxu0 0.0
    %3684 = vmatprep.subr.mxu0 0.0
    %3685 = vmatpush1.msra.mxu0 0.0
    %3686 = vmatprep.subr.mxu0 0.0
    %3687 = vmatpush1.msra.mxu0 0.0
    %3688 = vmatprep.subr.mxu0 0.0
    %3689 = vmatpush1.msra.mxu0 0.0
    %3690 = vmatprep.subr.mxu0 0.0
    %3691 = vmatpush1.msra.mxu0 0.0
    %3692 = vmatprep.subr.mxu0 0.0
    %3693 = vmatpush1.msra.mxu0 0.0
    %3694 = vmatprep.subr.mxu0 0.0
    %3695 = vmatpush1.msra.mxu0 0.0
    %3696 = vmatprep.subr.mxu0 0.0
    %3697 = vmatpush1.msra.mxu0 0.0
    %3698 = vmatprep.subr.mxu0 0.0
    %3699 = vmatpush1.msra.mxu0 0.0
    %3700 = vmatprep.subr.mxu0 0.0
    %3701 = vmatpush1.msra.mxu0 0.0
    %3702 = vmatprep.subr.mxu0 0.0
    %3703 = vmatpush1.msra.mxu0 0.0
    %3704 = vmatprep.subr.mxu0 0.0
    %3705 = vmatpush1.msra.mxu0 %v3669
    %3706 = vmatprep.subr.mxu0 0.0
    %3707 = vmatpush2.msra.mxu0 0.0
    %3708 = vmatprep.subr.mxu0 0.0
    %3709 = vmatpush2.msra.mxu0 0.0
    %3710 = vmatprep.subr.mxu0 0.0
    %3711 = vmatpush2.msra.mxu0 0.0
    %3712 = vmatprep.subr.mxu0 0.0
    %3713 = vmatpush2.msra.mxu0 0.0
    %3714 = vmatprep.subr.mxu0 0.0
    %3715 = vmatpush2.msra.mxu0 0.0
    %3716 = vmatprep.subr.mxu0 0.0
    %3717 = vmatpush2.msra.mxu0 0.0
    %3718 = vmatprep.subr.mxu0 0.0
    %3719 = vmatpush2.msra.mxu0 0.0
    %3720 = vmatprep.subr.mxu0 0.0
    %3721 = vmatpush2.msra.mxu0 0.0
    %3722 = vmatprep.subr.mxu0 0.0
    %3723 = vmatpush2.msra.mxu0 0.0
    %3724 = vmatprep.subr.mxu0 0.0
    %3725 = vmatpush2.msra.mxu0 0.0
    %3726 = vmatprep.subr.mxu0 0.0
    %3727 = vmatpush2.msra.mxu0 0.0
    %3728 = vmatprep.subr.mxu0 0.0
    %3729 = vmatpush2.msra.mxu0 0.0
    %3730 = vmatprep.subr.mxu0 0.0
    %3731 = vmatpush2.msra.mxu0 0.0
    %3732 = vmatprep.subr.mxu0 0.0
    %3733 = vmatpush2.msra.mxu0 0.0
    %3734 = vmatprep.subr.mxu0 0.0
    %3735 = vmatpush2.msra.mxu0 0.0
    %3736 = vmatprep.subr.mxu0 0.0
    %3737 = vmatpush2.msra.mxu0 0.0
    %3738 = vmatprep.mubr.f32.mxu0 0.0
    %3739 = vmatmul.mubr.f32.gmra.mxu0 %v3672
    %v3740 = vpop.f32.mrf.mxu0
    %v3741 = vadd.f32 0.0, %v3740
    %v3742 = vpop.f32.mrf.mxu0
    %3743 = vdwg.mxu0
    %3744 = vrot.lane.b32.xlu0 %v2515, 64
    %v3745 = vpop.permute.xlu0 %3744
    %v3748 = vsel %vm192, %v3211, 0
    %3750 = vmatprep.subr.mxu0 0.0
    %3751 = vmatpush1.msra.mxu0 0.0
    %3752 = vmatprep.subr.mxu0 0.0
    %3753 = vmatpush1.msra.mxu0 0.0
    %3754 = vmatprep.subr.mxu0 0.0
    %3755 = vmatpush1.msra.mxu0 0.0
    %3756 = vmatprep.subr.mxu0 0.0
    %3757 = vmatpush1.msra.mxu0 0.0
    %3758 = vmatprep.subr.mxu0 0.0
    %3759 = vmatpush1.msra.mxu0 0.0
    %3760 = vmatprep.subr.mxu0 0.0
    %3761 = vmatpush1.msra.mxu0 0.0
    %3762 = vmatprep.subr.mxu0 0.0
    %3763 = vmatpush1.msra.mxu0 0.0
    %3764 = vmatprep.subr.mxu0 0.0
    %3765 = vmatpush1.msra.mxu0 0.0
    %3766 = vmatprep.subr.mxu0 0.0
    %3767 = vmatpush1.msra.mxu0 0.0
    %3768 = vmatprep.subr.mxu0 0.0
    %3769 = vmatpush1.msra.mxu0 0.0
    %3770 = vmatprep.subr.mxu0 0.0
    %3771 = vmatpush1.msra.mxu0 0.0
    %3772 = vmatprep.subr.mxu0 0.0
    %3773 = vmatpush1.msra.mxu0 0.0
    %3774 = vmatprep.subr.mxu0 0.0
    %3775 = vmatpush1.msra.mxu0 0.0
    %3776 = vmatprep.subr.mxu0 0.0
    %3777 = vmatpush1.msra.mxu0 0.0
    %3778 = vmatprep.subr.mxu0 0.0
    %3779 = vmatpush1.msra.mxu0 0.0
    %3780 = vmatprep.subr.mxu0 0.0
    %3781 = vmatpush1.msra.mxu0 %v3745
    %3782 = vmatprep.subr.mxu0 0.0
    %3783 = vmatpush2.msra.mxu0 0.0
    %3784 = vmatprep.subr.mxu0 0.0
    %3785 = vmatpush2.msra.mxu0 0.0
    %3786 = vmatprep.subr.mxu0 0.0
    %3787 = vmatpush2.msra.mxu0 0.0
    %3788 = vmatprep.subr.mxu0 0.0
    %3789 = vmatpush2.msra.mxu0 0.0
    %3790 = vmatprep.subr.mxu0 0.0
    %3791 = vmatpush2.msra.mxu0 0.0
    %3792 = vmatprep.subr.mxu0 0.0
    %3793 = vmatpush2.msra.mxu0 0.0
    %3794 = vmatprep.subr.mxu0 0.0
    %3795 = vmatpush2.msra.mxu0 0.0
    %3796 = vmatprep.subr.mxu0 0.0
    %3797 = vmatpush2.msra.mxu0 0.0
    %3798 = vmatprep.subr.mxu0 0.0
    %3799 = vmatpush2.msra.mxu0 0.0
    %3800 = vmatprep.subr.mxu0 0.0
    %3801 = vmatpush2.msra.mxu0 0.0
    %3802 = vmatprep.subr.mxu0 0.0
    %3803 = vmatpush2.msra.mxu0 0.0
    %3804 = vmatprep.subr.mxu0 0.0
    %3805 = vmatpush2.msra.mxu0 0.0
    %3806 = vmatprep.subr.mxu0 0.0
    %3807 = vmatpush2.msra.mxu0 0.0
    %3808 = vmatprep.subr.mxu0 0.0
    %3809 = vmatpush2.msra.mxu0 0.0
    %3810 = vmatprep.subr.mxu0 0.0
    %3811 = vmatpush2.msra.mxu0 0.0
    %3812 = vmatprep.subr.mxu0 0.0
    %3813 = vmatpush2.msra.mxu0 0.0
    %3814 = vmatprep.mubr.f32.mxu0 0.0
    %3815 = vmatmul.mubr.f32.gmra.mxu0 %v3748
    %v3816 = vpop.f32.mrf.mxu0
    %v3817 = vadd.f32 0.0, %v3816
    %v3818 = vpop.f32.mrf.mxu0
    %3819 = vdwg.mxu0
    %s3820 = scalar_lea.vmem %s5, 64
    %v3821 = vld [vmem:[%s3820] sm:$0xff]
    %v3822 = vld [vmem:[%s3820 + $0x8] sm:$0xff]
    %v3823 = vld [vmem:[%s3820 + $0x10] sm:$0xff]
    %v3824 = vld [vmem:[%s3820 + $0x18] sm:$0xff]
    %v3825 = vld [vmem:[%s3820 + $0x20] sm:$0xff]
    %v3826 = vld [vmem:[%s3820 + $0x28] sm:$0xff]
    %v3827 = vld [vmem:[%s3820 + $0x30] sm:$0xff]
    %v3828 = vld [vmem:[%s3820 + $0x38] sm:$0xff]
    %v3830 = vsel %vm192, %v3285, 0
    %3832 = vmatprep.subr.mxu0 0.0
    %3833 = vmatpush1.msra.mxu0 0.0
    %3834 = vmatprep.subr.mxu0 0.0
    %3835 = vmatpush1.msra.mxu0 0.0
    %3836 = vmatprep.subr.mxu0 0.0
    %3837 = vmatpush1.msra.mxu0 0.0
    %3838 = vmatprep.subr.mxu0 0.0
    %3839 = vmatpush1.msra.mxu0 0.0
    %3840 = vmatprep.subr.mxu0 0.0
    %3841 = vmatpush1.msra.mxu0 0.0
    %3842 = vmatprep.subr.mxu0 0.0
    %3843 = vmatpush1.msra.mxu0 0.0
    %3844 = vmatprep.subr.mxu0 0.0
    %3845 = vmatpush1.msra.mxu0 0.0
    %3846 = vmatprep.subr.mxu0 0.0
    %3847 = vmatpush1.msra.mxu0 0.0
    %3848 = vmatprep.subr.mxu0 0.0
    %3849 = vmatpush1.msra.mxu0 0.0
    %3850 = vmatprep.subr.mxu0 0.0
    %3851 = vmatpush1.msra.mxu0 0.0
    %3852 = vmatprep.subr.mxu0 0.0
    %3853 = vmatpush1.msra.mxu0 0.0
    %3854 = vmatprep.subr.mxu0 0.0
    %3855 = vmatpush1.msra.mxu0 0.0
    %3856 = vmatprep.subr.mxu0 0.0
    %3857 = vmatpush1.msra.mxu0 0.0
    %3858 = vmatprep.subr.mxu0 0.0
    %3859 = vmatpush1.msra.mxu0 0.0
    %3860 = vmatprep.subr.mxu0 0.0
    %3861 = vmatpush1.msra.mxu0 0.0
    %3862 = vmatprep.subr.mxu0 0.0
    %3863 = vmatpush1.msra.mxu0 %v3821
    %3864 = vmatprep.subr.mxu0 0.0
    %3865 = vmatpush2.msra.mxu0 0.0
    %3866 = vmatprep.subr.mxu0 0.0
    %3867 = vmatpush2.msra.mxu0 0.0
    %3868 = vmatprep.subr.mxu0 0.0
    %3869 = vmatpush2.msra.mxu0 0.0
    %3870 = vmatprep.subr.mxu0 0.0
    %3871 = vmatpush2.msra.mxu0 0.0
    %3872 = vmatprep.subr.mxu0 0.0
    %3873 = vmatpush2.msra.mxu0 0.0
    %3874 = vmatprep.subr.mxu0 0.0
    %3875 = vmatpush2.msra.mxu0 0.0
    %3876 = vmatprep.subr.mxu0 0.0
    %3877 = vmatpush2.msra.mxu0 0.0
    %3878 = vmatprep.subr.mxu0 0.0
    %3879 = vmatpush2.msra.mxu0 0.0
    %3880 = vmatprep.subr.mxu0 0.0
    %3881 = vmatpush2.msra.mxu0 0.0
    %3882 = vmatprep.subr.mxu0 0.0
    %3883 = vmatpush2.msra.mxu0 0.0
    %3884 = vmatprep.subr.mxu0 0.0
    %3885 = vmatpush2.msra.mxu0 0.0
    %3886 = vmatprep.subr.mxu0 0.0
    %3887 = vmatpush2.msra.mxu0 0.0
    %3888 = vmatprep.subr.mxu0 0.0
    %3889 = vmatpush2.msra.mxu0 0.0
    %3890 = vmatprep.subr.mxu0 0.0
    %3891 = vmatpush2.msra.mxu0 0.0
    %3892 = vmatprep.subr.mxu0 0.0
    %3893 = vmatpush2.msra.mxu0 0.0
    %3894 = vmatprep.subr.mxu0 0.0
    %3895 = vmatpush2.msra.mxu0 0.0
    %3896 = vmatprep.mubr.f32.mxu0 0.0
    %3897 = vmatmul.mubr.f32.gmra.mxu0 %v3830
    %v3898 = vpop.f32.mrf.mxu0
    %v3899 = vadd.f32 0.0, %v3898
    %v3900 = vpop.f32.mrf.mxu0
    %3901 = vdwg.mxu0
    %v3903 = vsel %vm192, %v3361, 0
    %3905 = vmatprep.subr.mxu0 0.0
    %3906 = vmatpush1.msra.mxu0 0.0
    %3907 = vmatprep.subr.mxu0 0.0
    %3908 = vmatpush1.msra.mxu0 0.0
    %3909 = vmatprep.subr.mxu0 0.0
    %3910 = vmatpush1.msra.mxu0 0.0
    %3911 = vmatprep.subr.mxu0 0.0
    %3912 = vmatpush1.msra.mxu0 0.0
    %3913 = vmatprep.subr.mxu0 0.0
    %3914 = vmatpush1.msra.mxu0 0.0
    %3915 = vmatprep.subr.mxu0 0.0
    %3916 = vmatpush1.msra.mxu0 0.0
    %3917 = vmatprep.subr.mxu0 0.0
    %3918 = vmatpush1.msra.mxu0 0.0
    %3919 = vmatprep.subr.mxu0 0.0
    %3920 = vmatpush1.msra.mxu0 0.0
    %3921 = vmatprep.subr.mxu0 0.0
    %3922 = vmatpush1.msra.mxu0 0.0
    %3923 = vmatprep.subr.mxu0 0.0
    %3924 = vmatpush1.msra.mxu0 0.0
    %3925 = vmatprep.subr.mxu0 0.0
    %3926 = vmatpush1.msra.mxu0 0.0
    %3927 = vmatprep.subr.mxu0 0.0
    %3928 = vmatpush1.msra.mxu0 0.0
    %3929 = vmatprep.subr.mxu0 0.0
    %3930 = vmatpush1.msra.mxu0 0.0
    %3931 = vmatprep.subr.mxu0 0.0
    %3932 = vmatpush1.msra.mxu0 0.0
    %3933 = vmatprep.subr.mxu0 0.0
    %3934 = vmatpush1.msra.mxu0 0.0
    %3935 = vmatprep.subr.mxu0 0.0
    %3936 = vmatpush1.msra.mxu0 %v3822
    %3937 = vmatprep.subr.mxu0 0.0
    %3938 = vmatpush2.msra.mxu0 0.0
    %3939 = vmatprep.subr.mxu0 0.0
    %3940 = vmatpush2.msra.mxu0 0.0
    %3941 = vmatprep.subr.mxu0 0.0
    %3942 = vmatpush2.msra.mxu0 0.0
    %3943 = vmatprep.subr.mxu0 0.0
    %3944 = vmatpush2.msra.mxu0 0.0
    %3945 = vmatprep.subr.mxu0 0.0
    %3946 = vmatpush2.msra.mxu0 0.0
    %3947 = vmatprep.subr.mxu0 0.0
    %3948 = vmatpush2.msra.mxu0 0.0
    %3949 = vmatprep.subr.mxu0 0.0
    %3950 = vmatpush2.msra.mxu0 0.0
    %3951 = vmatprep.subr.mxu0 0.0
    %3952 = vmatpush2.msra.mxu0 0.0
    %3953 = vmatprep.subr.mxu0 0.0
    %3954 = vmatpush2.msra.mxu0 0.0
    %3955 = vmatprep.subr.mxu0 0.0
    %3956 = vmatpush2.msra.mxu0 0.0
    %3957 = vmatprep.subr.mxu0 0.0
    %3958 = vmatpush2.msra.mxu0 0.0
    %3959 = vmatprep.subr.mxu0 0.0
    %3960 = vmatpush2.msra.mxu0 0.0
    %3961 = vmatprep.subr.mxu0 0.0
    %3962 = vmatpush2.msra.mxu0 0.0
    %3963 = vmatprep.subr.mxu0 0.0
    %3964 = vmatpush2.msra.mxu0 0.0
    %3965 = vmatprep.subr.mxu0 0.0
    %3966 = vmatpush2.msra.mxu0 0.0
    %3967 = vmatprep.subr.mxu0 0.0
    %3968 = vmatpush2.msra.mxu0 0.0
    %3969 = vmatprep.mubr.f32.mxu0 0.0
    %3970 = vmatmul.mubr.f32.gmra.mxu0 %v3903
    %v3971 = vpop.f32.mrf.mxu0
    %v3972 = vadd.f32 0.0, %v3971
    %v3973 = vpop.f32.mrf.mxu0
    %3974 = vdwg.mxu0
    %v3976 = vsel %vm192, %v3437, 0
    %3978 = vmatprep.subr.mxu0 0.0
    %3979 = vmatpush1.msra.mxu0 0.0
    %3980 = vmatprep.subr.mxu0 0.0
    %3981 = vmatpush1.msra.mxu0 0.0
    %3982 = vmatprep.subr.mxu0 0.0
    %3983 = vmatpush1.msra.mxu0 0.0
    %3984 = vmatprep.subr.mxu0 0.0
    %3985 = vmatpush1.msra.mxu0 0.0
    %3986 = vmatprep.subr.mxu0 0.0
    %3987 = vmatpush1.msra.mxu0 0.0
    %3988 = vmatprep.subr.mxu0 0.0
    %3989 = vmatpush1.msra.mxu0 0.0
    %3990 = vmatprep.subr.mxu0 0.0
    %3991 = vmatpush1.msra.mxu0 0.0
    %3992 = vmatprep.subr.mxu0 0.0
    %3993 = vmatpush1.msra.mxu0 0.0
    %3994 = vmatprep.subr.mxu0 0.0
    %3995 = vmatpush1.msra.mxu0 0.0
    %3996 = vmatprep.subr.mxu0 0.0
    %3997 = vmatpush1.msra.mxu0 0.0
    %3998 = vmatprep.subr.mxu0 0.0
    %3999 = vmatpush1.msra.mxu0 0.0
    %4000 = vmatprep.subr.mxu0 0.0
    %4001 = vmatpush1.msra.mxu0 0.0
    %4002 = vmatprep.subr.mxu0 0.0
    %4003 = vmatpush1.msra.mxu0 0.0
    %4004 = vmatprep.subr.mxu0 0.0
    %4005 = vmatpush1.msra.mxu0 0.0
    %4006 = vmatprep.subr.mxu0 0.0
    %4007 = vmatpush1.msra.mxu0 0.0
    %4008 = vmatprep.subr.mxu0 0.0
    %4009 = vmatpush1.msra.mxu0 %v3823
    %4010 = vmatprep.subr.mxu0 0.0
    %4011 = vmatpush2.msra.mxu0 0.0
    %4012 = vmatprep.subr.mxu0 0.0
    %4013 = vmatpush2.msra.mxu0 0.0
    %4014 = vmatprep.subr.mxu0 0.0
    %4015 = vmatpush2.msra.mxu0 0.0
    %4016 = vmatprep.subr.mxu0 0.0
    %4017 = vmatpush2.msra.mxu0 0.0
    %4018 = vmatprep.subr.mxu0 0.0
    %4019 = vmatpush2.msra.mxu0 0.0
    %4020 = vmatprep.subr.mxu0 0.0
    %4021 = vmatpush2.msra.mxu0 0.0
    %4022 = vmatprep.subr.mxu0 0.0
    %4023 = vmatpush2.msra.mxu0 0.0
    %4024 = vmatprep.subr.mxu0 0.0
    %4025 = vmatpush2.msra.mxu0 0.0
    %4026 = vmatprep.subr.mxu0 0.0
    %4027 = vmatpush2.msra.mxu0 0.0
    %4028 = vmatprep.subr.mxu0 0.0
    %4029 = vmatpush2.msra.mxu0 0.0
    %4030 = vmatprep.subr.mxu0 0.0
    %4031 = vmatpush2.msra.mxu0 0.0
    %4032 = vmatprep.subr.mxu0 0.0
    %4033 = vmatpush2.msra.mxu0 0.0
    %4034 = vmatprep.subr.mxu0 0.0
    %4035 = vmatpush2.msra.mxu0 0.0
    %4036 = vmatprep.subr.mxu0 0.0
    %4037 = vmatpush2.msra.mxu0 0.0
    %4038 = vmatprep.subr.mxu0 0.0
    %4039 = vmatpush2.msra.mxu0 0.0
    %4040 = vmatprep.subr.mxu0 0.0
    %4041 = vmatpush2.msra.mxu0 0.0
    %4042 = vmatprep.mubr.f32.mxu0 0.0
    %4043 = vmatmul.mubr.f32.gmra.mxu0 %v3976
    %v4044 = vpop.f32.mrf.mxu0
    %v4045 = vadd.f32 0.0, %v4044
    %v4046 = vpop.f32.mrf.mxu0
    %4047 = vdwg.mxu0
    %v4049 = vsel %vm192, %v3513, 0
    %4051 = vmatprep.subr.mxu0 0.0
    %4052 = vmatpush1.msra.mxu0 0.0
    %4053 = vmatprep.subr.mxu0 0.0
    %4054 = vmatpush1.msra.mxu0 0.0
    %4055 = vmatprep.subr.mxu0 0.0
    %4056 = vmatpush1.msra.mxu0 0.0
    %4057 = vmatprep.subr.mxu0 0.0
    %4058 = vmatpush1.msra.mxu0 0.0
    %4059 = vmatprep.subr.mxu0 0.0
    %4060 = vmatpush1.msra.mxu0 0.0
    %4061 = vmatprep.subr.mxu0 0.0
    %4062 = vmatpush1.msra.mxu0 0.0
    %4063 = vmatprep.subr.mxu0 0.0
    %4064 = vmatpush1.msra.mxu0 0.0
    %4065 = vmatprep.subr.mxu0 0.0
    %4066 = vmatpush1.msra.mxu0 0.0
    %4067 = vmatprep.subr.mxu0 0.0
    %4068 = vmatpush1.msra.mxu0 0.0
    %4069 = vmatprep.subr.mxu0 0.0
    %4070 = vmatpush1.msra.mxu0 0.0
    %4071 = vmatprep.subr.mxu0 0.0
    %4072 = vmatpush1.msra.mxu0 0.0
    %4073 = vmatprep.subr.mxu0 0.0
    %4074 = vmatpush1.msra.mxu0 0.0
    %4075 = vmatprep.subr.mxu0 0.0
    %4076 = vmatpush1.msra.mxu0 0.0
    %4077 = vmatprep.subr.mxu0 0.0
    %4078 = vmatpush1.msra.mxu0 0.0
    %4079 = vmatprep.subr.mxu0 0.0
    %4080 = vmatpush1.msra.mxu0 0.0
    %4081 = vmatprep.subr.mxu0 0.0
    %4082 = vmatpush1.msra.mxu0 %v3824
    %4083 = vmatprep.subr.mxu0 0.0
    %4084 = vmatpush2.msra.mxu0 0.0
    %4085 = vmatprep.subr.mxu0 0.0
    %4086 = vmatpush2.msra.mxu0 0.0
    %4087 = vmatprep.subr.mxu0 0.0
    %4088 = vmatpush2.msra.mxu0 0.0
    %4089 = vmatprep.subr.mxu0 0.0
    %4090 = vmatpush2.msra.mxu0 0.0
    %4091 = vmatprep.subr.mxu0 0.0
    %4092 = vmatpush2.msra.mxu0 0.0
    %4093 = vmatprep.subr.mxu0 0.0
    %4094 = vmatpush2.msra.mxu0 0.0
    %4095 = vmatprep.subr.mxu0 0.0
    %4096 = vmatpush2.msra.mxu0 0.0
    %4097 = vmatprep.subr.mxu0 0.0
    %4098 = vmatpush2.msra.mxu0 0.0
    %4099 = vmatprep.subr.mxu0 0.0
    %4100 = vmatpush2.msra.mxu0 0.0
    %4101 = vmatprep.subr.mxu0 0.0
    %4102 = vmatpush2.msra.mxu0 0.0
    %4103 = vmatprep.subr.mxu0 0.0
    %4104 = vmatpush2.msra.mxu0 0.0
    %4105 = vmatprep.subr.mxu0 0.0
    %4106 = vmatpush2.msra.mxu0 0.0
    %4107 = vmatprep.subr.mxu0 0.0
    %4108 = vmatpush2.msra.mxu0 0.0
    %4109 = vmatprep.subr.mxu0 0.0
    %4110 = vmatpush2.msra.mxu0 0.0
    %4111 = vmatprep.subr.mxu0 0.0
    %4112 = vmatpush2.msra.mxu0 0.0
    %4113 = vmatprep.subr.mxu0 0.0
    %4114 = vmatpush2.msra.mxu0 0.0
    %4115 = vmatprep.mubr.f32.mxu0 0.0
    %4116 = vmatmul.mubr.f32.gmra.mxu0 %v4049
    %v4117 = vpop.f32.mrf.mxu0
    %v4118 = vadd.f32 0.0, %v4117
    %v4119 = vpop.f32.mrf.mxu0
    %4120 = vdwg.mxu0
    %v4122 = vsel %vm192, %v3589, 0
    %4124 = vmatprep.subr.mxu0 0.0
    %4125 = vmatpush1.msra.mxu0 0.0
    %4126 = vmatprep.subr.mxu0 0.0
    %4127 = vmatpush1.msra.mxu0 0.0
    %4128 = vmatprep.subr.mxu0 0.0
    %4129 = vmatpush1.msra.mxu0 0.0
    %4130 = vmatprep.subr.mxu0 0.0
    %4131 = vmatpush1.msra.mxu0 0.0
    %4132 = vmatprep.subr.mxu0 0.0
    %4133 = vmatpush1.msra.mxu0 0.0
    %4134 = vmatprep.subr.mxu0 0.0
    %4135 = vmatpush1.msra.mxu0 0.0
    %4136 = vmatprep.subr.mxu0 0.0
    %4137 = vmatpush1.msra.mxu0 0.0
    %4138 = vmatprep.subr.mxu0 0.0
    %4139 = vmatpush1.msra.mxu0 0.0
    %4140 = vmatprep.subr.mxu0 0.0
    %4141 = vmatpush1.msra.mxu0 0.0
    %4142 = vmatprep.subr.mxu0 0.0
    %4143 = vmatpush1.msra.mxu0 0.0
    %4144 = vmatprep.subr.mxu0 0.0
    %4145 = vmatpush1.msra.mxu0 0.0
    %4146 = vmatprep.subr.mxu0 0.0
    %4147 = vmatpush1.msra.mxu0 0.0
    %4148 = vmatprep.subr.mxu0 0.0
    %4149 = vmatpush1.msra.mxu0 0.0
    %4150 = vmatprep.subr.mxu0 0.0
    %4151 = vmatpush1.msra.mxu0 0.0
    %4152 = vmatprep.subr.mxu0 0.0
    %4153 = vmatpush1.msra.mxu0 0.0
    %4154 = vmatprep.subr.mxu0 0.0
    %4155 = vmatpush1.msra.mxu0 %v3825
    %4156 = vmatprep.subr.mxu0 0.0
    %4157 = vmatpush2.msra.mxu0 0.0
    %4158 = vmatprep.subr.mxu0 0.0
    %4159 = vmatpush2.msra.mxu0 0.0
    %4160 = vmatprep.subr.mxu0 0.0
    %4161 = vmatpush2.msra.mxu0 0.0
    %4162 = vmatprep.subr.mxu0 0.0
    %4163 = vmatpush2.msra.mxu0 0.0
    %4164 = vmatprep.subr.mxu0 0.0
    %4165 = vmatpush2.msra.mxu0 0.0
    %4166 = vmatprep.subr.mxu0 0.0
    %4167 = vmatpush2.msra.mxu0 0.0
    %4168 = vmatprep.subr.mxu0 0.0
    %4169 = vmatpush2.msra.mxu0 0.0
    %4170 = vmatprep.subr.mxu0 0.0
    %4171 = vmatpush2.msra.mxu0 0.0
    %4172 = vmatprep.subr.mxu0 0.0
    %4173 = vmatpush2.msra.mxu0 0.0
    %4174 = vmatprep.subr.mxu0 0.0
    %4175 = vmatpush2.msra.mxu0 0.0
    %4176 = vmatprep.subr.mxu0 0.0
    %4177 = vmatpush2.msra.mxu0 0.0
    %4178 = vmatprep.subr.mxu0 0.0
    %4179 = vmatpush2.msra.mxu0 0.0
    %4180 = vmatprep.subr.mxu0 0.0
    %4181 = vmatpush2.msra.mxu0 0.0
    %4182 = vmatprep.subr.mxu0 0.0
    %4183 = vmatpush2.msra.mxu0 0.0
    %4184 = vmatprep.subr.mxu0 0.0
    %4185 = vmatpush2.msra.mxu0 0.0
    %4186 = vmatprep.subr.mxu0 0.0
    %4187 = vmatpush2.msra.mxu0 0.0
    %4188 = vmatprep.mubr.f32.mxu0 0.0
    %4189 = vmatmul.mubr.f32.gmra.mxu0 %v4122
    %v4190 = vpop.f32.mrf.mxu0
    %v4191 = vadd.f32 0.0, %v4190
    %v4192 = vpop.f32.mrf.mxu0
    %4193 = vdwg.mxu0
    %v4195 = vsel %vm192, %v3665, 0
    %4197 = vmatprep.subr.mxu0 0.0
    %4198 = vmatpush1.msra.mxu0 0.0
    %4199 = vmatprep.subr.mxu0 0.0
    %4200 = vmatpush1.msra.mxu0 0.0
    %4201 = vmatprep.subr.mxu0 0.0
    %4202 = vmatpush1.msra.mxu0 0.0
    %4203 = vmatprep.subr.mxu0 0.0
    %4204 = vmatpush1.msra.mxu0 0.0
    %4205 = vmatprep.subr.mxu0 0.0
    %4206 = vmatpush1.msra.mxu0 0.0
    %4207 = vmatprep.subr.mxu0 0.0
    %4208 = vmatpush1.msra.mxu0 0.0
    %4209 = vmatprep.subr.mxu0 0.0
    %4210 = vmatpush1.msra.mxu0 0.0
    %4211 = vmatprep.subr.mxu0 0.0
    %4212 = vmatpush1.msra.mxu0 0.0
    %4213 = vmatprep.subr.mxu0 0.0
    %4214 = vmatpush1.msra.mxu0 0.0
    %4215 = vmatprep.subr.mxu0 0.0
    %4216 = vmatpush1.msra.mxu0 0.0
    %4217 = vmatprep.subr.mxu0 0.0
    %4218 = vmatpush1.msra.mxu0 0.0
    %4219 = vmatprep.subr.mxu0 0.0
    %4220 = vmatpush1.msra.mxu0 0.0
    %4221 = vmatprep.subr.mxu0 0.0
    %4222 = vmatpush1.msra.mxu0 0.0
    %4223 = vmatprep.subr.mxu0 0.0
    %4224 = vmatpush1.msra.mxu0 0.0
    %4225 = vmatprep.subr.mxu0 0.0
    %4226 = vmatpush1.msra.mxu0 0.0
    %4227 = vmatprep.subr.mxu0 0.0
    %4228 = vmatpush1.msra.mxu0 %v3826
    %4229 = vmatprep.subr.mxu0 0.0
    %4230 = vmatpush2.msra.mxu0 0.0
    %4231 = vmatprep.subr.mxu0 0.0
    %4232 = vmatpush2.msra.mxu0 0.0
    %4233 = vmatprep.subr.mxu0 0.0
    %4234 = vmatpush2.msra.mxu0 0.0
    %4235 = vmatprep.subr.mxu0 0.0
    %4236 = vmatpush2.msra.mxu0 0.0
    %4237 = vmatprep.subr.mxu0 0.0
    %4238 = vmatpush2.msra.mxu0 0.0
    %4239 = vmatprep.subr.mxu0 0.0
    %4240 = vmatpush2.msra.mxu0 0.0
    %4241 = vmatprep.subr.mxu0 0.0
    %4242 = vmatpush2.msra.mxu0 0.0
    %4243 = vmatprep.subr.mxu0 0.0
    %4244 = vmatpush2.msra.mxu0 0.0
    %4245 = vmatprep.subr.mxu0 0.0
    %4246 = vmatpush2.msra.mxu0 0.0
    %4247 = vmatprep.subr.mxu0 0.0
    %4248 = vmatpush2.msra.mxu0 0.0
    %4249 = vmatprep.subr.mxu0 0.0
    %4250 = vmatpush2.msra.mxu0 0.0
    %4251 = vmatprep.subr.mxu0 0.0
    %4252 = vmatpush2.msra.mxu0 0.0
    %4253 = vmatprep.subr.mxu0 0.0
    %4254 = vmatpush2.msra.mxu0 0.0
    %4255 = vmatprep.subr.mxu0 0.0
    %4256 = vmatpush2.msra.mxu0 0.0
    %4257 = vmatprep.subr.mxu0 0.0
    %4258 = vmatpush2.msra.mxu0 0.0
    %4259 = vmatprep.subr.mxu0 0.0
    %4260 = vmatpush2.msra.mxu0 0.0
    %4261 = vmatprep.mubr.f32.mxu0 0.0
    %4262 = vmatmul.mubr.f32.gmra.mxu0 %v4195
    %v4263 = vpop.f32.mrf.mxu0
    %v4264 = vadd.f32 0.0, %v4263
    %v4265 = vpop.f32.mrf.mxu0
    %4266 = vdwg.mxu0
    %v4268 = vsel %vm192, %v3741, 0
    %4270 = vmatprep.subr.mxu0 0.0
    %4271 = vmatpush1.msra.mxu0 0.0
    %4272 = vmatprep.subr.mxu0 0.0
    %4273 = vmatpush1.msra.mxu0 0.0
    %4274 = vmatprep.subr.mxu0 0.0
    %4275 = vmatpush1.msra.mxu0 0.0
    %4276 = vmatprep.subr.mxu0 0.0
    %4277 = vmatpush1.msra.mxu0 0.0
    %4278 = vmatprep.subr.mxu0 0.0
    %4279 = vmatpush1.msra.mxu0 0.0
    %4280 = vmatprep.subr.mxu0 0.0
    %4281 = vmatpush1.msra.mxu0 0.0
    %4282 = vmatprep.subr.mxu0 0.0
    %4283 = vmatpush1.msra.mxu0 0.0
    %4284 = vmatprep.subr.mxu0 0.0
    %4285 = vmatpush1.msra.mxu0 0.0
    %4286 = vmatprep.subr.mxu0 0.0
    %4287 = vmatpush1.msra.mxu0 0.0
    %4288 = vmatprep.subr.mxu0 0.0
    %4289 = vmatpush1.msra.mxu0 0.0
    %4290 = vmatprep.subr.mxu0 0.0
    %4291 = vmatpush1.msra.mxu0 0.0
    %4292 = vmatprep.subr.mxu0 0.0
    %4293 = vmatpush1.msra.mxu0 0.0
    %4294 = vmatprep.subr.mxu0 0.0
    %4295 = vmatpush1.msra.mxu0 0.0
    %4296 = vmatprep.subr.mxu0 0.0
    %4297 = vmatpush1.msra.mxu0 0.0
    %4298 = vmatprep.subr.mxu0 0.0
    %4299 = vmatpush1.msra.mxu0 0.0
    %4300 = vmatprep.subr.mxu0 0.0
    %4301 = vmatpush1.msra.mxu0 %v3827
    %4302 = vmatprep.subr.mxu0 0.0
    %4303 = vmatpush2.msra.mxu0 0.0
    %4304 = vmatprep.subr.mxu0 0.0
    %4305 = vmatpush2.msra.mxu0 0.0
    %4306 = vmatprep.subr.mxu0 0.0
    %4307 = vmatpush2.msra.mxu0 0.0
    %4308 = vmatprep.subr.mxu0 0.0
    %4309 = vmatpush2.msra.mxu0 0.0
    %4310 = vmatprep.subr.mxu0 0.0
    %4311 = vmatpush2.msra.mxu0 0.0
    %4312 = vmatprep.subr.mxu0 0.0
    %4313 = vmatpush2.msra.mxu0 0.0
    %4314 = vmatprep.subr.mxu0 0.0
    %4315 = vmatpush2.msra.mxu0 0.0
    %4316 = vmatprep.subr.mxu0 0.0
    %4317 = vmatpush2.msra.mxu0 0.0
    %4318 = vmatprep.subr.mxu0 0.0
    %4319 = vmatpush2.msra.mxu0 0.0
    %4320 = vmatprep.subr.mxu0 0.0
    %4321 = vmatpush2.msra.mxu0 0.0
    %4322 = vmatprep.subr.mxu0 0.0
    %4323 = vmatpush2.msra.mxu0 0.0
    %4324 = vmatprep.subr.mxu0 0.0
    %4325 = vmatpush2.msra.mxu0 0.0
    %4326 = vmatprep.subr.mxu0 0.0
    %4327 = vmatpush2.msra.mxu0 0.0
    %4328 = vmatprep.subr.mxu0 0.0
    %4329 = vmatpush2.msra.mxu0 0.0
    %4330 = vmatprep.subr.mxu0 0.0
    %4331 = vmatpush2.msra.mxu0 0.0
    %4332 = vmatprep.subr.mxu0 0.0
    %4333 = vmatpush2.msra.mxu0 0.0
    %4334 = vmatprep.mubr.f32.mxu0 0.0
    %4335 = vmatmul.mubr.f32.gmra.mxu0 %v4268
    %v4336 = vpop.f32.mrf.mxu0
    %v4337 = vadd.f32 0.0, %v4336
    %v4338 = vpop.f32.mrf.mxu0
    %4339 = vdwg.mxu0
    %v4341 = vsel %vm192, %v3817, 0
    %4343 = vmatprep.subr.mxu0 0.0
    %4344 = vmatpush1.msra.mxu0 0.0
    %4345 = vmatprep.subr.mxu0 0.0
    %4346 = vmatpush1.msra.mxu0 0.0
    %4347 = vmatprep.subr.mxu0 0.0
    %4348 = vmatpush1.msra.mxu0 0.0
    %4349 = vmatprep.subr.mxu0 0.0
    %4350 = vmatpush1.msra.mxu0 0.0
    %4351 = vmatprep.subr.mxu0 0.0
    %4352 = vmatpush1.msra.mxu0 0.0
    %4353 = vmatprep.subr.mxu0 0.0
    %4354 = vmatpush1.msra.mxu0 0.0
    %4355 = vmatprep.subr.mxu0 0.0
    %4356 = vmatpush1.msra.mxu0 0.0
    %4357 = vmatprep.subr.mxu0 0.0
    %4358 = vmatpush1.msra.mxu0 0.0
    %4359 = vmatprep.subr.mxu0 0.0
    %4360 = vmatpush1.msra.mxu0 0.0
    %4361 = vmatprep.subr.mxu0 0.0
    %4362 = vmatpush1.msra.mxu0 0.0
    %4363 = vmatprep.subr.mxu0 0.0
    %4364 = vmatpush1.msra.mxu0 0.0
    %4365 = vmatprep.subr.mxu0 0.0
    %4366 = vmatpush1.msra.mxu0 0.0
    %4367 = vmatprep.subr.mxu0 0.0
    %4368 = vmatpush1.msra.mxu0 0.0
    %4369 = vmatprep.subr.mxu0 0.0
    %4370 = vmatpush1.msra.mxu0 0.0
    %4371 = vmatprep.subr.mxu0 0.0
    %4372 = vmatpush1.msra.mxu0 0.0
    %4373 = vmatprep.subr.mxu0 0.0
    %4374 = vmatpush1.msra.mxu0 %v3828
    %4375 = vmatprep.subr.mxu0 0.0
    %4376 = vmatpush2.msra.mxu0 0.0
    %4377 = vmatprep.subr.mxu0 0.0
    %4378 = vmatpush2.msra.mxu0 0.0
    %4379 = vmatprep.subr.mxu0 0.0
    %4380 = vmatpush2.msra.mxu0 0.0
    %4381 = vmatprep.subr.mxu0 0.0
    %4382 = vmatpush2.msra.mxu0 0.0
    %4383 = vmatprep.subr.mxu0 0.0
    %4384 = vmatpush2.msra.mxu0 0.0
    %4385 = vmatprep.subr.mxu0 0.0
    %4386 = vmatpush2.msra.mxu0 0.0
    %4387 = vmatprep.subr.mxu0 0.0
    %4388 = vmatpush2.msra.mxu0 0.0
    %4389 = vmatprep.subr.mxu0 0.0
    %4390 = vmatpush2.msra.mxu0 0.0
    %4391 = vmatprep.subr.mxu0 0.0
    %4392 = vmatpush2.msra.mxu0 0.0
    %4393 = vmatprep.subr.mxu0 0.0
    %4394 = vmatpush2.msra.mxu0 0.0
    %4395 = vmatprep.subr.mxu0 0.0
    %4396 = vmatpush2.msra.mxu0 0.0
    %4397 = vmatprep.subr.mxu0 0.0
    %4398 = vmatpush2.msra.mxu0 0.0
    %4399 = vmatprep.subr.mxu0 0.0
    %4400 = vmatpush2.msra.mxu0 0.0
    %4401 = vmatprep.subr.mxu0 0.0
    %4402 = vmatpush2.msra.mxu0 0.0
    %4403 = vmatprep.subr.mxu0 0.0
    %4404 = vmatpush2.msra.mxu0 0.0
    %4405 = vmatprep.subr.mxu0 0.0
    %4406 = vmatpush2.msra.mxu0 0.0
    %4407 = vmatprep.mubr.f32.mxu0 0.0
    %4408 = vmatmul.mubr.f32.gmra.mxu0 %v4341
    %v4409 = vpop.f32.mrf.mxu0
    %v4410 = vadd.f32 0.0, %v4409
    %v4411 = vpop.f32.mrf.mxu0
    %4412 = vdwg.mxu0
    %v4413 = vsel %vm94, %v3899, 0.0
    %v4414 = vsel %vm94, %v4045, 0.0
    %v4415 = vadd.f32 %v4413, %v4414
    %v4416 = vsel %vm94, %v4191, 0.0
    %v4417 = vadd.f32 %v4415, %v4416
    %v4418 = vsel %vm94, %v4337, 0.0
    %v4419 = vadd.f32 %v4417, %v4418
    %v4420 = vsel %vm94, %v3972, 0.0
    %v4421 = vsel %vm94, %v4118, 0.0
    %v4422 = vadd.f32 %v4420, %v4421
    %v4423 = vsel %vm94, %v4264, 0.0
    %v4424 = vadd.f32 %v4422, %v4423
    %v4425 = vsel %vm94, %v4410, 0.0
    %v4426 = vadd.f32 %v4424, %v4425
    %s4427 = scalar_lea.vmem %s6, 1
    %v4428 = vld [vmem:[%s4427] sm:$0x1]
    %v4430 = vlaneseq
    %v4431 = vshrl.u32 %v4430, 7
    %v4432 = vsub.s32 0, %v4431
    %v4433 = vrot.slane %v4428, %v4432
    %v4435 = vadd.f32 %v4419, %v4433
    %v4436 = vadd.f32 %v4426, %v4433
    %v4437 = vadd.f32 %v4435, %v2406
    %v4438 = vadd.f32 %v4436, %v2407
    %s4439 = scalar_lea.vmem %s7, 1
    %v4440 = vld [vmem:[%s4439] sm:$0x1]
    %s4441 = scalar_lea.vmem %s8, 1
    %v4442 = vld [vmem:[%s4441] sm:$0x1]
    %v4443 = vsel %vm94, %v4437, 0.0
    %4444 = vadd.xlane.f32.xlu0 %v4443
    %v4445 = vpop.xlane.xlu0 %4444
    %v4446 = vsel %vm94, %v4438, 0.0
    %4447 = vadd.xlane.f32.xlu0 %v4446
    %v4448 = vpop.xlane.xlu0 %4447
    %v4449 = vmul.f32 %v4445, %v2120
    %v4450 = vmul.f32 %v4448, %v2120
    %v4451 = vsub.f32 %v4437, %v4449
    %v4452 = vsub.f32 %v4438, %v4450
    %v4453 = vmul.f32 %v4451, %v4451
    %v4454 = vmul.f32 %v4452, %v4452
    %v4455 = vsel %vm94, %v4453, 0.0
    %4456 = vadd.xlane.f32.xlu0 %v4455
    %v4457 = vpop.xlane.xlu0 %4456
    %v4458 = vsel %vm94, %v4454, 0.0
    %4459 = vadd.xlane.f32.xlu0 %v4458
    %v4460 = vpop.xlane.xlu0 %4459
    %v4461 = vmul.f32 %v4457, %v2120
    %v4462 = vmul.f32 %v4460, %v2120
    %v4463 = vadd.f32 %v4461, 1e-05
    %v4464 = vadd.f32 %v4462, 1e-05
    %v4465 = vrsqrt.pop %v4463
    %v4466 = vrsqrt.pop %v4464
    %v4467 = vmul.f32 %v4451, %v4465
    %v4468 = vmul.f32 %v4452, %v4466
    %v4470 = vlaneseq
    %v4471 = vshrl.u32 %v4470, 7
    %v4472 = vsub.s32 0, %v4471
    %v4473 = vrot.slane %v4440, %v4472
    %v4475 = vmul.f32 %v4467, %v4473
    %v4476 = vmul.f32 %v4468, %v4473
    %v4478 = vlaneseq
    %v4479 = vshrl.u32 %v4478, 7
    %v4480 = vsub.s32 0, %v4479
    %v4481 = vrot.slane %v4442, %v4480
    %v4483 = vadd.f32 %v4475, %v4481
    %v4484 = vadd.f32 %v4476, %v4481
    %v4485 = vmul.f32 %v4483, %v2160
    %v4486 = vmul.f32 %v4484, %v2165
    %s4487 = scalar_lea.vmem %s9, 32
    %v4488 = vld [vmem:[%s4487] sm:$0xff]
    %v4489 = vld [vmem:[%s4487 + $0x8] sm:$0xff]
    %v4490 = vld [vmem:[%s4487 + $0x10] sm:$0xff]
    %v4491 = vld [vmem:[%s4487 + $0x18] sm:$0xff]
    %s4492 = scalar_lea.vmem %s10, 1
    %v4493 = vld [vmem:[%s4492] sm:$0x1]
    %v4495 = vlaneseq
    %v4496 = vshrl.u32 %v4495, 7
    %v4497 = vsub.s32 0, %v4496
    %v4498 = vrot.slane %v4493, %v4497
    %v4501 = vsel %vm94, %v4485, 0
    %v4504 = vsel %vm94, %v4486, 0
    %4506 = vmatprep.subr.mxu0 0.0
    %4507 = vmatpush1.msra.mxu0 0.0
    %4508 = vmatprep.subr.mxu0 0.0
    %4509 = vmatpush1.msra.mxu0 0.0
    %4510 = vmatprep.subr.mxu0 0.0
    %4511 = vmatpush1.msra.mxu0 0.0
    %4512 = vmatprep.subr.mxu0 0.0
    %4513 = vmatpush1.msra.mxu0 0.0
    %4514 = vmatprep.subr.mxu0 0.0
    %4515 = vmatpush1.msra.mxu0 0.0
    %4516 = vmatprep.subr.mxu0 0.0
    %4517 = vmatpush1.msra.mxu0 0.0
    %4518 = vmatprep.subr.mxu0 0.0
    %4519 = vmatpush1.msra.mxu0 0.0
    %4520 = vmatprep.subr.mxu0 0.0
    %4521 = vmatpush1.msra.mxu0 0.0
    %4522 = vmatprep.subr.mxu0 0.0
    %4523 = vmatpush1.msra.mxu0 0.0
    %4524 = vmatprep.subr.mxu0 0.0
    %4525 = vmatpush1.msra.mxu0 0.0
    %4526 = vmatprep.subr.mxu0 0.0
    %4527 = vmatpush1.msra.mxu0 0.0
    %4528 = vmatprep.subr.mxu0 0.0
    %4529 = vmatpush1.msra.mxu0 0.0
    %4530 = vmatprep.subr.mxu0 0.0
    %4531 = vmatpush1.msra.mxu0 %v4491
    %4532 = vmatprep.subr.mxu0 0.0
    %4533 = vmatpush1.msra.mxu0 %v4490
    %4534 = vmatprep.subr.mxu0 0.0
    %4535 = vmatpush1.msra.mxu0 %v4489
    %4536 = vmatprep.subr.mxu0 0.0
    %4537 = vmatpush1.msra.mxu0 %v4488
    %4538 = vmatprep.subr.mxu0 0.0
    %4539 = vmatpush2.msra.mxu0 0.0
    %4540 = vmatprep.subr.mxu0 0.0
    %4541 = vmatpush2.msra.mxu0 0.0
    %4542 = vmatprep.subr.mxu0 0.0
    %4543 = vmatpush2.msra.mxu0 0.0
    %4544 = vmatprep.subr.mxu0 0.0
    %4545 = vmatpush2.msra.mxu0 0.0
    %4546 = vmatprep.subr.mxu0 0.0
    %4547 = vmatpush2.msra.mxu0 0.0
    %4548 = vmatprep.subr.mxu0 0.0
    %4549 = vmatpush2.msra.mxu0 0.0
    %4550 = vmatprep.subr.mxu0 0.0
    %4551 = vmatpush2.msra.mxu0 0.0
    %4552 = vmatprep.subr.mxu0 0.0
    %4553 = vmatpush2.msra.mxu0 0.0
    %4554 = vmatprep.subr.mxu0 0.0
    %4555 = vmatpush2.msra.mxu0 0.0
    %4556 = vmatprep.subr.mxu0 0.0
    %4557 = vmatpush2.msra.mxu0 0.0
    %4558 = vmatprep.subr.mxu0 0.0
    %4559 = vmatpush2.msra.mxu0 0.0
    %4560 = vmatprep.subr.mxu0 0.0
    %4561 = vmatpush2.msra.mxu0 0.0
    %4562 = vmatprep.subr.mxu0 0.0
    %4563 = vmatpush2.msra.mxu0 0.0
    %4564 = vmatprep.subr.mxu0 0.0
    %4565 = vmatpush2.msra.mxu0 0.0
    %4566 = vmatprep.subr.mxu0 0.0
    %4567 = vmatpush2.msra.mxu0 0.0
    %4568 = vmatprep.subr.mxu0 0.0
    %4569 = vmatpush2.msra.mxu0 0.0
    %4570 = vmatprep.mubr.f32.mxu0 0.0
    %4571 = vmatmul.mubr.f32.gmra.mxu0 %v4501
    %v4572 = vpop.f32.mrf.mxu0
    %v4573 = vadd.f32 %v4498, %v4572
    %v4574 = vpop.f32.mrf.mxu0
    %4575 = vmatprep.mubr.f32.mxu0 0.0
    %4576 = vmatmul.mubr.f32.gmra.mxu0 %v4504
    %v4577 = vpop.f32.mrf.mxu0
    %v4578 = vadd.f32 %v4498, %v4577
    %v4579 = vpop.f32.mrf.mxu0
    %4580 = vdwg.mxu0
    %v4581 = vmax.f32 %v4573, 0.0
    %v4582 = vmax.f32 %v4578, 0.0
    %s4583 = scalar_lea.vmem %s11, 64
    %v4584 = vld [vmem:[%s4583] sm:$0xff]
    %v4585 = vld [vmem:[%s4583 + $0x8] sm:$0xff]
    %v4586 = vld [vmem:[%s4583 + $0x10] sm:$0xff]
    %v4587 = vld [vmem:[%s4583 + $0x18] sm:$0xff]
    %v4588 = vld [vmem:[%s4583 + $0x20] sm:$0xff]
    %v4589 = vld [vmem:[%s4583 + $0x28] sm:$0xff]
    %v4590 = vld [vmem:[%s4583 + $0x30] sm:$0xff]
    %v4591 = vld [vmem:[%s4583 + $0x38] sm:$0xff]
    %s4592 = scalar_lea.vmem %s12, 1
    %v4593 = vld [vmem:[%s4592] sm:$0x1]
    %v4595 = vlaneseq
    %v4596 = vshrl.u32 %v4595, 7
    %v4597 = vsub.s32 0, %v4596
    %v4598 = vrot.slane %v4593, %v4597
    %v4601 = vsel %vm2278, %v4581, 0
    %v4604 = vsel %vm2278, %v4582, 0
    %4606 = vmatprep.subr.mxu0 0.0
    %4607 = vmatpush1.msra.mxu0 0.0
    %4608 = vmatprep.subr.mxu0 0.0
    %4609 = vmatpush1.msra.mxu0 0.0
    %4610 = vmatprep.subr.mxu0 0.0
    %4611 = vmatpush1.msra.mxu0 0.0
    %4612 = vmatprep.subr.mxu0 0.0
    %4613 = vmatpush1.msra.mxu0 0.0
    %4614 = vmatprep.subr.mxu0 0.0
    %4615 = vmatpush1.msra.mxu0 0.0
    %4616 = vmatprep.subr.mxu0 0.0
    %4617 = vmatpush1.msra.mxu0 0.0
    %4618 = vmatprep.subr.mxu0 0.0
    %4619 = vmatpush1.msra.mxu0 0.0
    %4620 = vmatprep.subr.mxu0 0.0
    %4621 = vmatpush1.msra.mxu0 0.0
    %4622 = vmatprep.subr.mxu0 0.0
    %4623 = vmatpush1.msra.mxu0 %v4591
    %4624 = vmatprep.subr.mxu0 0.0
    %4625 = vmatpush1.msra.mxu0 %v4590
    %4626 = vmatprep.subr.mxu0 0.0
    %4627 = vmatpush1.msra.mxu0 %v4589
    %4628 = vmatprep.subr.mxu0 0.0
    %4629 = vmatpush1.msra.mxu0 %v4588
    %4630 = vmatprep.subr.mxu0 0.0
    %4631 = vmatpush1.msra.mxu0 %v4587
    %4632 = vmatprep.subr.mxu0 0.0
    %4633 = vmatpush1.msra.mxu0 %v4586
    %4634 = vmatprep.subr.mxu0 0.0
    %4635 = vmatpush1.msra.mxu0 %v4585
    %4636 = vmatprep.subr.mxu0 0.0
    %4637 = vmatpush1.msra.mxu0 %v4584
    %4638 = vmatprep.subr.mxu0 0.0
    %4639 = vmatpush2.msra.mxu0 0.0
    %4640 = vmatprep.subr.mxu0 0.0
    %4641 = vmatpush2.msra.mxu0 0.0
    %4642 = vmatprep.subr.mxu0 0.0
    %4643 = vmatpush2.msra.mxu0 0.0
    %4644 = vmatprep.subr.mxu0 0.0
    %4645 = vmatpush2.msra.mxu0 0.0
    %4646 = vmatprep.subr.mxu0 0.0
    %4647 = vmatpush2.msra.mxu0 0.0
    %4648 = vmatprep.subr.mxu0 0.0
    %4649 = vmatpush2.msra.mxu0 0.0
    %4650 = vmatprep.subr.mxu0 0.0
    %4651 = vmatpush2.msra.mxu0 0.0
    %4652 = vmatprep.subr.mxu0 0.0
    %4653 = vmatpush2.msra.mxu0 0.0
    %4654 = vmatprep.subr.mxu0 0.0
    %4655 = vmatpush2.msra.mxu0 0.0
    %4656 = vmatprep.subr.mxu0 0.0
    %4657 = vmatpush2.msra.mxu0 0.0
    %4658 = vmatprep.subr.mxu0 0.0
    %4659 = vmatpush2.msra.mxu0 0.0
    %4660 = vmatprep.subr.mxu0 0.0
    %4661 = vmatpush2.msra.mxu0 0.0
    %4662 = vmatprep.subr.mxu0 0.0
    %4663 = vmatpush2.msra.mxu0 0.0
    %4664 = vmatprep.subr.mxu0 0.0
    %4665 = vmatpush2.msra.mxu0 0.0
    %4666 = vmatprep.subr.mxu0 0.0
    %4667 = vmatpush2.msra.mxu0 0.0
    %4668 = vmatprep.subr.mxu0 0.0
    %4669 = vmatpush2.msra.mxu0 0.0
    %4670 = vmatprep.mubr.f32.mxu0 0.0
    %4671 = vmatmul.mubr.f32.gmra.mxu0 %v4601
    %v4672 = vpop.f32.mrf.mxu0
    %v4673 = vadd.f32 %v4598, %v4672
    %v4674 = vpop.f32.mrf.mxu0
    %4675 = vmatprep.mubr.f32.mxu0 0.0
    %4676 = vmatmul.mubr.f32.gmra.mxu0 %v4604
    %v4677 = vpop.f32.mrf.mxu0
    %v4678 = vadd.f32 %v4598, %v4677
    %v4679 = vpop.f32.mrf.mxu0
    %4680 = vdwg.mxu0
    %v4681 = vadd.f32 %v4673, %v4485
    %v4682 = vadd.f32 %v4678, %v4486
    %s4683 = scalar_lea.vmem %s13, 1
    %v4684 = vld [vmem:[%s4683] sm:$0x1]
    %s4685 = scalar_lea.vmem %s14, 1
    %v4686 = vld [vmem:[%s4685] sm:$0x1]
    %v4687 = vsel %vm94, %v4681, 0.0
    %4688 = vadd.xlane.f32.xlu0 %v4687
    %v4689 = vpop.xlane.xlu0 %4688
    %v4690 = vsel %vm94, %v4682, 0.0
    %4691 = vadd.xlane.f32.xlu0 %v4690
    %v4692 = vpop.xlane.xlu0 %4691
    %v4693 = vmul.f32 %v4689, %v2120
    %v4694 = vmul.f32 %v4692, %v2120
    %v4695 = vsub.f32 %v4681, %v4693
    %v4696 = vsub.f32 %v4682, %v4694
    %v4697 = vmul.f32 %v4695, %v4695
    %v4698 = vmul.f32 %v4696, %v4696
    %v4699 = vsel %vm94, %v4697, 0.0
    %4700 = vadd.xlane.f32.xlu0 %v4699
    %v4701 = vpop.xlane.xlu0 %4700
    %v4702 = vsel %vm94, %v4698, 0.0
    %4703 = vadd.xlane.f32.xlu0 %v4702
    %v4704 = vpop.xlane.xlu0 %4703
    %v4705 = vmul.f32 %v4701, %v2120
    %v4706 = vmul.f32 %v4704, %v2120
    %v4707 = vadd.f32 %v4705, 1e-05
    %v4708 = vadd.f32 %v4706, 1e-05
    %v4709 = vrsqrt.pop %v4707
    %v4710 = vrsqrt.pop %v4708
    %v4711 = vmul.f32 %v4695, %v4709
    %v4712 = vmul.f32 %v4696, %v4710
    %v4714 = vlaneseq
    %v4715 = vshrl.u32 %v4714, 7
    %v4716 = vsub.s32 0, %v4715
    %v4717 = vrot.slane %v4684, %v4716
    %v4719 = vmul.f32 %v4711, %v4717
    %v4720 = vmul.f32 %v4712, %v4717
    %v4722 = vlaneseq
    %v4723 = vshrl.u32 %v4722, 7
    %v4724 = vsub.s32 0, %v4723
    %v4725 = vrot.slane %v4686, %v4724
    %v4727 = vadd.f32 %v4719, %v4725
    %v4728 = vadd.f32 %v4720, %v4725
    %v4729 = vmul.f32 %v4727, %v2160
    %v4730 = vmul.f32 %v4728, %v2165
    %v4731 = vsel %vm94, %v4729, 0.0
    %v4732 = vsel %vm94, %v4730, 0.0
    %v4733 = vadd.f32 %v4731, %v4732
    %v4734 = vrot.slane %v4733, 4
    %v4735 = vadd.f32 %v4733, %v4734
    %v4736 = vrot.slane %v4735, 2
    %v4737 = vadd.f32 %v4735, %v4736
    %v4738 = vrot.slane %v4737, 1
    %v4739 = vadd.f32 %v4737, %v4738
    %v4740 = vrcp.pop 16.0
    %v4741 = vmul.f32 %v4739, %v4740
    %v4742 = vsub.f32 %v4729, %v4741
    %v4743 = vsub.f32 %v4730, %v4741
    %v4744 = vmul.f32 %v4742, %v4742
    %v4745 = vmul.f32 %v4743, %v4743
    %v4746 = vsel %vm94, %v4744, 0.0
    %v4747 = vsel %vm94, %v4745, 0.0
    %v4748 = vadd.f32 %v4746, %v4747
    %v4749 = vrot.slane %v4748, 4
    %v4750 = vadd.f32 %v4748, %v4749
    %v4751 = vrot.slane %v4750, 2
    %v4752 = vadd.f32 %v4750, %v4751
    %v4753 = vrot.slane %v4752, 1
    %v4754 = vadd.f32 %v4752, %v4753
    %v4755 = vmul.f32 %v4754, %v4740
    %v4756 = vadd.f32 %v4755, 1e-05
    %v4757 = vrsqrt.pop %v4756
    %v4758 = vmul.f32 %v4742, %v4757
    %v4759 = vmul.f32 %v4743, %v4757
    %v4760 = vld [vmem:[%s15] sm:$0x1]
    %v4762 = vlaneseq
    %v4763 = vshrl.u32 %v4762, 7
    %v4764 = vsub.s32 0, %v4763
    %v4765 = vrot.slane %v4760, %v4764
    %v4767 = vmul.f32 %v4758, %v4765
    %v4768 = vmul.f32 %v4759, %v4765
    %v4769 = vld [vmem:[%s16] sm:$0x1]
    %v4771 = vlaneseq
    %v4772 = vshrl.u32 %v4771, 7
    %v4773 = vsub.s32 0, %v4772
    %v4774 = vrot.slane %v4769, %v4773
    %v4776 = vadd.f32 %v4767, %v4774
    %v4777 = vadd.f32 %v4768, %v4774
    %4778 = vst.msk [vmem:[#allocation5] sm:$0xff] %vm94, %v4776
    %4779 = vst.msk [vmem:[#allocation5 + $0x8] sm:$0xff] %vm94, %v4777
    // Predicated region
    $region74: #{trans_encoder_forward.1} parent=1 // pred_check
      _
    $region75: #{trans_encoder_forward.1} parent=1 // pred_check_branch
      %4781 = sbr.rel (0) target = $region77
    $region76: #{trans_encoder_forward.1} parent=1 // pred_region
      %s4783 = ssub.s32 256, 256
      %4784 = vsyncadd [#allocation4], %s4783
      %s4785 = sshll.u32 [#allocation5], 4
      %s4786 = int_to_ptr.vmem [resolvable:$true] %s4785
      %4791 = dma.vmem_to_hbm [thread:$0]  %s4786, 256, %s17, [#allocation4], 128, 128, 8
    $region77: #{trans_encoder_forward.1} parent=1 // pred_fallthru
      _
    // Predicated region
    $region78: #{trans_encoder_forward.1} parent=1 // pred_check
      _
    $region79: #{trans_encoder_forward.1} parent=1 // pred_check_branch
      %4793 = sbr.rel (0) target = $region81
    $region80: #{trans_encoder_forward.1} parent=1 // pred_region
      %4794 = dma.done [#allocation4], 256
    $region81: #{trans_encoder_forward.1} parent=1 // pred_fallthru
      _
    %4795 = vsyncpa [#allocation3], 1
    %4796 = vsyncpa [#allocation4], 1

</llo_original>
